<compile_context>
chip_gen: v6e
topology: v6e:2x2x1
jax: 0.10.0
libtpu: 0.0.40
codegen_flags: <defaults>
</compile_context>

<pallas_src>
import jax
import jax.numpy as jnp
import numpy as np
from jax.experimental import pallas as pl
from jax.experimental.pallas import tpu as pltpu

HIDDEN_DIM = 32        # config['hidden_dim']
K_CHEB = 3             # ChebConv K
OUT_DIM = 3            # mlpRep output dim (xyz)
NEG_SLOPE = 0.01       # F.leaky_relu default
BN_EPS = 1e-5          # nn.BatchNorm1d default
NORM_EPS = 1e-12       # F.normalize default

# Row layout of the packed small-parameter array pk: (PK_ROWS, 128) f32.
#   rows 0..3   : ChebConv biases  b1..b4    (cols 0:HIDDEN_DIM)
#   rows 4..6   : BatchNorm gammas g1..g3    (cols 0:HIDDEN_DIM)
#   rows 7..9   : BatchNorm betas  be1..be3  (cols 0:HIDDEN_DIM)
#   row  10     : mlpRep bias                (cols 0:OUT_DIM)
#   rows 16..47 : mlpRep weight [HIDDEN_DIM, OUT_DIM]
PK_B, PK_G, PK_BE, PK_BM, PK_WM = 0, 4, 7, 10, 16
PK_ROWS, PK_COLS = 48, 128


# ----- math helpers (pure jnp; shared by the kernel and the matching ref) -----
def _leaky_relu(x):
    return jnp.where(x >= 0, x, NEG_SLOPE * x)


def _batchnorm(x, gamma, beta):
    # nn.BatchNorm1d on [N, C] in training mode: per-channel batch statistics
    # (biased variance).  Running-stat buffers are not updated here.
    mean = jnp.mean(x, axis=0, keepdims=True)
    var = jnp.mean((x - mean) ** 2, axis=0, keepdims=True)
    return (x - mean) * jax.lax.rsqrt(var + BN_EPS) * gamma + beta


def _cheb_fused(h, L_bf, L2_bf, wf_bf, b):
    """Fused ChebConv (K=3): one weight matmul per layer.

    h: [N, H] f32, L_bf/L2_bf: [N, N] bf16, wf_bf: [K*H, H] bf16, b: [1, H] f32.
    T2 h uses the precomputed L2 = 2 L@L - I, so the two propagation matmuls
    are independent; the K per-order weight matmuls are fused into a single
    [N, K*H] @ [K*H, H] contraction.  MXU inputs are bf16, accumulation f32.
    """
    h_bf = h.astype(jnp.bfloat16)
    t1 = jnp.dot(L_bf, h_bf, preferred_element_type=jnp.float32)
    t2 = jnp.dot(L2_bf, h_bf, preferred_element_type=jnp.float32)
    basis = jnp.concatenate([h, t1, t2], axis=1).astype(jnp.bfloat16)
    return jnp.dot(basis, wf_bf, preferred_element_type=jnp.float32) + b


def _cheb_unfused(h, L_bf, L2_bf, wf_bf, b):
    """Same math as _cheb_fused but with per-order weight matmuls (no lane-axis
    concatenate).  Used only as a lowering-portability fallback."""
    H = HIDDEN_DIM
    h_bf = h.astype(jnp.bfloat16)
    t1 = jnp.dot(L_bf, h_bf, preferred_element_type=jnp.float32)
    t2 = jnp.dot(L2_bf, h_bf, preferred_element_type=jnp.float32)
    out = jnp.dot(h_bf, wf_bf[0:H], preferred_element_type=jnp.float32)
    out = out + jnp.dot(t1.astype(jnp.bfloat16), wf_bf[H:2 * H],
                        preferred_element_type=jnp.float32)
    out = out + jnp.dot(t2.astype(jnp.bfloat16), wf_bf[2 * H:3 * H],
                        preferred_element_type=jnp.float32)
    return out + b


# ------------------------------- Pallas kernel --------------------------------
def _hno_body(cheb, x_ref, L_ref, L2_ref, wf_ref, pk_ref, out_ref):
    H = HIDDEN_DIM

    def vec(i, w=H):                       # one packed-parameter row
        return pk_ref[i:i + 1, 0:w]

    L = L_ref[...]                         # [N, N] bf16
    L2 = L2_ref[...]                       # [N, N] bf16
    h = x_ref[...]                         # [N, H] f32 (input padded 3 -> H)

    h = cheb(h, L, L2, wf_ref[0], vec(PK_B + 0))
    h = _batchnorm(_leaky_relu(h), vec(PK_G + 0), vec(PK_BE + 0))

    h = cheb(h, L, L2, wf_ref[1], vec(PK_B + 1))
    h = _batchnorm(_leaky_relu(h), vec(PK_G + 1), vec(PK_BE + 1))

    h = cheb(h, L, L2, wf_ref[2], vec(PK_B + 2))
    h = _batchnorm(jnp.maximum(h, 0.0), vec(PK_G + 2), vec(PK_BE + 2))

    h = cheb(h, L, L2, wf_ref[3], vec(PK_B + 3))

    # F.normalize(x, p=2, dim=1): x / max(||x||, eps) == x * rsqrt(max(||x||^2, eps^2))
    sq = jnp.sum(h * h, axis=1, keepdims=True)
    h = h * jax.lax.rsqrt(jnp.maximum(sq, NORM_EPS * NORM_EPS))

    # mlpRep: Linear(hidden_dim, 3)
    wm = pk_ref[PK_WM:PK_WM + H, 0:OUT_DIM].astype(jnp.bfloat16)
    out_ref[...] = jnp.dot(h.astype(jnp.bfloat16), wm,
                           preferred_element_type=jnp.float32) + vec(PK_BM, OUT_DIM)


def hno_kernel_fused(*refs):
    _hno_body(_cheb_fused, *refs)


def hno_kernel_unfused(*refs):
    _hno_body(_cheb_unfused, *refs)


# --------------------------------- JAX glue -----------------------------------
def scaled_laplacian(edge_index, num_nodes):
    """ChebConv 'sym' scaled Laplacian with lambda_max=2: L_hat = -D^-1/2 A D^-1/2."""
    src, dst = edge_index[0], edge_index[1]
    A = jnp.zeros((num_nodes, num_nodes), jnp.float32).at[src, dst].add(1.0)
    deg = jnp.sum(A, axis=1)
    d_inv_sqrt = jnp.where(deg > 0, jax.lax.rsqrt(jnp.maximum(deg, 1e-30)), 0.0)
    return -(d_inv_sqrt[:, None] * A * d_inv_sqrt[None, :])


def _fuse_cheb_weights(params, hidden_dim=HIDDEN_DIM, K=K_CHEB):
    """Stack all four layers' weights as [4, K*H, H] bf16 (layer-1 input padded)."""
    H = hidden_dim
    w1 = params["w1"]                                      # [K, 3, H]
    w1p = jnp.pad(w1, ((0, 0), (0, H - w1.shape[1]), (0, 0)))
    ws = [w1p, params["w2"], params["w3"], params["w4"]]   # each [K, H, H]
    wf = jnp.stack([w.reshape(K * H, H) for w in ws], axis=0)
    return wf.astype(jnp.bfloat16)


def _pack_params(params, hidden_dim=HIDDEN_DIM):
    """Pack all tiny per-channel parameters into one (48, 128) f32 array (1 DMA)."""
    H = hidden_dim
    pk = jnp.zeros((PK_ROWS, PK_COLS), jnp.float32)
    for i in range(4):
        pk = pk.at[PK_B + i, :H].set(params[f"b{i + 1}"][0])
    for i in range(3):
        pk = pk.at[PK_G + i, :H].set(params[f"g{i + 1}"][0])
        pk = pk.at[PK_BE + i, :H].set(params[f"be{i + 1}"][0])
    pk = pk.at[PK_BM, :OUT_DIM].set(params["bm"][0])
    pk = pk.at[PK_WM:PK_WM + H, :OUT_DIM].set(params["wm"])
    return pk


def _prepare(x, edge_index, params):
    """Build the 5 kernel operands: padded x, bf16 L, bf16 L2, fused weights, param pack."""
    N = x.shape[0]
    H = HIDDEN_DIM
    L = scaled_laplacian(edge_index, N)
    L2 = 2.0 * jnp.dot(L, L, precision=jax.lax.Precision.HIGHEST) \
        - jnp.eye(N, dtype=jnp.float32)
    x_pad = jnp.pad(x, ((0, 0), (0, H - x.shape[1])))
    return (x_pad, L.astype(jnp.bfloat16), L2.astype(jnp.bfloat16),
            _fuse_cheb_weights(params), _pack_params(params))


def _pallas_hno(kernel, num_nodes):
    vmem = pl.BlockSpec(memory_space=pltpu.MemorySpace.VMEM)
    return pl.pallas_call(
        kernel,
        out_shape=jax.ShapeDtypeStruct((num_nodes, OUT_DIM), jnp.float32),
        in_specs=[vmem] * 5,
        out_specs=vmem,
    )


def hno_forward(x, edge_index, params):
    N = x.shape[0]
    args = _prepare(x, edge_index, params)
    try:
        return _pallas_hno(hno_kernel_fused, N)(*args)
    except Exception:
        # Portability guard: identical math with per-order weight matmuls in
        # case the fused-basis lane concatenate is unsupported on this toolchain.
        return _pallas_hno(hno_kernel_unfused, N)(*args)


# ------------------------------- references -----------------------------------
def hno_ref_matching(x, edge_index, params):
    """Pure-JAX reference using the exact same math (bf16 MXU operands, L2
    operator, fused weights) — validates the Pallas lowering tightly."""
    x_pad, L_bf, L2_bf, wf_bf, _ = _prepare(x, edge_index, params)
    h = _cheb_fused(x_pad, L_bf, L2_bf, wf_bf[0], params["b1"])
    h = _batchnorm(_leaky_relu(h), params["g1"], params["be1"])
    h = _cheb_fused(h, L_bf, L2_bf, wf_bf[1], params["b2"])
    h = _batchnorm(_leaky_relu(h), params["g2"], params["be2"])
    h = _cheb_fused(h, L_bf, L2_bf, wf_bf[2], params["b3"])
    h = _batchnorm(jnp.maximum(h, 0.0), params["g3"], params["be3"])
    h = _cheb_fused(h, L_bf, L2_bf, wf_bf[3], params["b4"])
    sq = jnp.sum(h * h, axis=1, keepdims=True)
    h = h * jax.lax.rsqrt(jnp.maximum(sq, NORM_EPS * NORM_EPS))
    return jnp.dot(h.astype(jnp.bfloat16), params["wm"].astype(jnp.bfloat16),
                   preferred_element_type=jnp.float32) + params["bm"]


def hno_ref_f32(x, edge_index, params):
    """Full-f32 PyTorch-semantics reference (Chebyshev recurrence, no bf16 cast),
    compared at a loose tolerance as a semantic sanity check."""
    L = scaled_laplacian(edge_index, x.shape[0])
    hp = jax.lax.Precision.HIGHEST

    def cheb(h, w, b):
        t0, t1 = h, jnp.dot(L, h, precision=hp)
        out = jnp.dot(t0, w[0], precision=hp) + jnp.dot(t1, w[1], precision=hp)
        for k in range(2, w.shape[0]):
            t2 = 2.0 * jnp.dot(L, t1, precision=hp) - t0
            out = out + jnp.dot(t2, w[k], precision=hp)
            t0, t1 = t1, t2
        return out + b

    h = _batchnorm(_leaky_relu(cheb(x, params["w1"], params["b1"])),
                   params["g1"], params["be1"])
    h = _batchnorm(_leaky_relu(cheb(h, params["w2"], params["b2"])),
                   params["g2"], params["be2"])
    h = _batchnorm(jnp.maximum(cheb(h, params["w3"], params["b3"]), 0.0),
                   params["g3"], params["be3"])
    h = cheb(h, params["w4"], params["b4"])
    h = h / jnp.maximum(jnp.sqrt(jnp.sum(h * h, axis=1, keepdims=True)), NORM_EPS)
    return jnp.dot(h, params["wm"], precision=hp) + params["bm"]


def init_params(key, hidden_dim=HIDDEN_DIM, K=K_CHEB):
    ks = jax.random.split(key, 16)

    def glorot(k, shape):
        fan_in, fan_out = shape[-2], shape[-1]
        s = float(np.sqrt(6.0 / (fan_in + fan_out)))
        return jax.random.uniform(k, shape, jnp.float32, -s, s)

    p = {}
    conv_dims = [(3, hidden_dim)] + [(hidden_dim, hidden_dim)] * 3
    for i, (cin, cout) in enumerate(conv_dims, start=1):
        p[f"w{i}"] = glorot(ks[i - 1], (K, cin, cout))                      # ChebConv weights
        p[f"b{i}"] = 0.1 * jax.random.normal(ks[3 + i], (1, cout), jnp.float32)
    for i in range(1, 4):                                                   # BatchNorm1d affine
        p[f"g{i}"] = 1.0 + 0.1 * jax.random.normal(ks[7 + i], (1, hidden_dim), jnp.float32)
        p[f"be{i}"] = 0.1 * jax.random.normal(ks[10 + i], (1, hidden_dim), jnp.float32)
    bound = 1.0 / float(np.sqrt(hidden_dim))
    p["wm"] = jax.random.uniform(ks[14], (hidden_dim, 3), jnp.float32, -bound, bound)
    p["bm"] = jax.random.uniform(ks[15], (1, 3), jnp.float32, -bound, bound)
    return p


if __name__ == "__main__":
    key = jax.random.PRNGKey(0)
    k_x, k_p = jax.random.split(key)

    N = 64                                              # graph nodes (e.g. atoms)
    x = jax.random.normal(k_x, (N, 3), jnp.float32)     # 3D coordinates per node

    # symmetric ring graph + chord edges (no isolated nodes)
    idx = np.arange(N)
    src = np.concatenate([idx, (idx + 1) % N, idx, (idx + 5) % N])
    dst = np.concatenate([(idx + 1) % N, idx, (idx + 5) % N, idx])
    edge_index = jnp.asarray(np.stack([src, dst]), jnp.int32)   # [2, 256]

    params = init_params(k_p)

    out = jax.block_until_ready(hno_forward(x, edge_index, params))
    assert out.shape == (N, OUT_DIM)

    # Tight check: same math (bf16 MXU operands) in pure JAX — validates lowering.
    ref_m = jax.block_until_ready(hno_ref_matching(x, edge_index, params))
    assert np.allclose(np.asarray(out), np.asarray(ref_m), rtol=1e-3, atol=1e-3)

    # Loose check: full-f32 PyTorch-semantics reference — bf16 MXU inputs bound
    # the deviation; this catches structural/semantic errors.
    ref_f = jax.block_until_ready(hno_ref_f32(x, edge_index, params))
    assert np.allclose(np.asarray(out), np.asarray(ref_f), rtol=1e-1, atol=1e-1)

    print("KERNEL_OK")
</pallas_src>

<mosaic_0001>
module attributes {stable_mosaic.version = 11 : i64} {
  func.func @hno_kernel_fused(%arg0: memref<64x32xf32, #tpu.memory_space<vmem>>, %arg1: memref<64x64xbf16, #tpu.memory_space<vmem>>, %arg2: memref<64x64xbf16, #tpu.memory_space<vmem>>, %arg3: memref<4x96x32xbf16, #tpu.memory_space<vmem>>, %arg4: memref<48x128xf32, #tpu.memory_space<vmem>>, %arg5: memref<64x3xf32, #tpu.memory_space<vmem>>) attributes {dimension_semantics = [], scalar_prefetch = 0 : i64, scratch_operands = 0 : i64, tpu.core_type = #tpu.core_type<tc>} {
    %c0 = arith.constant 0 : index
    %c0_0 = arith.constant 0 : index
    %0 = vector.load %arg1[%c0, %c0_0] : memref<64x64xbf16, #tpu.memory_space<vmem>>, vector<64x64xbf16>
    %c0_1 = arith.constant 0 : index
    %c0_2 = arith.constant 0 : index
    %1 = vector.load %arg2[%c0_1, %c0_2] : memref<64x64xbf16, #tpu.memory_space<vmem>>, vector<64x64xbf16>
    %c0_3 = arith.constant 0 : index
    %c0_4 = arith.constant 0 : index
    %2 = vector.load %arg0[%c0_3, %c0_4] : memref<64x32xf32, #tpu.memory_space<vmem>>, vector<64x32xf32>
    %c0_5 = arith.constant 0 : index
    %c0_6 = arith.constant 0 : index
    %c0_7 = arith.constant 0 : index
    %3 = vector.load %arg3[%c0_5, %c0_6, %c0_7] : memref<4x96x32xbf16, #tpu.memory_space<vmem>>, vector<1x96x32xbf16>
    %4 = vector.shape_cast %3 : vector<1x96x32xbf16> to vector<96x32xbf16>
    %c0_8 = arith.constant 0 : index
    %c0_9 = arith.constant 0 : index
    %5 = vector.load %arg4[%c0_8, %c0_9] : memref<48x128xf32, #tpu.memory_space<vmem>>, vector<1x32xf32>
    %6 = arith.truncf %2 : vector<64x32xf32> to vector<64x32xbf16>
    %cst = arith.constant dense<0.000000e+00> : vector<64x32xf32>
    %7 = tpu.matmul %0, %6, %cst {dimension_numbers = #tpu.dot_dimension_numbers<[1], [0], [0], [1], [0, 0, 1, 1], [], []>} : vector<64x64xbf16>, vector<64x32xbf16>, vector<64x32xf32> -> vector<64x32xf32>
    %cst_10 = arith.constant dense<0.000000e+00> : vector<64x32xf32>
    %8 = tpu.matmul %1, %6, %cst_10 {dimension_numbers = #tpu.dot_dimension_numbers<[1], [0], [0], [1], [0, 0, 1, 1], [], []>} : vector<64x64xbf16>, vector<64x32xbf16>, vector<64x32xf32> -> vector<64x32xf32>
    %9 = tpu.concatenate %2, %7, %8 in 1 : vector<64x32xf32>, vector<64x32xf32>, vector<64x32xf32> -> vector<64x96xf32>
    %10 = arith.truncf %9 : vector<64x96xf32> to vector<64x96xbf16>
    %cst_11 = arith.constant dense<0.000000e+00> : vector<64x32xf32>
    %11 = tpu.matmul %10, %4, %cst_11 {dimension_numbers = #tpu.dot_dimension_numbers<[1], [0], [0], [1], [0, 0, 1, 1], [], []>} : vector<64x96xbf16>, vector<96x32xbf16>, vector<64x32xf32> -> vector<64x32xf32>
    %12 = vector.broadcast %5 : vector<1x32xf32> to vector<64x32xf32>
    %13 = arith.addf %11, %12 : vector<64x32xf32>
    %cst_12 = arith.constant 0.000000e+00 : f32
    %14 = vector.broadcast %cst_12 : f32 to vector<64x32xf32>
    %15 = arith.cmpf oge, %13, %14 : vector<64x32xf32>
    %cst_13 = arith.constant 0.00999999977 : f32
    %16 = vector.broadcast %cst_13 : f32 to vector<64x32xf32>
    %17 = arith.mulf %16, %13 : vector<64x32xf32>
    %18 = arith.select %15, %13, %17 : vector<64x32xi1>, vector<64x32xf32>
    %c4 = arith.constant 4 : index
    %c0_14 = arith.constant 0 : index
    %19 = vector.load %arg4[%c4, %c0_14] : memref<48x128xf32, #tpu.memory_space<vmem>>, vector<1x32xf32>
    %c7 = arith.constant 7 : index
    %c0_15 = arith.constant 0 : index
    %20 = vector.load %arg4[%c7, %c0_15] : memref<48x128xf32, #tpu.memory_space<vmem>>, vector<1x32xf32>
    %cst_16 = arith.constant dense<0.000000e+00> : vector<32xf32>
    %21 = vector.multi_reduction <add>, %18, %cst_16 [0] : vector<64x32xf32> to vector<32xf32>
    %22 = vector.shape_cast %21 : vector<32xf32> to vector<1x32xf32>
    %cst_17 = arith.constant 6.400000e+01 : f32
    %23 = vector.broadcast %cst_17 : f32 to vector<1x32xf32>
    %24 = arith.divf %22, %23 : vector<1x32xf32>
    %25 = vector.broadcast %24 : vector<1x32xf32> to vector<64x32xf32>
    %26 = arith.subf %18, %25 : vector<64x32xf32>
    %27 = arith.mulf %26, %26 : vector<64x32xf32>
    %cst_18 = arith.constant dense<0.000000e+00> : vector<32xf32>
    %28 = vector.multi_reduction <add>, %27, %cst_18 [0] : vector<64x32xf32> to vector<32xf32>
    %29 = vector.shape_cast %28 : vector<32xf32> to vector<1x32xf32>
    %cst_19 = arith.constant 6.400000e+01 : f32
    %30 = vector.broadcast %cst_19 : f32 to vector<1x32xf32>
    %31 = arith.divf %29, %30 : vector<1x32xf32>
    %32 = vector.broadcast %24 : vector<1x32xf32> to vector<64x32xf32>
    %33 = arith.subf %18, %32 : vector<64x32xf32>
    %cst_20 = arith.constant 9.99999974E-6 : f32
    %34 = vector.broadcast %cst_20 : f32 to vector<1x32xf32>
    %35 = arith.addf %31, %34 : vector<1x32xf32>
    %36 = math.rsqrt %35 : vector<1x32xf32>
    %37 = vector.broadcast %36 : vector<1x32xf32> to vector<64x32xf32>
    %38 = arith.mulf %33, %37 : vector<64x32xf32>
    %39 = vector.broadcast %19 : vector<1x32xf32> to vector<64x32xf32>
    %40 = arith.mulf %38, %39 : vector<64x32xf32>
    %41 = vector.broadcast %20 : vector<1x32xf32> to vector<64x32xf32>
    %42 = arith.addf %40, %41 : vector<64x32xf32>
    %c1 = arith.constant 1 : index
    %c0_21 = arith.constant 0 : index
    %c0_22 = arith.constant 0 : index
    %43 = vector.load %arg3[%c1, %c0_21, %c0_22] : memref<4x96x32xbf16, #tpu.memory_space<vmem>>, vector<1x96x32xbf16>
    %44 = vector.shape_cast %43 : vector<1x96x32xbf16> to vector<96x32xbf16>
    %c1_23 = arith.constant 1 : index
    %c0_24 = arith.constant 0 : index
    %45 = vector.load %arg4[%c1_23, %c0_24] : memref<48x128xf32, #tpu.memory_space<vmem>>, vector<1x32xf32>
    %46 = arith.truncf %42 : vector<64x32xf32> to vector<64x32xbf16>
    %cst_25 = arith.constant dense<0.000000e+00> : vector<64x32xf32>
    %47 = tpu.matmul %0, %46, %cst_25 {dimension_numbers = #tpu.dot_dimension_numbers<[1], [0], [0], [1], [0, 0, 1, 1], [], []>} : vector<64x64xbf16>, vector<64x32xbf16>, vector<64x32xf32> -> vector<64x32xf32>
    %cst_26 = arith.constant dense<0.000000e+00> : vector<64x32xf32>
    %48 = tpu.matmul %1, %46, %cst_26 {dimension_numbers = #tpu.dot_dimension_numbers<[1], [0], [0], [1], [0, 0, 1, 1], [], []>} : vector<64x64xbf16>, vector<64x32xbf16>, vector<64x32xf32> -> vector<64x32xf32>
    %49 = tpu.concatenate %42, %47, %48 in 1 : vector<64x32xf32>, vector<64x32xf32>, vector<64x32xf32> -> vector<64x96xf32>
    %50 = arith.truncf %49 : vector<64x96xf32> to vector<64x96xbf16>
    %cst_27 = arith.constant dense<0.000000e+00> : vector<64x32xf32>
    %51 = tpu.matmul %50, %44, %cst_27 {dimension_numbers = #tpu.dot_dimension_numbers<[1], [0], [0], [1], [0, 0, 1, 1], [], []>} : vector<64x96xbf16>, vector<96x32xbf16>, vector<64x32xf32> -> vector<64x32xf32>
    %52 = vector.broadcast %45 : vector<1x32xf32> to vector<64x32xf32>
    %53 = arith.addf %51, %52 : vector<64x32xf32>
    %cst_28 = arith.constant 0.000000e+00 : f32
    %54 = vector.broadcast %cst_28 : f32 to vector<64x32xf32>
    %55 = arith.cmpf oge, %53, %54 : vector<64x32xf32>
    %cst_29 = arith.constant 0.00999999977 : f32
    %56 = vector.broadcast %cst_29 : f32 to vector<64x32xf32>
    %57 = arith.mulf %56, %53 : vector<64x32xf32>
    %58 = arith.select %55, %53, %57 : vector<64x32xi1>, vector<64x32xf32>
    %c5 = arith.constant 5 : index
    %c0_30 = arith.constant 0 : index
    %59 = vector.load %arg4[%c5, %c0_30] : memref<48x128xf32, #tpu.memory_space<vmem>>, vector<1x32xf32>
    %c8 = arith.constant 8 : index
    %c0_31 = arith.constant 0 : index
    %60 = vector.load %arg4[%c8, %c0_31] : memref<48x128xf32, #tpu.memory_space<vmem>>, vector<1x32xf32>
    %cst_32 = arith.constant dense<0.000000e+00> : vector<32xf32>
    %61 = vector.multi_reduction <add>, %58, %cst_32 [0] : vector<64x32xf32> to vector<32xf32>
    %62 = vector.shape_cast %61 : vector<32xf32> to vector<1x32xf32>
    %cst_33 = arith.constant 6.400000e+01 : f32
    %63 = vector.broadcast %cst_33 : f32 to vector<1x32xf32>
    %64 = arith.divf %62, %63 : vector<1x32xf32>
    %65 = vector.broadcast %64 : vector<1x32xf32> to vector<64x32xf32>
    %66 = arith.subf %58, %65 : vector<64x32xf32>
    %67 = arith.mulf %66, %66 : vector<64x32xf32>
    %cst_34 = arith.constant dense<0.000000e+00> : vector<32xf32>
    %68 = vector.multi_reduction <add>, %67, %cst_34 [0] : vector<64x32xf32> to vector<32xf32>
    %69 = vector.shape_cast %68 : vector<32xf32> to vector<1x32xf32>
    %cst_35 = arith.constant 6.400000e+01 : f32
    %70 = vector.broadcast %cst_35 : f32 to vector<1x32xf32>
    %71 = arith.divf %69, %70 : vector<1x32xf32>
    %72 = vector.broadcast %64 : vector<1x32xf32> to vector<64x32xf32>
    %73 = arith.subf %58, %72 : vector<64x32xf32>
    %cst_36 = arith.constant 9.99999974E-6 : f32
    %74 = vector.broadcast %cst_36 : f32 to vector<1x32xf32>
    %75 = arith.addf %71, %74 : vector<1x32xf32>
    %76 = math.rsqrt %75 : vector<1x32xf32>
    %77 = vector.broadcast %76 : vector<1x32xf32> to vector<64x32xf32>
    %78 = arith.mulf %73, %77 : vector<64x32xf32>
    %79 = vector.broadcast %59 : vector<1x32xf32> to vector<64x32xf32>
    %80 = arith.mulf %78, %79 : vector<64x32xf32>
    %81 = vector.broadcast %60 : vector<1x32xf32> to vector<64x32xf32>
    %82 = arith.addf %80, %81 : vector<64x32xf32>
    %c2 = arith.constant 2 : index
    %c0_37 = arith.constant 0 : index
    %c0_38 = arith.constant 0 : index
    %83 = vector.load %arg3[%c2, %c0_37, %c0_38] : memref<4x96x32xbf16, #tpu.memory_space<vmem>>, vector<1x96x32xbf16>
    %84 = vector.shape_cast %83 : vector<1x96x32xbf16> to vector<96x32xbf16>
    %c2_39 = arith.constant 2 : index
    %c0_40 = arith.constant 0 : index
    %85 = vector.load %arg4[%c2_39, %c0_40] : memref<48x128xf32, #tpu.memory_space<vmem>>, vector<1x32xf32>
    %86 = arith.truncf %82 : vector<64x32xf32> to vector<64x32xbf16>
    %cst_41 = arith.constant dense<0.000000e+00> : vector<64x32xf32>
    %87 = tpu.matmul %0, %86, %cst_41 {dimension_numbers = #tpu.dot_dimension_numbers<[1], [0], [0], [1], [0, 0, 1, 1], [], []>} : vector<64x64xbf16>, vector<64x32xbf16>, vector<64x32xf32> -> vector<64x32xf32>
    %cst_42 = arith.constant dense<0.000000e+00> : vector<64x32xf32>
    %88 = tpu.matmul %1, %86, %cst_42 {dimension_numbers = #tpu.dot_dimension_numbers<[1], [0], [0], [1], [0, 0, 1, 1], [], []>} : vector<64x64xbf16>, vector<64x32xbf16>, vector<64x32xf32> -> vector<64x32xf32>
    %89 = tpu.concatenate %82, %87, %88 in 1 : vector<64x32xf32>, vector<64x32xf32>, vector<64x32xf32> -> vector<64x96xf32>
    %90 = arith.truncf %89 : vector<64x96xf32> to vector<64x96xbf16>
    %cst_43 = arith.constant dense<0.000000e+00> : vector<64x32xf32>
    %91 = tpu.matmul %90, %84, %cst_43 {dimension_numbers = #tpu.dot_dimension_numbers<[1], [0], [0], [1], [0, 0, 1, 1], [], []>} : vector<64x96xbf16>, vector<96x32xbf16>, vector<64x32xf32> -> vector<64x32xf32>
    %92 = vector.broadcast %85 : vector<1x32xf32> to vector<64x32xf32>
    %93 = arith.addf %91, %92 : vector<64x32xf32>
    %cst_44 = arith.constant 0.000000e+00 : f32
    %94 = vector.broadcast %cst_44 : f32 to vector<64x32xf32>
    %95 = arith.maximumf %93, %94 : vector<64x32xf32>
    %c6 = arith.constant 6 : index
    %c0_45 = arith.constant 0 : index
    %96 = vector.load %arg4[%c6, %c0_45] : memref<48x128xf32, #tpu.memory_space<vmem>>, vector<1x32xf32>
    %c9 = arith.constant 9 : index
    %c0_46 = arith.constant 0 : index
    %97 = vector.load %arg4[%c9, %c0_46] : memref<48x128xf32, #tpu.memory_space<vmem>>, vector<1x32xf32>
    %cst_47 = arith.constant dense<0.000000e+00> : vector<32xf32>
    %98 = vector.multi_reduction <add>, %95, %cst_47 [0] : vector<64x32xf32> to vector<32xf32>
    %99 = vector.shape_cast %98 : vector<32xf32> to vector<1x32xf32>
    %cst_48 = arith.constant 6.400000e+01 : f32
    %100 = vector.broadcast %cst_48 : f32 to vector<1x32xf32>
    %101 = arith.divf %99, %100 : vector<1x32xf32>
    %102 = vector.broadcast %101 : vector<1x32xf32> to vector<64x32xf32>
    %103 = arith.subf %95, %102 : vector<64x32xf32>
    %104 = arith.mulf %103, %103 : vector<64x32xf32>
    %cst_49 = arith.constant dense<0.000000e+00> : vector<32xf32>
    %105 = vector.multi_reduction <add>, %104, %cst_49 [0] : vector<64x32xf32> to vector<32xf32>
    %106 = vector.shape_cast %105 : vector<32xf32> to vector<1x32xf32>
    %cst_50 = arith.constant 6.400000e+01 : f32
    %107 = vector.broadcast %cst_50 : f32 to vector<1x32xf32>
    %108 = arith.divf %106, %107 : vector<1x32xf32>
    %109 = vector.broadcast %101 : vector<1x32xf32> to vector<64x32xf32>
    %110 = arith.subf %95, %109 : vector<64x32xf32>
    %cst_51 = arith.constant 9.99999974E-6 : f32
    %111 = vector.broadcast %cst_51 : f32 to vector<1x32xf32>
    %112 = arith.addf %108, %111 : vector<1x32xf32>
    %113 = math.rsqrt %112 : vector<1x32xf32>
    %114 = vector.broadcast %113 : vector<1x32xf32> to vector<64x32xf32>
    %115 = arith.mulf %110, %114 : vector<64x32xf32>
    %116 = vector.broadcast %96 : vector<1x32xf32> to vector<64x32xf32>
    %117 = arith.mulf %115, %116 : vector<64x32xf32>
    %118 = vector.broadcast %97 : vector<1x32xf32> to vector<64x32xf32>
    %119 = arith.addf %117, %118 : vector<64x32xf32>
    %c3 = arith.constant 3 : index
    %c0_52 = arith.constant 0 : index
    %c0_53 = arith.constant 0 : index
    %120 = vector.load %arg3[%c3, %c0_52, %c0_53] : memref<4x96x32xbf16, #tpu.memory_space<vmem>>, vector<1x96x32xbf16>
    %121 = vector.shape_cast %120 : vector<1x96x32xbf16> to vector<96x32xbf16>
    %c3_54 = arith.constant 3 : index
    %c0_55 = arith.constant 0 : index
    %122 = vector.load %arg4[%c3_54, %c0_55] : memref<48x128xf32, #tpu.memory_space<vmem>>, vector<1x32xf32>
    %123 = arith.truncf %119 : vector<64x32xf32> to vector<64x32xbf16>
    %cst_56 = arith.constant dense<0.000000e+00> : vector<64x32xf32>
    %124 = tpu.matmul %0, %123, %cst_56 {dimension_numbers = #tpu.dot_dimension_numbers<[1], [0], [0], [1], [0, 0, 1, 1], [], []>} : vector<64x64xbf16>, vector<64x32xbf16>, vector<64x32xf32> -> vector<64x32xf32>
    %cst_57 = arith.constant dense<0.000000e+00> : vector<64x32xf32>
    %125 = tpu.matmul %1, %123, %cst_57 {dimension_numbers = #tpu.dot_dimension_numbers<[1], [0], [0], [1], [0, 0, 1, 1], [], []>} : vector<64x64xbf16>, vector<64x32xbf16>, vector<64x32xf32> -> vector<64x32xf32>
    %126 = tpu.concatenate %119, %124, %125 in 1 : vector<64x32xf32>, vector<64x32xf32>, vector<64x32xf32> -> vector<64x96xf32>
    %127 = arith.truncf %126 : vector<64x96xf32> to vector<64x96xbf16>
    %cst_58 = arith.constant dense<0.000000e+00> : vector<64x32xf32>
    %128 = tpu.matmul %127, %121, %cst_58 {dimension_numbers = #tpu.dot_dimension_numbers<[1], [0], [0], [1], [0, 0, 1, 1], [], []>} : vector<64x96xbf16>, vector<96x32xbf16>, vector<64x32xf32> -> vector<64x32xf32>
    %129 = vector.broadcast %122 : vector<1x32xf32> to vector<64x32xf32>
    %130 = arith.addf %128, %129 : vector<64x32xf32>
    %131 = arith.mulf %130, %130 : vector<64x32xf32>
    %cst_59 = arith.constant dense<0.000000e+00> : vector<64xf32>
    %132 = vector.multi_reduction <add>, %131, %cst_59 [1] : vector<64x32xf32> to vector<64xf32>
    %133 = vector.shape_cast %132 : vector<64xf32> to vector<64x1xf32>
    %cst_60 = arith.constant 1.000000e-24 : f32
    %134 = vector.broadcast %cst_60 : f32 to vector<64x1xf32>
    %135 = arith.maximumf %133, %134 : vector<64x1xf32>
    %136 = math.rsqrt %135 : vector<64x1xf32>
    %137 = vector.broadcast %136 : vector<64x1xf32> to vector<64x32xf32>
    %138 = arith.mulf %130, %137 : vector<64x32xf32>
    %c16 = arith.constant 16 : index
    %c0_61 = arith.constant 0 : index
    %139 = vector.load %arg4[%c16, %c0_61] : memref<48x128xf32, #tpu.memory_space<vmem>>, vector<32x3xf32>
    %140 = arith.truncf %139 : vector<32x3xf32> to vector<32x3xbf16>
    %141 = arith.truncf %138 : vector<64x32xf32> to vector<64x32xbf16>
    %cst_62 = arith.constant dense<0.000000e+00> : vector<64x3xf32>
    %142 = tpu.matmul %141, %140, %cst_62 {dimension_numbers = #tpu.dot_dimension_numbers<[1], [0], [0], [1], [0, 0, 1, 1], [], []>} : vector<64x32xbf16>, vector<32x3xbf16>, vector<64x3xf32> -> vector<64x3xf32>
    %c10 = arith.constant 10 : index
    %c0_63 = arith.constant 0 : index
    %143 = vector.load %arg4[%c10, %c0_63] : memref<48x128xf32, #tpu.memory_space<vmem>>, vector<1x3xf32>
    %144 = vector.broadcast %143 : vector<1x3xf32> to vector<64x3xf32>
    %145 = arith.addf %142, %144 : vector<64x3xf32>
    %c0_64 = arith.constant 0 : index
    %c0_65 = arith.constant 0 : index
    %146 = vector.load %arg5[%c0_64, %c0_65] : memref<64x3xf32, #tpu.memory_space<vmem>>, vector<64x3xf32>
    tpu.vector_store %arg5[%c0_64, %c0_65], %145 {strides = array<i32>} : memref<64x3xf32, #tpu.memory_space<vmem>>, vector<64x3xf32>,
    return
  }
}

module attributes {stable_mosaic.version = 11 : i64} {
  func.func @hno_kernel_unfused(%arg0: memref<64x32xf32, #tpu.memory_space<vmem>>, %arg1: memref<64x64xbf16, #tpu.memory_space<vmem>>, %arg2: memref<64x64xbf16, #tpu.memory_space<vmem>>, %arg3: memref<4x96x32xbf16, #tpu.memory_space<vmem>>, %arg4: memref<48x128xf32, #tpu.memory_space<vmem>>, %arg5: memref<64x3xf32, #tpu.memory_space<vmem>>) attributes {dimension_semantics = [], scalar_prefetch = 0 : i64, scratch_operands = 0 : i64, tpu.core_type = #tpu.core_type<tc>} {
    %c0 = arith.constant 0 : index
    %c0_0 = arith.constant 0 : index
    %0 = vector.load %arg1[%c0, %c0_0] : memref<64x64xbf16, #tpu.memory_space<vmem>>, vector<64x64xbf16>
    %c0_1 = arith.constant 0 : index
    %c0_2 = arith.constant 0 : index
    %1 = vector.load %arg2[%c0_1, %c0_2] : memref<64x64xbf16, #tpu.memory_space<vmem>>, vector<64x64xbf16>
    %c0_3 = arith.constant 0 : index
    %c0_4 = arith.constant 0 : index
    %2 = vector.load %arg0[%c0_3, %c0_4] : memref<64x32xf32, #tpu.memory_space<vmem>>, vector<64x32xf32>
    %c0_5 = arith.constant 0 : index
    %c0_6 = arith.constant 0 : index
    %c0_7 = arith.constant 0 : index
    %3 = vector.load %arg3[%c0_5, %c0_6, %c0_7] : memref<4x96x32xbf16, #tpu.memory_space<vmem>>, vector<1x96x32xbf16>
    %4 = vector.shape_cast %3 : vector<1x96x32xbf16> to vector<96x32xbf16>
    %c0_8 = arith.constant 0 : index
    %c0_9 = arith.constant 0 : index
    %5 = vector.load %arg4[%c0_8, %c0_9] : memref<48x128xf32, #tpu.memory_space<vmem>>, vector<1x32xf32>
    %6 = arith.truncf %2 : vector<64x32xf32> to vector<64x32xbf16>
    %cst = arith.constant dense<0.000000e+00> : vector<64x32xf32>
    %7 = tpu.matmul %0, %6, %cst {dimension_numbers = #tpu.dot_dimension_numbers<[1], [0], [0], [1], [0, 0, 1, 1], [], []>} : vector<64x64xbf16>, vector<64x32xbf16>, vector<64x32xf32> -> vector<64x32xf32>
    %cst_10 = arith.constant dense<0.000000e+00> : vector<64x32xf32>
    %8 = tpu.matmul %1, %6, %cst_10 {dimension_numbers = #tpu.dot_dimension_numbers<[1], [0], [0], [1], [0, 0, 1, 1], [], []>} : vector<64x64xbf16>, vector<64x32xbf16>, vector<64x32xf32> -> vector<64x32xf32>
    %9 = vector.extract_strided_slice %4 {offsets = [0, 0], sizes = [32, 32], strides = [1, 1]} : vector<96x32xbf16> to vector<32x32xbf16>
    %cst_11 = arith.constant dense<0.000000e+00> : vector<64x32xf32>
    %10 = tpu.matmul %6, %9, %cst_11 {dimension_numbers = #tpu.dot_dimension_numbers<[1], [0], [0], [1], [0, 0, 1, 1], [], []>} : vector<64x32xbf16>, vector<32x32xbf16>, vector<64x32xf32> -> vector<64x32xf32>
    %11 = arith.truncf %7 : vector<64x32xf32> to vector<64x32xbf16>
    %12 = vector.extract_strided_slice %4 {offsets = [32, 0], sizes = [32, 32], strides = [1, 1]} : vector<96x32xbf16> to vector<32x32xbf16>
    %cst_12 = arith.constant dense<0.000000e+00> : vector<64x32xf32>
    %13 = tpu.matmul %11, %12, %cst_12 {dimension_numbers = #tpu.dot_dimension_numbers<[1], [0], [0], [1], [0, 0, 1, 1], [], []>} : vector<64x32xbf16>, vector<32x32xbf16>, vector<64x32xf32> -> vector<64x32xf32>
    %14 = arith.addf %10, %13 : vector<64x32xf32>
    %15 = arith.truncf %8 : vector<64x32xf32> to vector<64x32xbf16>
    %16 = vector.extract_strided_slice %4 {offsets = [64, 0], sizes = [32, 32], strides = [1, 1]} : vector<96x32xbf16> to vector<32x32xbf16>
    %cst_13 = arith.constant dense<0.000000e+00> : vector<64x32xf32>
    %17 = tpu.matmul %15, %16, %cst_13 {dimension_numbers = #tpu.dot_dimension_numbers<[1], [0], [0], [1], [0, 0, 1, 1], [], []>} : vector<64x32xbf16>, vector<32x32xbf16>, vector<64x32xf32> -> vector<64x32xf32>
    %18 = arith.addf %14, %17 : vector<64x32xf32>
    %19 = vector.broadcast %5 : vector<1x32xf32> to vector<64x32xf32>
    %20 = arith.addf %18, %19 : vector<64x32xf32>
    %cst_14 = arith.constant 0.000000e+00 : f32
    %21 = vector.broadcast %cst_14 : f32 to vector<64x32xf32>
    %22 = arith.cmpf oge, %20, %21 : vector<64x32xf32>
    %cst_15 = arith.constant 0.00999999977 : f32
    %23 = vector.broadcast %cst_15 : f32 to vector<64x32xf32>
    %24 = arith.mulf %23, %20 : vector<64x32xf32>
    %25 = arith.select %22, %20, %24 : vector<64x32xi1>, vector<64x32xf32>
    %c4 = arith.constant 4 : index
    %c0_16 = arith.constant 0 : index
    %26 = vector.load %arg4[%c4, %c0_16] : memref<48x128xf32, #tpu.memory_space<vmem>>, vector<1x32xf32>
    %c7 = arith.constant 7 : index
    %c0_17 = arith.constant 0 : index
    %27 = vector.load %arg4[%c7, %c0_17] : memref<48x128xf32, #tpu.memory_space<vmem>>, vector<1x32xf32>
    %cst_18 = arith.constant dense<0.000000e+00> : vector<32xf32>
    %28 = vector.multi_reduction <add>, %25, %cst_18 [0] : vector<64x32xf32> to vector<32xf32>
    %29 = vector.shape_cast %28 : vector<32xf32> to vector<1x32xf32>
    %cst_19 = arith.constant 6.400000e+01 : f32
    %30 = vector.broadcast %cst_19 : f32 to vector<1x32xf32>
    %31 = arith.divf %29, %30 : vector<1x32xf32>
    %32 = vector.broadcast %31 : vector<1x32xf32> to vector<64x32xf32>
    %33 = arith.subf %25, %32 : vector<64x32xf32>
    %34 = arith.mulf %33, %33 : vector<64x32xf32>
    %cst_20 = arith.constant dense<0.000000e+00> : vector<32xf32>
    %35 = vector.multi_reduction <add>, %34, %cst_20 [0] : vector<64x32xf32> to vector<32xf32>
    %36 = vector.shape_cast %35 : vector<32xf32> to vector<1x32xf32>
    %cst_21 = arith.constant 6.400000e+01 : f32
    %37 = vector.broadcast %cst_21 : f32 to vector<1x32xf32>
    %38 = arith.divf %36, %37 : vector<1x32xf32>
    %39 = vector.broadcast %31 : vector<1x32xf32> to vector<64x32xf32>
    %40 = arith.subf %25, %39 : vector<64x32xf32>
    %cst_22 = arith.constant 9.99999974E-6 : f32
    %41 = vector.broadcast %cst_22 : f32 to vector<1x32xf32>
    %42 = arith.addf %38, %41 : vector<1x32xf32>
    %43 = math.rsqrt %42 : vector<1x32xf32>
    %44 = vector.broadcast %43 : vector<1x32xf32> to vector<64x32xf32>
    %45 = arith.mulf %40, %44 : vector<64x32xf32>
    %46 = vector.broadcast %26 : vector<1x32xf32> to vector<64x32xf32>
    %47 = arith.mulf %45, %46 : vector<64x32xf32>
    %48 = vector.broadcast %27 : vector<1x32xf32> to vector<64x32xf32>
    %49 = arith.addf %47, %48 : vector<64x32xf32>
    %c1 = arith.constant 1 : index
    %c0_23 = arith.constant 0 : index
    %c0_24 = arith.constant 0 : index
    %50 = vector.load %arg3[%c1, %c0_23, %c0_24] : memref<4x96x32xbf16, #tpu.memory_space<vmem>>, vector<1x96x32xbf16>
    %51 = vector.shape_cast %50 : vector<1x96x32xbf16> to vector<96x32xbf16>
    %c1_25 = arith.constant 1 : index
    %c0_26 = arith.constant 0 : index
    %52 = vector.load %arg4[%c1_25, %c0_26] : memref<48x128xf32, #tpu.memory_space<vmem>>, vector<1x32xf32>
    %53 = arith.truncf %49 : vector<64x32xf32> to vector<64x32xbf16>
    %cst_27 = arith.constant dense<0.000000e+00> : vector<64x32xf32>
    %54 = tpu.matmul %0, %53, %cst_27 {dimension_numbers = #tpu.dot_dimension_numbers<[1], [0], [0], [1], [0, 0, 1, 1], [], []>} : vector<64x64xbf16>, vector<64x32xbf16>, vector<64x32xf32> -> vector<64x32xf32>
    %cst_28 = arith.constant dense<0.000000e+00> : vector<64x32xf32>
    %55 = tpu.matmul %1, %53, %cst_28 {dimension_numbers = #tpu.dot_dimension_numbers<[1], [0], [0], [1], [0, 0, 1, 1], [], []>} : vector<64x64xbf16>, vector<64x32xbf16>, vector<64x32xf32> -> vector<64x32xf32>
    %56 = vector.extract_strided_slice %51 {offsets = [0, 0], sizes = [32, 32], strides = [1, 1]} : vector<96x32xbf16> to vector<32x32xbf16>
    %cst_29 = arith.constant dense<0.000000e+00> : vector<64x32xf32>
    %57 = tpu.matmul %53, %56, %cst_29 {dimension_numbers = #tpu.dot_dimension_numbers<[1], [0], [0], [1], [0, 0, 1, 1], [], []>} : vector<64x32xbf16>, vector<32x32xbf16>, vector<64x32xf32> -> vector<64x32xf32>
    %58 = arith.truncf %54 : vector<64x32xf32> to vector<64x32xbf16>
    %59 = vector.extract_strided_slice %51 {offsets = [32, 0], sizes = [32, 32], strides = [1, 1]} : vector<96x32xbf16> to vector<32x32xbf16>
    %cst_30 = arith.constant dense<0.000000e+00> : vector<64x32xf32>
    %60 = tpu.matmul %58, %59, %cst_30 {dimension_numbers = #tpu.dot_dimension_numbers<[1], [0], [0], [1], [0, 0, 1, 1], [], []>} : vector<64x32xbf16>, vector<32x32xbf16>, vector<64x32xf32> -> vector<64x32xf32>
    %61 = arith.addf %57, %60 : vector<64x32xf32>
    %62 = arith.truncf %55 : vector<64x32xf32> to vector<64x32xbf16>
    %63 = vector.extract_strided_slice %51 {offsets = [64, 0], sizes = [32, 32], strides = [1, 1]} : vector<96x32xbf16> to vector<32x32xbf16>
    %cst_31 = arith.constant dense<0.000000e+00> : vector<64x32xf32>
    %64 = tpu.matmul %62, %63, %cst_31 {dimension_numbers = #tpu.dot_dimension_numbers<[1], [0], [0], [1], [0, 0, 1, 1], [], []>} : vector<64x32xbf16>, vector<32x32xbf16>, vector<64x32xf32> -> vector<64x32xf32>
    %65 = arith.addf %61, %64 : vector<64x32xf32>
    %66 = vector.broadcast %52 : vector<1x32xf32> to vector<64x32xf32>
    %67 = arith.addf %65, %66 : vector<64x32xf32>
    %cst_32 = arith.constant 0.000000e+00 : f32
    %68 = vector.broadcast %cst_32 : f32 to vector<64x32xf32>
    %69 = arith.cmpf oge, %67, %68 : vector<64x32xf32>
    %cst_33 = arith.constant 0.00999999977 : f32
    %70 = vector.broadcast %cst_33 : f32 to vector<64x32xf32>
    %71 = arith.mulf %70, %67 : vector<64x32xf32>
    %72 = arith.select %69, %67, %71 : vector<64x32xi1>, vector<64x32xf32>
    %c5 = arith.constant 5 : index
    %c0_34 = arith.constant 0 : index
    %73 = vector.load %arg4[%c5, %c0_34] : memref<48x128xf32, #tpu.memory_space<vmem>>, vector<1x32xf32>
    %c8 = arith.constant 8 : index
    %c0_35 = arith.constant 0 : index
    %74 = vector.load %arg4[%c8, %c0_35] : memref<48x128xf32, #tpu.memory_space<vmem>>, vector<1x32xf32>
    %cst_36 = arith.constant dense<0.000000e+00> : vector<32xf32>
    %75 = vector.multi_reduction <add>, %72, %cst_36 [0] : vector<64x32xf32> to vector<32xf32>
    %76 = vector.shape_cast %75 : vector<32xf32> to vector<1x32xf32>
    %cst_37 = arith.constant 6.400000e+01 : f32
    %77 = vector.broadcast %cst_37 : f32 to vector<1x32xf32>
    %78 = arith.divf %76, %77 : vector<1x32xf32>
    %79 = vector.broadcast %78 : vector<1x32xf32> to vector<64x32xf32>
    %80 = arith.subf %72, %79 : vector<64x32xf32>
    %81 = arith.mulf %80, %80 : vector<64x32xf32>
    %cst_38 = arith.constant dense<0.000000e+00> : vector<32xf32>
    %82 = vector.multi_reduction <add>, %81, %cst_38 [0] : vector<64x32xf32> to vector<32xf32>
    %83 = vector.shape_cast %82 : vector<32xf32> to vector<1x32xf32>
    %cst_39 = arith.constant 6.400000e+01 : f32
    %84 = vector.broadcast %cst_39 : f32 to vector<1x32xf32>
    %85 = arith.divf %83, %84 : vector<1x32xf32>
    %86 = vector.broadcast %78 : vector<1x32xf32> to vector<64x32xf32>
    %87 = arith.subf %72, %86 : vector<64x32xf32>
    %cst_40 = arith.constant 9.99999974E-6 : f32
    %88 = vector.broadcast %cst_40 : f32 to vector<1x32xf32>
    %89 = arith.addf %85, %88 : vector<1x32xf32>
    %90 = math.rsqrt %89 : vector<1x32xf32>
    %91 = vector.broadcast %90 : vector<1x32xf32> to vector<64x32xf32>
    %92 = arith.mulf %87, %91 : vector<64x32xf32>
    %93 = vector.broadcast %73 : vector<1x32xf32> to vector<64x32xf32>
    %94 = arith.mulf %92, %93 : vector<64x32xf32>
    %95 = vector.broadcast %74 : vector<1x32xf32> to vector<64x32xf32>
    %96 = arith.addf %94, %95 : vector<64x32xf32>
    %c2 = arith.constant 2 : index
    %c0_41 = arith.constant 0 : index
    %c0_42 = arith.constant 0 : index
    %97 = vector.load %arg3[%c2, %c0_41, %c0_42] : memref<4x96x32xbf16, #tpu.memory_space<vmem>>, vector<1x96x32xbf16>
    %98 = vector.shape_cast %97 : vector<1x96x32xbf16> to vector<96x32xbf16>
    %c2_43 = arith.constant 2 : index
    %c0_44 = arith.constant 0 : index
    %99 = vector.load %arg4[%c2_43, %c0_44] : memref<48x128xf32, #tpu.memory_space<vmem>>, vector<1x32xf32>
    %100 = arith.truncf %96 : vector<64x32xf32> to vector<64x32xbf16>
    %cst_45 = arith.constant dense<0.000000e+00> : vector<64x32xf32>
    %101 = tpu.matmul %0, %100, %cst_45 {dimension_numbers = #tpu.dot_dimension_numbers<[1], [0], [0], [1], [0, 0, 1, 1], [], []>} : vector<64x64xbf16>, vector<64x32xbf16>, vector<64x32xf32> -> vector<64x32xf32>
    %cst_46 = arith.constant dense<0.000000e+00> : vector<64x32xf32>
    %102 = tpu.matmul %1, %100, %cst_46 {dimension_numbers = #tpu.dot_dimension_numbers<[1], [0], [0], [1], [0, 0, 1, 1], [], []>} : vector<64x64xbf16>, vector<64x32xbf16>, vector<64x32xf32> -> vector<64x32xf32>
    %103 = vector.extract_strided_slice %98 {offsets = [0, 0], sizes = [32, 32], strides = [1, 1]} : vector<96x32xbf16> to vector<32x32xbf16>
    %cst_47 = arith.constant dense<0.000000e+00> : vector<64x32xf32>
    %104 = tpu.matmul %100, %103, %cst_47 {dimension_numbers = #tpu.dot_dimension_numbers<[1], [0], [0], [1], [0, 0, 1, 1], [], []>} : vector<64x32xbf16>, vector<32x32xbf16>, vector<64x32xf32> -> vector<64x32xf32>
    %105 = arith.truncf %101 : vector<64x32xf32> to vector<64x32xbf16>
    %106 = vector.extract_strided_slice %98 {offsets = [32, 0], sizes = [32, 32], strides = [1, 1]} : vector<96x32xbf16> to vector<32x32xbf16>
    %cst_48 = arith.constant dense<0.000000e+00> : vector<64x32xf32>
    %107 = tpu.matmul %105, %106, %cst_48 {dimension_numbers = #tpu.dot_dimension_numbers<[1], [0], [0], [1], [0, 0, 1, 1], [], []>} : vector<64x32xbf16>, vector<32x32xbf16>, vector<64x32xf32> -> vector<64x32xf32>
    %108 = arith.addf %104, %107 : vector<64x32xf32>
    %109 = arith.truncf %102 : vector<64x32xf32> to vector<64x32xbf16>
    %110 = vector.extract_strided_slice %98 {offsets = [64, 0], sizes = [32, 32], strides = [1, 1]} : vector<96x32xbf16> to vector<32x32xbf16>
    %cst_49 = arith.constant dense<0.000000e+00> : vector<64x32xf32>
    %111 = tpu.matmul %109, %110, %cst_49 {dimension_numbers = #tpu.dot_dimension_numbers<[1], [0], [0], [1], [0, 0, 1, 1], [], []>} : vector<64x32xbf16>, vector<32x32xbf16>, vector<64x32xf32> -> vector<64x32xf32>
    %112 = arith.addf %108, %111 : vector<64x32xf32>
    %113 = vector.broadcast %99 : vector<1x32xf32> to vector<64x32xf32>
    %114 = arith.addf %112, %113 : vector<64x32xf32>
    %cst_50 = arith.constant 0.000000e+00 : f32
    %115 = vector.broadcast %cst_50 : f32 to vector<64x32xf32>
    %116 = arith.maximumf %114, %115 : vector<64x32xf32>
    %c6 = arith.constant 6 : index
    %c0_51 = arith.constant 0 : index
    %117 = vector.load %arg4[%c6, %c0_51] : memref<48x128xf32, #tpu.memory_space<vmem>>, vector<1x32xf32>
    %c9 = arith.constant 9 : index
    %c0_52 = arith.constant 0 : index
    %118 = vector.load %arg4[%c9, %c0_52] : memref<48x128xf32, #tpu.memory_space<vmem>>, vector<1x32xf32>
    %cst_53 = arith.constant dense<0.000000e+00> : vector<32xf32>
    %119 = vector.multi_reduction <add>, %116, %cst_53 [0] : vector<64x32xf32> to vector<32xf32>
    %120 = vector.shape_cast %119 : vector<32xf32> to vector<1x32xf32>
    %cst_54 = arith.constant 6.400000e+01 : f32
    %121 = vector.broadcast %cst_54 : f32 to vector<1x32xf32>
    %122 = arith.divf %120, %121 : vector<1x32xf32>
    %123 = vector.broadcast %122 : vector<1x32xf32> to vector<64x32xf32>
    %124 = arith.subf %116, %123 : vector<64x32xf32>
    %125 = arith.mulf %124, %124 : vector<64x32xf32>
    %cst_55 = arith.constant dense<0.000000e+00> : vector<32xf32>
    %126 = vector.multi_reduction <add>, %125, %cst_55 [0] : vector<64x32xf32> to vector<32xf32>
    %127 = vector.shape_cast %126 : vector<32xf32> to vector<1x32xf32>
    %cst_56 = arith.constant 6.400000e+01 : f32
    %128 = vector.broadcast %cst_56 : f32 to vector<1x32xf32>
    %129 = arith.divf %127, %128 : vector<1x32xf32>
    %130 = vector.broadcast %122 : vector<1x32xf32> to vector<64x32xf32>
    %131 = arith.subf %116, %130 : vector<64x32xf32>
    %cst_57 = arith.constant 9.99999974E-6 : f32
    %132 = vector.broadcast %cst_57 : f32 to vector<1x32xf32>
    %133 = arith.addf %129, %132 : vector<1x32xf32>
    %134 = math.rsqrt %133 : vector<1x32xf32>
    %135 = vector.broadcast %134 : vector<1x32xf32> to vector<64x32xf32>
    %136 = arith.mulf %131, %135 : vector<64x32xf32>
    %137 = vector.broadcast %117 : vector<1x32xf32> to vector<64x32xf32>
    %138 = arith.mulf %136, %137 : vector<64x32xf32>
    %139 = vector.broadcast %118 : vector<1x32xf32> to vector<64x32xf32>
    %140 = arith.addf %138, %139 : vector<64x32xf32>
    %c3 = arith.constant 3 : index
    %c0_58 = arith.constant 0 : index
    %c0_59 = arith.constant 0 : index
    %141 = vector.load %arg3[%c3, %c0_58, %c0_59] : memref<4x96x32xbf16, #tpu.memory_space<vmem>>, vector<1x96x32xbf16>
    %142 = vector.shape_cast %141 : vector<1x96x32xbf16> to vector<96x32xbf16>
    %c3_60 = arith.constant 3 : index
    %c0_61 = arith.constant 0 : index
    %143 = vector.load %arg4[%c3_60, %c0_61] : memref<48x128xf32, #tpu.memory_space<vmem>>, vector<1x32xf32>
    %144 = arith.truncf %140 : vector<64x32xf32> to vector<64x32xbf16>
    %cst_62 = arith.constant dense<0.000000e+00> : vector<64x32xf32>
    %145 = tpu.matmul %0, %144, %cst_62 {dimension_numbers = #tpu.dot_dimension_numbers<[1], [0], [0], [1], [0, 0, 1, 1], [], []>} : vector<64x64xbf16>, vector<64x32xbf16>, vector<64x32xf32> -> vector<64x32xf32>
    %cst_63 = arith.constant dense<0.000000e+00> : vector<64x32xf32>
    %146 = tpu.matmul %1, %144, %cst_63 {dimension_numbers = #tpu.dot_dimension_numbers<[1], [0], [0], [1], [0, 0, 1, 1], [], []>} : vector<64x64xbf16>, vector<64x32xbf16>, vector<64x32xf32> -> vector<64x32xf32>
    %147 = vector.extract_strided_slice %142 {offsets = [0, 0], sizes = [32, 32], strides = [1, 1]} : vector<96x32xbf16> to vector<32x32xbf16>
    %cst_64 = arith.constant dense<0.000000e+00> : vector<64x32xf32>
    %148 = tpu.matmul %144, %147, %cst_64 {dimension_numbers = #tpu.dot_dimension_numbers<[1], [0], [0], [1], [0, 0, 1, 1], [], []>} : vector<64x32xbf16>, vector<32x32xbf16>, vector<64x32xf32> -> vector<64x32xf32>
    %149 = arith.truncf %145 : vector<64x32xf32> to vector<64x32xbf16>
    %150 = vector.extract_strided_slice %142 {offsets = [32, 0], sizes = [32, 32], strides = [1, 1]} : vector<96x32xbf16> to vector<32x32xbf16>
    %cst_65 = arith.constant dense<0.000000e+00> : vector<64x32xf32>
    %151 = tpu.matmul %149, %150, %cst_65 {dimension_numbers = #tpu.dot_dimension_numbers<[1], [0], [0], [1], [0, 0, 1, 1], [], []>} : vector<64x32xbf16>, vector<32x32xbf16>, vector<64x32xf32> -> vector<64x32xf32>
    %152 = arith.addf %148, %151 : vector<64x32xf32>
    %153 = arith.truncf %146 : vector<64x32xf32> to vector<64x32xbf16>
    %154 = vector.extract_strided_slice %142 {offsets = [64, 0], sizes = [32, 32], strides = [1, 1]} : vector<96x32xbf16> to vector<32x32xbf16>
    %cst_66 = arith.constant dense<0.000000e+00> : vector<64x32xf32>
    %155 = tpu.matmul %153, %154, %cst_66 {dimension_numbers = #tpu.dot_dimension_numbers<[1], [0], [0], [1], [0, 0, 1, 1], [], []>} : vector<64x32xbf16>, vector<32x32xbf16>, vector<64x32xf32> -> vector<64x32xf32>
    %156 = arith.addf %152, %155 : vector<64x32xf32>
    %157 = vector.broadcast %143 : vector<1x32xf32> to vector<64x32xf32>
    %158 = arith.addf %156, %157 : vector<64x32xf32>
    %159 = arith.mulf %158, %158 : vector<64x32xf32>
    %cst_67 = arith.constant dense<0.000000e+00> : vector<64xf32>
    %160 = vector.multi_reduction <add>, %159, %cst_67 [1] : vector<64x32xf32> to vector<64xf32>
    %161 = vector.shape_cast %160 : vector<64xf32> to vector<64x1xf32>
    %cst_68 = arith.constant 1.000000e-24 : f32
    %162 = vector.broadcast %cst_68 : f32 to vector<64x1xf32>
    %163 = arith.maximumf %161, %162 : vector<64x1xf32>
    %164 = math.rsqrt %163 : vector<64x1xf32>
    %165 = vector.broadcast %164 : vector<64x1xf32> to vector<64x32xf32>
    %166 = arith.mulf %158, %165 : vector<64x32xf32>
    %c16 = arith.constant 16 : index
    %c0_69 = arith.constant 0 : index
    %167 = vector.load %arg4[%c16, %c0_69] : memref<48x128xf32, #tpu.memory_space<vmem>>, vector<32x3xf32>
    %168 = arith.truncf %167 : vector<32x3xf32> to vector<32x3xbf16>
    %169 = arith.truncf %166 : vector<64x32xf32> to vector<64x32xbf16>
    %cst_70 = arith.constant dense<0.000000e+00> : vector<64x3xf32>
    %170 = tpu.matmul %169, %168, %cst_70 {dimension_numbers = #tpu.dot_dimension_numbers<[1], [0], [0], [1], [0, 0, 1, 1], [], []>} : vector<64x32xbf16>, vector<32x3xbf16>, vector<64x3xf32> -> vector<64x3xf32>
    %c10 = arith.constant 10 : index
    %c0_71 = arith.constant 0 : index
    %171 = vector.load %arg4[%c10, %c0_71] : memref<48x128xf32, #tpu.memory_space<vmem>>, vector<1x3xf32>
    %172 = vector.broadcast %171 : vector<1x3xf32> to vector<64x3xf32>
    %173 = arith.addf %170, %172 : vector<64x3xf32>
    %c0_72 = arith.constant 0 : index
    %c0_73 = arith.constant 0 : index
    %174 = vector.load %arg5[%c0_72, %c0_73] : memref<64x3xf32, #tpu.memory_space<vmem>>, vector<64x3xf32>
    tpu.vector_store %arg5[%c0_72, %c0_73], %173 {strides = array<i32>} : memref<64x3xf32, #tpu.memory_space<vmem>>, vector<64x3xf32>,
    return
  }
}

</mosaic_0001>

<llo_original>
// kernel: tpu_custom_call.1
$region0: #{tpu_custom_call.1}
  #allocation0 [shape = 'u32[]', space=smem, size = 0x4, offset = 0x4, fixed_abs, tag = 'smem constant byte address 0x4 - core index']
  #allocation1 [shape = 'u32[144,128]{1,0:T(1,128)}', space=vmem, size = 0x12000, scoped, tag = 'internal scratch']
  %s0 = inlined_call_operand.vmem [shape: f32[64,32], index: 0, kind: input, shape index: {}]
  %s1 = inlined_call_operand.vmem [shape: bf16[64,64], index: 1, kind: input, shape index: {}]
  %s2 = inlined_call_operand.vmem [shape: bf16[64,64], index: 2, kind: input, shape index: {}]
  %s3 = inlined_call_operand.vmem [shape: bf16[4,96,32], index: 3, kind: input, shape index: {}]
  %s4 = inlined_call_operand.vmem [shape: f32[48,128], index: 4, kind: input, shape index: {}]
  %s5 = inlined_call_operand.vmem [shape: f32[64,3], index: 5, kind: output, shape index: {}]
  %s6 = sld [smem:[#allocation0]]
  $region30: #{tpu_custom_call.1} parent=0
    _
  %s8 = ssub.s32 1, %s6
  %s9 = scalar_select 0, %s8, %s6
  // Predicated region
  $region2: #{tpu_custom_call.1} parent=0 // pred_check
    _
  $region3: #{tpu_custom_call.1} parent=0 // pred_check_branch
    %11 = sbr.rel (0) target = $region5
  $region4: #{tpu_custom_call.1} parent=0 // pred_region
    _
  $region5: #{tpu_custom_call.1} parent=0 // pred_fallthru
    _
  // Predicated region
  $region6: #{tpu_custom_call.1} parent=0 // pred_check
    _
  $region7: #{tpu_custom_call.1} parent=0 // pred_check_branch
    %13 = sbr.rel (0) target = $region9
  $region8: #{tpu_custom_call.1} parent=0 // pred_region
    _
  $region9: #{tpu_custom_call.1} parent=0 // pred_fallthru
    _
  // Predicated region
  $region10: #{tpu_custom_call.1} parent=0 // pred_check
    _
  $region11: #{tpu_custom_call.1} parent=0 // pred_check_branch
    %15 = sbr.rel (0) target = $region13
  $region12: #{tpu_custom_call.1} parent=0 // pred_region
    _
  $region13: #{tpu_custom_call.1} parent=0 // pred_fallthru
    _
  // Predicated region
  $region14: #{tpu_custom_call.1} parent=0 // pred_check
    _
  $region15: #{tpu_custom_call.1} parent=0 // pred_check_branch
    %17 = sbr.rel (0) target = $region17
  $region16: #{tpu_custom_call.1} parent=0 // pred_region
    _
  $region17: #{tpu_custom_call.1} parent=0 // pred_fallthru
    _
  // Predicated region
  $region18: #{tpu_custom_call.1} parent=0 // pred_check
    _
  $region19: #{tpu_custom_call.1} parent=0 // pred_check_branch
    %19 = sbr.rel (0) target = $region21
  $region20: #{tpu_custom_call.1} parent=0 // pred_region
    _
  $region21: #{tpu_custom_call.1} parent=0 // pred_fallthru
    _
  %v21 = vld [vmem:[%s1] sm:$0xf]
  %v22 = vld [vmem:[%s1 + $0x4] sm:$0xf]
  %v23 = vld [vmem:[%s1 + $0x8] sm:$0xf]
  %v24 = vld [vmem:[%s1 + $0xc] sm:$0xf]
  %v25 = vld [vmem:[%s1 + $0x10] sm:$0xf]
  %v26 = vld [vmem:[%s1 + $0x14] sm:$0xf]
  %v27 = vld [vmem:[%s1 + $0x18] sm:$0xf]
  %v28 = vld [vmem:[%s1 + $0x1c] sm:$0xf]
  %v29 = vld [vmem:[%s2] sm:$0xf]
  %v30 = vld [vmem:[%s2 + $0x4] sm:$0xf]
  %v31 = vld [vmem:[%s2 + $0x8] sm:$0xf]
  %v32 = vld [vmem:[%s2 + $0xc] sm:$0xf]
  %v33 = vld [vmem:[%s2 + $0x10] sm:$0xf]
  %v34 = vld [vmem:[%s2 + $0x14] sm:$0xf]
  %v35 = vld [vmem:[%s2 + $0x18] sm:$0xf]
  %v36 = vld [vmem:[%s2 + $0x1c] sm:$0xf]
  %v37 = vld [vmem:[%s0] sm:$0xff]
  %v38 = vld [vmem:[%s0 + $0x8] sm:$0xff]
  %v39 = vld [vmem:[%s0 + $0x10] sm:$0xff]
  %v40 = vld [vmem:[%s0 + $0x18] sm:$0xff]
  %v41 = vld [vmem:[%s0 + $0x20] sm:$0xff]
  %v42 = vld [vmem:[%s0 + $0x28] sm:$0xff]
  %v43 = vld [vmem:[%s0 + $0x30] sm:$0xff]
  %v44 = vld [vmem:[%s0 + $0x38] sm:$0xff]
  %v45 = vld [vmem:[%s3] sm:$0xf]
  %v46 = vld [vmem:[%s3 + $0x4] sm:$0xf]
  %v47 = vld [vmem:[%s3 + $0x8] sm:$0xf]
  %v48 = vld [vmem:[%s3 + $0xc] sm:$0xf]
  %v49 = vld [vmem:[%s3 + $0x10] sm:$0xf]
  %v50 = vld [vmem:[%s3 + $0x14] sm:$0xf]
  %v51 = vld [vmem:[%s3 + $0x18] sm:$0xf]
  %v52 = vld [vmem:[%s3 + $0x1c] sm:$0xf]
  %v53 = vld [vmem:[%s3 + $0x20] sm:$0xf]
  %v54 = vld [vmem:[%s3 + $0x24] sm:$0xf]
  %v55 = vld [vmem:[%s3 + $0x28] sm:$0xf]
  %v56 = vld [vmem:[%s3 + $0x2c] sm:$0xf]
  %v57 = vld [vmem:[%s4] sm:$0x1]
  %v58 = vpack.c.bf16 %v38, %v37
  %v59 = vpack.c.bf16 %v40, %v39
  %v60 = vpack.c.bf16 %v42, %v41
  %v61 = vpack.c.bf16 %v44, %v43
  %v70 = vunpack.c.l.b16 %v21
  %v71 = vunpack.c.l.b16 %v22
  %v72 = vunpack.c.l.b16 %v23
  %v73 = vunpack.c.l.b16 %v24
  %v74 = vunpack.c.l.b16 %v25
  %v75 = vunpack.c.l.b16 %v26
  %v76 = vunpack.c.l.b16 %v27
  %v77 = vunpack.c.l.b16 %v28
  %v78 = vpack.c.b16 %v71, %v70
  %v79 = vpack.c.b16 %v73, %v72
  %v80 = vpack.c.b16 %v75, %v74
  %v81 = vpack.c.b16 %v77, %v76
  %vm82 = vcmask 523264
  %v84 = vsel %vm82, %v78, 0
  %v87 = vsel %vm82, %v79, 0
  %v90 = vsel %vm82, %v80, 0
  %v93 = vsel %vm82, %v81, 0
  %95 = vmatprep.subr.bf16.mxu0 0
  %96 = vmatpush1.bf16.msra.mxu0 0
  %97 = vmatprep.subr.bf16.mxu0 0
  %98 = vmatpush1.bf16.msra.mxu0 0
  %99 = vmatprep.subr.bf16.mxu0 0
  %100 = vmatpush1.bf16.msra.mxu0 0
  %101 = vmatprep.subr.bf16.mxu0 0
  %102 = vmatpush1.bf16.msra.mxu0 0
  %103 = vmatprep.subr.bf16.mxu0 0
  %104 = vmatpush1.bf16.msra.mxu0 %v61
  %105 = vmatprep.subr.bf16.mxu0 0
  %106 = vmatpush1.bf16.msra.mxu0 %v60
  %107 = vmatprep.subr.bf16.mxu0 0
  %108 = vmatpush1.bf16.msra.mxu0 %v59
  %109 = vmatprep.subr.bf16.mxu0 0
  %110 = vmatpush1.bf16.msra.mxu0 %v58
  %111 = vmatprep.subr.bf16.mxu0 0
  %112 = vmatpush2.bf16.msra.mxu0 0
  %113 = vmatprep.subr.bf16.mxu0 0
  %114 = vmatpush2.bf16.msra.mxu0 0
  %115 = vmatprep.subr.bf16.mxu0 0
  %116 = vmatpush2.bf16.msra.mxu0 0
  %117 = vmatprep.subr.bf16.mxu0 0
  %118 = vmatpush2.bf16.msra.mxu0 0
  %119 = vmatprep.subr.bf16.mxu0 0
  %120 = vmatpush2.bf16.msra.mxu0 0
  %121 = vmatprep.subr.bf16.mxu0 0
  %122 = vmatpush2.bf16.msra.mxu0 0
  %123 = vmatprep.subr.bf16.mxu0 0
  %124 = vmatpush2.bf16.msra.mxu0 0
  %125 = vmatprep.subr.bf16.mxu0 0
  %126 = vmatpush2.bf16.msra.mxu0 0
  %127 = vmatprep.mubr.bf16.mxu0 0
  %128 = vmatmul.mubr.bf16.gmra.mxu0 %v84
  %v129 = vpop.f32.mrf.mxu0
  %v130 = vadd.f32 0.0, %v129
  %v131 = vpop.f32.mrf.mxu0
  %v132 = vpop.f32.mrf.mxu0
  %v133 = vadd.f32 0.0, %v132
  %v134 = vpop.f32.mrf.mxu0
  %135 = vmatprep.mubr.bf16.mxu0 0
  %136 = vmatmul.mubr.bf16.gmra.mxu0 %v87
  %v137 = vpop.f32.mrf.mxu0
  %v138 = vadd.f32 0.0, %v137
  %v139 = vpop.f32.mrf.mxu0
  %v140 = vpop.f32.mrf.mxu0
  %v141 = vadd.f32 0.0, %v140
  %v142 = vpop.f32.mrf.mxu0
  %143 = vmatprep.mubr.bf16.mxu0 0
  %144 = vmatmul.mubr.bf16.gmra.mxu0 %v90
  %v145 = vpop.f32.mrf.mxu0
  %v146 = vadd.f32 0.0, %v145
  %v147 = vpop.f32.mrf.mxu0
  %v148 = vpop.f32.mrf.mxu0
  %v149 = vadd.f32 0.0, %v148
  %v150 = vpop.f32.mrf.mxu0
  %151 = vmatprep.mubr.bf16.mxu0 0
  %152 = vmatmul.mubr.bf16.gmra.mxu0 %v93
  %v153 = vpop.f32.mrf.mxu0
  %v154 = vadd.f32 0.0, %v153
  %v155 = vpop.f32.mrf.mxu0
  %v156 = vpop.f32.mrf.mxu0
  %v157 = vadd.f32 0.0, %v156
  %v158 = vpop.f32.mrf.mxu0
  %159 = vdwg.mxu0
  %v168 = vunpack.c.l.b16 %v29
  %v169 = vunpack.c.l.b16 %v30
  %v170 = vunpack.c.l.b16 %v31
  %v171 = vunpack.c.l.b16 %v32
  %v172 = vunpack.c.l.b16 %v33
  %v173 = vunpack.c.l.b16 %v34
  %v174 = vunpack.c.l.b16 %v35
  %v175 = vunpack.c.l.b16 %v36
  %v176 = vpack.c.b16 %v169, %v168
  %v177 = vpack.c.b16 %v171, %v170
  %v178 = vpack.c.b16 %v173, %v172
  %v179 = vpack.c.b16 %v175, %v174
  %v181 = vsel %vm82, %v176, 0
  %v184 = vsel %vm82, %v177, 0
  %v187 = vsel %vm82, %v178, 0
  %v190 = vsel %vm82, %v179, 0
  %192 = vmatprep.subr.bf16.mxu0 0
  %193 = vmatpush1.bf16.msra.mxu0 0
  %194 = vmatprep.subr.bf16.mxu0 0
  %195 = vmatpush1.bf16.msra.mxu0 0
  %196 = vmatprep.subr.bf16.mxu0 0
  %197 = vmatpush1.bf16.msra.mxu0 0
  %198 = vmatprep.subr.bf16.mxu0 0
  %199 = vmatpush1.bf16.msra.mxu0 0
  %200 = vmatprep.subr.bf16.mxu0 0
  %201 = vmatpush1.bf16.msra.mxu0 %v61
  %202 = vmatprep.subr.bf16.mxu0 0
  %203 = vmatpush1.bf16.msra.mxu0 %v60
  %204 = vmatprep.subr.bf16.mxu0 0
  %205 = vmatpush1.bf16.msra.mxu0 %v59
  %206 = vmatprep.subr.bf16.mxu0 0
  %207 = vmatpush1.bf16.msra.mxu0 %v58
  %208 = vmatprep.subr.bf16.mxu0 0
  %209 = vmatpush2.bf16.msra.mxu0 0
  %210 = vmatprep.subr.bf16.mxu0 0
  %211 = vmatpush2.bf16.msra.mxu0 0
  %212 = vmatprep.subr.bf16.mxu0 0
  %213 = vmatpush2.bf16.msra.mxu0 0
  %214 = vmatprep.subr.bf16.mxu0 0
  %215 = vmatpush2.bf16.msra.mxu0 0
  %216 = vmatprep.subr.bf16.mxu0 0
  %217 = vmatpush2.bf16.msra.mxu0 0
  %218 = vmatprep.subr.bf16.mxu0 0
  %219 = vmatpush2.bf16.msra.mxu0 0
  %220 = vmatprep.subr.bf16.mxu0 0
  %221 = vmatpush2.bf16.msra.mxu0 0
  %222 = vmatprep.subr.bf16.mxu0 0
  %223 = vmatpush2.bf16.msra.mxu0 0
  %224 = vmatprep.mubr.bf16.mxu0 0
  %225 = vmatmul.mubr.bf16.gmra.mxu0 %v181
  %v226 = vpop.f32.mrf.mxu0
  %v227 = vadd.f32 0.0, %v226
  %v228 = vpop.f32.mrf.mxu0
  %v229 = vpop.f32.mrf.mxu0
  %v230 = vadd.f32 0.0, %v229
  %v231 = vpop.f32.mrf.mxu0
  %232 = vmatprep.mubr.bf16.mxu0 0
  %233 = vmatmul.mubr.bf16.gmra.mxu0 %v184
  %v234 = vpop.f32.mrf.mxu0
  %v235 = vadd.f32 0.0, %v234
  %v236 = vpop.f32.mrf.mxu0
  %v237 = vpop.f32.mrf.mxu0
  %v238 = vadd.f32 0.0, %v237
  %v239 = vpop.f32.mrf.mxu0
  %240 = vmatprep.mubr.bf16.mxu0 0
  %241 = vmatmul.mubr.bf16.gmra.mxu0 %v187
  %v242 = vpop.f32.mrf.mxu0
  %v243 = vadd.f32 0.0, %v242
  %v244 = vpop.f32.mrf.mxu0
  %v245 = vpop.f32.mrf.mxu0
  %v246 = vadd.f32 0.0, %v245
  %v247 = vpop.f32.mrf.mxu0
  %248 = vmatprep.mubr.bf16.mxu0 0
  %249 = vmatmul.mubr.bf16.gmra.mxu0 %v190
  %v250 = vpop.f32.mrf.mxu0
  %v251 = vadd.f32 0.0, %v250
  %v252 = vpop.f32.mrf.mxu0
  %v253 = vpop.f32.mrf.mxu0
  %v254 = vadd.f32 0.0, %v253
  %v255 = vpop.f32.mrf.mxu0
  %256 = vdwg.mxu0
  %265 = vrot.lane.b32.xlu0 %v130, 32
  %v266 = vpop.permute.xlu0 %265
  %267 = vrot.lane.b32.xlu0 %v133, 32
  %v268 = vpop.permute.xlu0 %267
  %269 = vrot.lane.b32.xlu0 %v138, 32
  %v270 = vpop.permute.xlu0 %269
  %271 = vrot.lane.b32.xlu0 %v141, 32
  %v272 = vpop.permute.xlu0 %271
  %273 = vrot.lane.b32.xlu0 %v146, 32
  %v274 = vpop.permute.xlu0 %273
  %275 = vrot.lane.b32.xlu0 %v149, 32
  %v276 = vpop.permute.xlu0 %275
  %277 = vrot.lane.b32.xlu0 %v154, 32
  %v278 = vpop.permute.xlu0 %277
  %279 = vrot.lane.b32.xlu0 %v157, 32
  %v280 = vpop.permute.xlu0 %279
  %297 = vrot.lane.b32.xlu0 %v227, 64
  %v298 = vpop.permute.xlu0 %297
  %299 = vrot.lane.b32.xlu0 %v230, 64
  %v300 = vpop.permute.xlu0 %299
  %301 = vrot.lane.b32.xlu0 %v235, 64
  %v302 = vpop.permute.xlu0 %301
  %303 = vrot.lane.b32.xlu0 %v238, 64
  %v304 = vpop.permute.xlu0 %303
  %305 = vrot.lane.b32.xlu0 %v243, 64
  %v306 = vpop.permute.xlu0 %305
  %307 = vrot.lane.b32.xlu0 %v246, 64
  %v308 = vpop.permute.xlu0 %307
  %309 = vrot.lane.b32.xlu0 %v251, 64
  %v310 = vpop.permute.xlu0 %309
  %311 = vrot.lane.b32.xlu0 %v254, 64
  %v312 = vpop.permute.xlu0 %311
  %vm321 = vcmask 261120
  %v322 = vsel %vm321, %v37, %v266
  %v323 = vsel %vm321, %v38, %v268
  %v324 = vsel %vm321, %v39, %v270
  %v325 = vsel %vm321, %v40, %v272
  %v326 = vsel %vm321, %v41, %v274
  %v327 = vsel %vm321, %v42, %v276
  %v328 = vsel %vm321, %v43, %v278
  %v329 = vsel %vm321, %v44, %v280
  %v330 = vsel %vm82, %v322, %v298
  %v331 = vsel %vm82, %v323, %v300
  %v332 = vsel %vm82, %v324, %v302
  %v333 = vsel %vm82, %v325, %v304
  %v334 = vsel %vm82, %v326, %v306
  %v335 = vsel %vm82, %v327, %v308
  %v336 = vsel %vm82, %v328, %v310
  %v337 = vsel %vm82, %v329, %v312
  %v338 = vpack.c.bf16 %v331, %v330
  %v339 = vpack.c.bf16 %v333, %v332
  %v340 = vpack.c.bf16 %v335, %v334
  %v341 = vpack.c.bf16 %v337, %v336
  %v342 = vlaneseq
  %v343 = vshrl.u32 %v342, 7
  %v344 = vsub.s32 0, %v343
  %v345 = vrot.slane %v57, %v344
  %v358 = vunpack.c.l.b16 %v45
  %v359 = vunpack.c.l.b16 %v46
  %v360 = vunpack.c.l.b16 %v47
  %v361 = vunpack.c.l.b16 %v48
  %v362 = vunpack.c.l.b16 %v49
  %v363 = vunpack.c.l.b16 %v50
  %v364 = vunpack.c.l.b16 %v51
  %v365 = vunpack.c.l.b16 %v52
  %v366 = vunpack.c.l.b16 %v53
  %v367 = vunpack.c.l.b16 %v54
  %v368 = vunpack.c.l.b16 %v55
  %v369 = vunpack.c.l.b16 %v56
  %v370 = vpack.c.b16 %v359, %v358
  %v371 = vpack.c.b16 %v361, %v360
  %v372 = vpack.c.b16 %v363, %v362
  %v373 = vpack.c.b16 %v365, %v364
  %v374 = vpack.c.b16 %v367, %v366
  %v375 = vpack.c.b16 %v369, %v368
  %vm382 = vcmask 785408
  %v384 = vsel %vm382, %v338, 0
  %v387 = vsel %vm382, %v339, 0
  %v390 = vsel %vm382, %v340, 0
  %v393 = vsel %vm382, %v341, 0
  %395 = vmatprep.subr.bf16.mxu0 0
  %396 = vmatpush1.bf16.msra.mxu0 0
  %397 = vmatprep.subr.bf16.mxu0 0
  %398 = vmatpush1.bf16.msra.mxu0 0
  %399 = vmatprep.subr.bf16.mxu0 0
  %400 = vmatpush1.bf16.msra.mxu0 %v375
  %401 = vmatprep.subr.bf16.mxu0 0
  %402 = vmatpush1.bf16.msra.mxu0 %v374
  %403 = vmatprep.subr.bf16.mxu0 0
  %404 = vmatpush1.bf16.msra.mxu0 %v373
  %405 = vmatprep.subr.bf16.mxu0 0
  %406 = vmatpush1.bf16.msra.mxu0 %v372
  %407 = vmatprep.subr.bf16.mxu0 0
  %408 = vmatpush1.bf16.msra.mxu0 %v371
  %409 = vmatprep.subr.bf16.mxu0 0
  %410 = vmatpush1.bf16.msra.mxu0 %v370
  %411 = vmatprep.subr.bf16.mxu0 0
  %412 = vmatpush2.bf16.msra.mxu0 0
  %413 = vmatprep.subr.bf16.mxu0 0
  %414 = vmatpush2.bf16.msra.mxu0 0
  %415 = vmatprep.subr.bf16.mxu0 0
  %416 = vmatpush2.bf16.msra.mxu0 0
  %417 = vmatprep.subr.bf16.mxu0 0
  %418 = vmatpush2.bf16.msra.mxu0 0
  %419 = vmatprep.subr.bf16.mxu0 0
  %420 = vmatpush2.bf16.msra.mxu0 0
  %421 = vmatprep.subr.bf16.mxu0 0
  %422 = vmatpush2.bf16.msra.mxu0 0
  %423 = vmatprep.subr.bf16.mxu0 0
  %424 = vmatpush2.bf16.msra.mxu0 0
  %425 = vmatprep.subr.bf16.mxu0 0
  %426 = vmatpush2.bf16.msra.mxu0 0
  %427 = vmatprep.mubr.bf16.mxu0 0
  %428 = vmatmul.mubr.bf16.gmra.mxu0 %v384
  %v429 = vpop.f32.mrf.mxu0
  %v430 = vadd.f32 %v345, %v429
  %v431 = vpop.f32.mrf.mxu0
  %v432 = vpop.f32.mrf.mxu0
  %v433 = vadd.f32 %v345, %v432
  %v434 = vpop.f32.mrf.mxu0
  %435 = vmatprep.mubr.bf16.mxu0 0
  %436 = vmatmul.mubr.bf16.gmra.mxu0 %v387
  %v437 = vpop.f32.mrf.mxu0
  %v438 = vadd.f32 %v345, %v437
  %v439 = vpop.f32.mrf.mxu0
  %v440 = vpop.f32.mrf.mxu0
  %v441 = vadd.f32 %v345, %v440
  %v442 = vpop.f32.mrf.mxu0
  %443 = vmatprep.mubr.bf16.mxu0 0
  %444 = vmatmul.mubr.bf16.gmra.mxu0 %v390
  %v445 = vpop.f32.mrf.mxu0
  %v446 = vadd.f32 %v345, %v445
  %v447 = vpop.f32.mrf.mxu0
  %v448 = vpop.f32.mrf.mxu0
  %v449 = vadd.f32 %v345, %v448
  %v450 = vpop.f32.mrf.mxu0
  %451 = vmatprep.mubr.bf16.mxu0 0
  %452 = vmatmul.mubr.bf16.gmra.mxu0 %v393
  %v453 = vpop.f32.mrf.mxu0
  %v454 = vadd.f32 %v345, %v453
  %v455 = vpop.f32.mrf.mxu0
  %v456 = vpop.f32.mrf.mxu0
  %v457 = vadd.f32 %v345, %v456
  %v458 = vpop.f32.mrf.mxu0
  %459 = vdwg.mxu0
  %vm460 = vcmp.ge.f32.partialorder %v430, 0.0
  %vm461 = vcmp.ge.f32.partialorder %v433, 0.0
  %vm462 = vcmp.ge.f32.partialorder %v438, 0.0
  %vm463 = vcmp.ge.f32.partialorder %v441, 0.0
  %vm464 = vcmp.ge.f32.partialorder %v446, 0.0
  %vm465 = vcmp.ge.f32.partialorder %v449, 0.0
  %vm466 = vcmp.ge.f32.partialorder %v454, 0.0
  %vm467 = vcmp.ge.f32.partialorder %v457, 0.0
  %v468 = vmul.f32 %v430, 0.01
  %v469 = vmul.f32 %v433, 0.01
  %v470 = vmul.f32 %v438, 0.01
  %v471 = vmul.f32 %v441, 0.01
  %v472 = vmul.f32 %v446, 0.01
  %v473 = vmul.f32 %v449, 0.01
  %v474 = vmul.f32 %v454, 0.01
  %v475 = vmul.f32 %v457, 0.01
  %v476 = vsel %vm460, %v430, %v468
  %v477 = vsel %vm461, %v433, %v469
  %v478 = vsel %vm462, %v438, %v470
  %v479 = vsel %vm463, %v441, %v471
  %v480 = vsel %vm464, %v446, %v472
  %v481 = vsel %vm465, %v449, %v473
  %v482 = vsel %vm466, %v454, %v474
  %v483 = vsel %vm467, %v457, %v475
  %v484 = vld [vmem:[%s4 + $0x4] sm:$0x1]
  %v485 = vld [vmem:[%s4 + $0x7] sm:$0x1]
  %v486 = vsel %vm321, %v476, 0.0
  %v487 = vsel %vm321, %v477, 0.0
  %v488 = vadd.f32 %v486, %v487
  %v489 = vsel %vm321, %v478, 0.0
  %v490 = vadd.f32 %v488, %v489
  %v491 = vsel %vm321, %v479, 0.0
  %v492 = vadd.f32 %v490, %v491
  %v493 = vsel %vm321, %v480, 0.0
  %v494 = vadd.f32 %v492, %v493
  %v495 = vsel %vm321, %v481, 0.0
  %v496 = vadd.f32 %v494, %v495
  %v497 = vsel %vm321, %v482, 0.0
  %v498 = vadd.f32 %v496, %v497
  %v499 = vsel %vm321, %v483, 0.0
  %v500 = vadd.f32 %v498, %v499
  %v501 = vrot.slane %v500, 4
  %v502 = vadd.f32 %v500, %v501
  %v503 = vrot.slane %v502, 2
  %v504 = vadd.f32 %v502, %v503
  %v505 = vrot.slane %v504, 1
  %v506 = vadd.f32 %v504, %v505
  %v507 = vrcp.pop 64.0
  %v508 = vmul.f32 %v506, %v507
  %v509 = vsub.f32 %v476, %v508
  %v510 = vsub.f32 %v477, %v508
  %v511 = vsub.f32 %v478, %v508
  %v512 = vsub.f32 %v479, %v508
  %v513 = vsub.f32 %v480, %v508
  %v514 = vsub.f32 %v481, %v508
  %v515 = vsub.f32 %v482, %v508
  %v516 = vsub.f32 %v483, %v508
  %v517 = vmul.f32 %v509, %v509
  %v518 = vmul.f32 %v510, %v510
  %v519 = vmul.f32 %v511, %v511
  %v520 = vmul.f32 %v512, %v512
  %v521 = vmul.f32 %v513, %v513
  %v522 = vmul.f32 %v514, %v514
  %v523 = vmul.f32 %v515, %v515
  %v524 = vmul.f32 %v516, %v516
  %v525 = vsel %vm321, %v517, 0.0
  %v526 = vsel %vm321, %v518, 0.0
  %v527 = vadd.f32 %v525, %v526
  %v528 = vsel %vm321, %v519, 0.0
  %v529 = vadd.f32 %v527, %v528
  %v530 = vsel %vm321, %v520, 0.0
  %v531 = vadd.f32 %v529, %v530
  %v532 = vsel %vm321, %v521, 0.0
  %v533 = vadd.f32 %v531, %v532
  %v534 = vsel %vm321, %v522, 0.0
  %v535 = vadd.f32 %v533, %v534
  %v536 = vsel %vm321, %v523, 0.0
  %v537 = vadd.f32 %v535, %v536
  %v538 = vsel %vm321, %v524, 0.0
  %v539 = vadd.f32 %v537, %v538
  %v540 = vrot.slane %v539, 4
  %v541 = vadd.f32 %v539, %v540
  %v542 = vrot.slane %v541, 2
  %v543 = vadd.f32 %v541, %v542
  %v544 = vrot.slane %v543, 1
  %v545 = vadd.f32 %v543, %v544
  %v546 = vmul.f32 %v545, %v507
  %v547 = vadd.f32 %v546, 1e-05
  %v548 = vrsqrt.pop %v547
  %v549 = vmul.f32 %v509, %v548
  %v550 = vmul.f32 %v510, %v548
  %v551 = vmul.f32 %v511, %v548
  %v552 = vmul.f32 %v512, %v548
  %v553 = vmul.f32 %v513, %v548
  %v554 = vmul.f32 %v514, %v548
  %v555 = vmul.f32 %v515, %v548
  %v556 = vmul.f32 %v516, %v548
  %v557 = vlaneseq
  %v558 = vshrl.u32 %v557, 7
  %v559 = vsub.s32 0, %v558
  %v560 = vrot.slane %v484, %v559
  %v561 = vmul.f32 %v549, %v560
  %v562 = vmul.f32 %v550, %v560
  %v563 = vmul.f32 %v551, %v560
  %v564 = vmul.f32 %v552, %v560
  %v565 = vmul.f32 %v553, %v560
  %v566 = vmul.f32 %v554, %v560
  %v567 = vmul.f32 %v555, %v560
  %v568 = vmul.f32 %v556, %v560
  %v569 = vlaneseq
  %v570 = vshrl.u32 %v569, 7
  %v571 = vsub.s32 0, %v570
  %v572 = vrot.slane %v485, %v571
  %v573 = vadd.f32 %v561, %v572
  %v574 = vadd.f32 %v562, %v572
  %v575 = vadd.f32 %v563, %v572
  %v576 = vadd.f32 %v564, %v572
  %v577 = vadd.f32 %v565, %v572
  %v578 = vadd.f32 %v566, %v572
  %v579 = vadd.f32 %v567, %v572
  %v580 = vadd.f32 %v568, %v572
  %s581 = scalar_lea.vmem %s3, 48
  %v582 = vld [vmem:[%s581] sm:$0xf]
  %v583 = vld [vmem:[%s581 + $0x4] sm:$0xf]
  %v584 = vld [vmem:[%s581 + $0x8] sm:$0xf]
  %v585 = vld [vmem:[%s581 + $0xc] sm:$0xf]
  %v586 = vld [vmem:[%s581 + $0x10] sm:$0xf]
  %v587 = vld [vmem:[%s581 + $0x14] sm:$0xf]
  %v588 = vld [vmem:[%s581 + $0x18] sm:$0xf]
  %v589 = vld [vmem:[%s581 + $0x1c] sm:$0xf]
  %v590 = vld [vmem:[%s581 + $0x20] sm:$0xf]
  %v591 = vld [vmem:[%s581 + $0x24] sm:$0xf]
  %v592 = vld [vmem:[%s581 + $0x28] sm:$0xf]
  %v593 = vld [vmem:[%s581 + $0x2c] sm:$0xf]
  %v594 = vld [vmem:[%s4 + $0x1] sm:$0x1]
  %v595 = vpack.c.bf16 %v574, %v573
  %v596 = vpack.c.bf16 %v576, %v575
  %v597 = vpack.c.bf16 %v578, %v577
  %v598 = vpack.c.bf16 %v580, %v579
  %599 = vmatprep.subr.bf16.mxu0 0
  %600 = vmatpush1.bf16.msra.mxu0 0
  %601 = vmatprep.subr.bf16.mxu0 0
  %602 = vmatpush1.bf16.msra.mxu0 0
  %603 = vmatprep.subr.bf16.mxu0 0
  %604 = vmatpush1.bf16.msra.mxu0 0
  %605 = vmatprep.subr.bf16.mxu0 0
  %606 = vmatpush1.bf16.msra.mxu0 0
  %607 = vmatprep.subr.bf16.mxu0 0
  %608 = vmatpush1.bf16.msra.mxu0 %v598
  %609 = vmatprep.subr.bf16.mxu0 0
  %610 = vmatpush1.bf16.msra.mxu0 %v597
  %611 = vmatprep.subr.bf16.mxu0 0
  %612 = vmatpush1.bf16.msra.mxu0 %v596
  %613 = vmatprep.subr.bf16.mxu0 0
  %614 = vmatpush1.bf16.msra.mxu0 %v595
  %615 = vmatprep.subr.bf16.mxu0 0
  %616 = vmatpush2.bf16.msra.mxu0 0
  %617 = vmatprep.subr.bf16.mxu0 0
  %618 = vmatpush2.bf16.msra.mxu0 0
  %619 = vmatprep.subr.bf16.mxu0 0
  %620 = vmatpush2.bf16.msra.mxu0 0
  %621 = vmatprep.subr.bf16.mxu0 0
  %622 = vmatpush2.bf16.msra.mxu0 0
  %623 = vmatprep.subr.bf16.mxu0 0
  %624 = vmatpush2.bf16.msra.mxu0 0
  %625 = vmatprep.subr.bf16.mxu0 0
  %626 = vmatpush2.bf16.msra.mxu0 0
  %627 = vmatprep.subr.bf16.mxu0 0
  %628 = vmatpush2.bf16.msra.mxu0 0
  %629 = vmatprep.subr.bf16.mxu0 0
  %630 = vmatpush2.bf16.msra.mxu0 0
  %631 = vmatprep.mubr.bf16.mxu0 0
  %632 = vmatmul.mubr.bf16.gmra.mxu0 %v84
  %v633 = vpop.f32.mrf.mxu0
  %v634 = vadd.f32 0.0, %v633
  %v635 = vpop.f32.mrf.mxu0
  %v636 = vpop.f32.mrf.mxu0
  %v637 = vadd.f32 0.0, %v636
  %v638 = vpop.f32.mrf.mxu0
  %639 = vmatprep.mubr.bf16.mxu0 0
  %640 = vmatmul.mubr.bf16.gmra.mxu0 %v87
  %v641 = vpop.f32.mrf.mxu0
  %v642 = vadd.f32 0.0, %v641
  %v643 = vpop.f32.mrf.mxu0
  %v644 = vpop.f32.mrf.mxu0
  %v645 = vadd.f32 0.0, %v644
  %v646 = vpop.f32.mrf.mxu0
  %647 = vmatprep.mubr.bf16.mxu0 0
  %648 = vmatmul.mubr.bf16.gmra.mxu0 %v90
  %v649 = vpop.f32.mrf.mxu0
  %v650 = vadd.f32 0.0, %v649
  %v651 = vpop.f32.mrf.mxu0
  %v652 = vpop.f32.mrf.mxu0
  %v653 = vadd.f32 0.0, %v652
  %v654 = vpop.f32.mrf.mxu0
  %655 = vmatprep.mubr.bf16.mxu0 0
  %656 = vmatmul.mubr.bf16.gmra.mxu0 %v93
  %v657 = vpop.f32.mrf.mxu0
  %v658 = vadd.f32 0.0, %v657
  %v659 = vpop.f32.mrf.mxu0
  %v660 = vpop.f32.mrf.mxu0
  %v661 = vadd.f32 0.0, %v660
  %v662 = vpop.f32.mrf.mxu0
  %663 = vdwg.mxu0
  %664 = vmatprep.subr.bf16.mxu0 0
  %665 = vmatpush1.bf16.msra.mxu0 0
  %666 = vmatprep.subr.bf16.mxu0 0
  %667 = vmatpush1.bf16.msra.mxu0 0
  %668 = vmatprep.subr.bf16.mxu0 0
  %669 = vmatpush1.bf16.msra.mxu0 0
  %670 = vmatprep.subr.bf16.mxu0 0
  %671 = vmatpush1.bf16.msra.mxu0 0
  %672 = vmatprep.subr.bf16.mxu0 0
  %673 = vmatpush1.bf16.msra.mxu0 %v598
  %674 = vmatprep.subr.bf16.mxu0 0
  %675 = vmatpush1.bf16.msra.mxu0 %v597
  %676 = vmatprep.subr.bf16.mxu0 0
  %677 = vmatpush1.bf16.msra.mxu0 %v596
  %678 = vmatprep.subr.bf16.mxu0 0
  %679 = vmatpush1.bf16.msra.mxu0 %v595
  %680 = vmatprep.subr.bf16.mxu0 0
  %681 = vmatpush2.bf16.msra.mxu0 0
  %682 = vmatprep.subr.bf16.mxu0 0
  %683 = vmatpush2.bf16.msra.mxu0 0
  %684 = vmatprep.subr.bf16.mxu0 0
  %685 = vmatpush2.bf16.msra.mxu0 0
  %686 = vmatprep.subr.bf16.mxu0 0
  %687 = vmatpush2.bf16.msra.mxu0 0
  %688 = vmatprep.subr.bf16.mxu0 0
  %689 = vmatpush2.bf16.msra.mxu0 0
  %690 = vmatprep.subr.bf16.mxu0 0
  %691 = vmatpush2.bf16.msra.mxu0 0
  %692 = vmatprep.subr.bf16.mxu0 0
  %693 = vmatpush2.bf16.msra.mxu0 0
  %694 = vmatprep.subr.bf16.mxu0 0
  %695 = vmatpush2.bf16.msra.mxu0 0
  %696 = vmatprep.mubr.bf16.mxu0 0
  %697 = vmatmul.mubr.bf16.gmra.mxu0 %v181
  %v698 = vpop.f32.mrf.mxu0
  %v699 = vadd.f32 0.0, %v698
  %v700 = vpop.f32.mrf.mxu0
  %v701 = vpop.f32.mrf.mxu0
  %v702 = vadd.f32 0.0, %v701
  %v703 = vpop.f32.mrf.mxu0
  %704 = vmatprep.mubr.bf16.mxu0 0
  %705 = vmatmul.mubr.bf16.gmra.mxu0 %v184
  %v706 = vpop.f32.mrf.mxu0
  %v707 = vadd.f32 0.0, %v706
  %v708 = vpop.f32.mrf.mxu0
  %v709 = vpop.f32.mrf.mxu0
  %v710 = vadd.f32 0.0, %v709
  %v711 = vpop.f32.mrf.mxu0
  %712 = vmatprep.mubr.bf16.mxu0 0
  %713 = vmatmul.mubr.bf16.gmra.mxu0 %v187
  %v714 = vpop.f32.mrf.mxu0
  %v715 = vadd.f32 0.0, %v714
  %v716 = vpop.f32.mrf.mxu0
  %v717 = vpop.f32.mrf.mxu0
  %v718 = vadd.f32 0.0, %v717
  %v719 = vpop.f32.mrf.mxu0
  %720 = vmatprep.mubr.bf16.mxu0 0
  %721 = vmatmul.mubr.bf16.gmra.mxu0 %v190
  %v722 = vpop.f32.mrf.mxu0
  %v723 = vadd.f32 0.0, %v722
  %v724 = vpop.f32.mrf.mxu0
  %v725 = vpop.f32.mrf.mxu0
  %v726 = vadd.f32 0.0, %v725
  %v727 = vpop.f32.mrf.mxu0
  %728 = vdwg.mxu0
  %737 = vrot.lane.b32.xlu0 %v634, 32
  %v738 = vpop.permute.xlu0 %737
  %739 = vrot.lane.b32.xlu0 %v637, 32
  %v740 = vpop.permute.xlu0 %739
  %741 = vrot.lane.b32.xlu0 %v642, 32
  %v742 = vpop.permute.xlu0 %741
  %743 = vrot.lane.b32.xlu0 %v645, 32
  %v744 = vpop.permute.xlu0 %743
  %745 = vrot.lane.b32.xlu0 %v650, 32
  %v746 = vpop.permute.xlu0 %745
  %747 = vrot.lane.b32.xlu0 %v653, 32
  %v748 = vpop.permute.xlu0 %747
  %749 = vrot.lane.b32.xlu0 %v658, 32
  %v750 = vpop.permute.xlu0 %749
  %751 = vrot.lane.b32.xlu0 %v661, 32
  %v752 = vpop.permute.xlu0 %751
  %769 = vrot.lane.b32.xlu0 %v699, 64
  %v770 = vpop.permute.xlu0 %769
  %771 = vrot.lane.b32.xlu0 %v702, 64
  %v772 = vpop.permute.xlu0 %771
  %773 = vrot.lane.b32.xlu0 %v707, 64
  %v774 = vpop.permute.xlu0 %773
  %775 = vrot.lane.b32.xlu0 %v710, 64
  %v776 = vpop.permute.xlu0 %775
  %777 = vrot.lane.b32.xlu0 %v715, 64
  %v778 = vpop.permute.xlu0 %777
  %779 = vrot.lane.b32.xlu0 %v718, 64
  %v780 = vpop.permute.xlu0 %779
  %781 = vrot.lane.b32.xlu0 %v723, 64
  %v782 = vpop.permute.xlu0 %781
  %783 = vrot.lane.b32.xlu0 %v726, 64
  %v784 = vpop.permute.xlu0 %783
  %v793 = vsel %vm321, %v573, %v738
  %v794 = vsel %vm321, %v574, %v740
  %v795 = vsel %vm321, %v575, %v742
  %v796 = vsel %vm321, %v576, %v744
  %v797 = vsel %vm321, %v577, %v746
  %v798 = vsel %vm321, %v578, %v748
  %v799 = vsel %vm321, %v579, %v750
  %v800 = vsel %vm321, %v580, %v752
  %v801 = vsel %vm82, %v793, %v770
  %v802 = vsel %vm82, %v794, %v772
  %v803 = vsel %vm82, %v795, %v774
  %v804 = vsel %vm82, %v796, %v776
  %v805 = vsel %vm82, %v797, %v778
  %v806 = vsel %vm82, %v798, %v780
  %v807 = vsel %vm82, %v799, %v782
  %v808 = vsel %vm82, %v800, %v784
  %v809 = vpack.c.bf16 %v802, %v801
  %v810 = vpack.c.bf16 %v804, %v803
  %v811 = vpack.c.bf16 %v806, %v805
  %v812 = vpack.c.bf16 %v808, %v807
  %v813 = vlaneseq
  %v814 = vshrl.u32 %v813, 7
  %v815 = vsub.s32 0, %v814
  %v816 = vrot.slane %v594, %v815
  %v829 = vunpack.c.l.b16 %v582
  %v830 = vunpack.c.l.b16 %v583
  %v831 = vunpack.c.l.b16 %v584
  %v832 = vunpack.c.l.b16 %v585
  %v833 = vunpack.c.l.b16 %v586
  %v834 = vunpack.c.l.b16 %v587
  %v835 = vunpack.c.l.b16 %v588
  %v836 = vunpack.c.l.b16 %v589
  %v837 = vunpack.c.l.b16 %v590
  %v838 = vunpack.c.l.b16 %v591
  %v839 = vunpack.c.l.b16 %v592
  %v840 = vunpack.c.l.b16 %v593
  %v841 = vpack.c.b16 %v830, %v829
  %v842 = vpack.c.b16 %v832, %v831
  %v843 = vpack.c.b16 %v834, %v833
  %v844 = vpack.c.b16 %v836, %v835
  %v845 = vpack.c.b16 %v838, %v837
  %v846 = vpack.c.b16 %v840, %v839
  %v854 = vsel %vm382, %v809, 0
  %v857 = vsel %vm382, %v810, 0
  %v860 = vsel %vm382, %v811, 0
  %v863 = vsel %vm382, %v812, 0
  %865 = vmatprep.subr.bf16.mxu0 0
  %866 = vmatpush1.bf16.msra.mxu0 0
  %867 = vmatprep.subr.bf16.mxu0 0
  %868 = vmatpush1.bf16.msra.mxu0 0
  %869 = vmatprep.subr.bf16.mxu0 0
  %870 = vmatpush1.bf16.msra.mxu0 %v846
  %871 = vmatprep.subr.bf16.mxu0 0
  %872 = vmatpush1.bf16.msra.mxu0 %v845
  %873 = vmatprep.subr.bf16.mxu0 0
  %874 = vmatpush1.bf16.msra.mxu0 %v844
  %875 = vmatprep.subr.bf16.mxu0 0
  %876 = vmatpush1.bf16.msra.mxu0 %v843
  %877 = vmatprep.subr.bf16.mxu0 0
  %878 = vmatpush1.bf16.msra.mxu0 %v842
  %879 = vmatprep.subr.bf16.mxu0 0
  %880 = vmatpush1.bf16.msra.mxu0 %v841
  %881 = vmatprep.subr.bf16.mxu0 0
  %882 = vmatpush2.bf16.msra.mxu0 0
  %883 = vmatprep.subr.bf16.mxu0 0
  %884 = vmatpush2.bf16.msra.mxu0 0
  %885 = vmatprep.subr.bf16.mxu0 0
  %886 = vmatpush2.bf16.msra.mxu0 0
  %887 = vmatprep.subr.bf16.mxu0 0
  %888 = vmatpush2.bf16.msra.mxu0 0
  %889 = vmatprep.subr.bf16.mxu0 0
  %890 = vmatpush2.bf16.msra.mxu0 0
  %891 = vmatprep.subr.bf16.mxu0 0
  %892 = vmatpush2.bf16.msra.mxu0 0
  %893 = vmatprep.subr.bf16.mxu0 0
  %894 = vmatpush2.bf16.msra.mxu0 0
  %895 = vmatprep.subr.bf16.mxu0 0
  %896 = vmatpush2.bf16.msra.mxu0 0
  %897 = vmatprep.mubr.bf16.mxu0 0
  %898 = vmatmul.mubr.bf16.gmra.mxu0 %v854
  %v899 = vpop.f32.mrf.mxu0
  %v900 = vadd.f32 %v816, %v899
  %v901 = vpop.f32.mrf.mxu0
  %v902 = vpop.f32.mrf.mxu0
  %v903 = vadd.f32 %v816, %v902
  %v904 = vpop.f32.mrf.mxu0
  %905 = vmatprep.mubr.bf16.mxu0 0
  %906 = vmatmul.mubr.bf16.gmra.mxu0 %v857
  %v907 = vpop.f32.mrf.mxu0
  %v908 = vadd.f32 %v816, %v907
  %v909 = vpop.f32.mrf.mxu0
  %v910 = vpop.f32.mrf.mxu0
  %v911 = vadd.f32 %v816, %v910
  %v912 = vpop.f32.mrf.mxu0
  %913 = vmatprep.mubr.bf16.mxu0 0
  %914 = vmatmul.mubr.bf16.gmra.mxu0 %v860
  %v915 = vpop.f32.mrf.mxu0
  %v916 = vadd.f32 %v816, %v915
  %v917 = vpop.f32.mrf.mxu0
  %v918 = vpop.f32.mrf.mxu0
  %v919 = vadd.f32 %v816, %v918
  %v920 = vpop.f32.mrf.mxu0
  %921 = vmatprep.mubr.bf16.mxu0 0
  %922 = vmatmul.mubr.bf16.gmra.mxu0 %v863
  %v923 = vpop.f32.mrf.mxu0
  %v924 = vadd.f32 %v816, %v923
  %v925 = vpop.f32.mrf.mxu0
  %v926 = vpop.f32.mrf.mxu0
  %v927 = vadd.f32 %v816, %v926
  %v928 = vpop.f32.mrf.mxu0
  %929 = vdwg.mxu0
  %vm930 = vcmp.ge.f32.partialorder %v900, 0.0
  %vm931 = vcmp.ge.f32.partialorder %v903, 0.0
  %vm932 = vcmp.ge.f32.partialorder %v908, 0.0
  %vm933 = vcmp.ge.f32.partialorder %v911, 0.0
  %vm934 = vcmp.ge.f32.partialorder %v916, 0.0
  %vm935 = vcmp.ge.f32.partialorder %v919, 0.0
  %vm936 = vcmp.ge.f32.partialorder %v924, 0.0
  %vm937 = vcmp.ge.f32.partialorder %v927, 0.0
  %v938 = vmul.f32 %v900, 0.01
  %v939 = vmul.f32 %v903, 0.01
  %v940 = vmul.f32 %v908, 0.01
  %v941 = vmul.f32 %v911, 0.01
  %v942 = vmul.f32 %v916, 0.01
  %v943 = vmul.f32 %v919, 0.01
  %v944 = vmul.f32 %v924, 0.01
  %v945 = vmul.f32 %v927, 0.01
  %v946 = vsel %vm930, %v900, %v938
  %v947 = vsel %vm931, %v903, %v939
  %v948 = vsel %vm932, %v908, %v940
  %v949 = vsel %vm933, %v911, %v941
  %v950 = vsel %vm934, %v916, %v942
  %v951 = vsel %vm935, %v919, %v943
  %v952 = vsel %vm936, %v924, %v944
  %v953 = vsel %vm937, %v927, %v945
  %v954 = vld [vmem:[%s4 + $0x5] sm:$0x1]
  %v955 = vld [vmem:[%s4 + $0x8] sm:$0x1]
  %v956 = vsel %vm321, %v946, 0.0
  %v957 = vsel %vm321, %v947, 0.0
  %v958 = vadd.f32 %v956, %v957
  %v959 = vsel %vm321, %v948, 0.0
  %v960 = vadd.f32 %v958, %v959
  %v961 = vsel %vm321, %v949, 0.0
  %v962 = vadd.f32 %v960, %v961
  %v963 = vsel %vm321, %v950, 0.0
  %v964 = vadd.f32 %v962, %v963
  %v965 = vsel %vm321, %v951, 0.0
  %v966 = vadd.f32 %v964, %v965
  %v967 = vsel %vm321, %v952, 0.0
  %v968 = vadd.f32 %v966, %v967
  %v969 = vsel %vm321, %v953, 0.0
  %v970 = vadd.f32 %v968, %v969
  %v971 = vrot.slane %v970, 4
  %v972 = vadd.f32 %v970, %v971
  %v973 = vrot.slane %v972, 2
  %v974 = vadd.f32 %v972, %v973
  %v975 = vrot.slane %v974, 1
  %v976 = vadd.f32 %v974, %v975
  %v977 = vmul.f32 %v976, %v507
  %v978 = vsub.f32 %v946, %v977
  %v979 = vsub.f32 %v947, %v977
  %v980 = vsub.f32 %v948, %v977
  %v981 = vsub.f32 %v949, %v977
  %v982 = vsub.f32 %v950, %v977
  %v983 = vsub.f32 %v951, %v977
  %v984 = vsub.f32 %v952, %v977
  %v985 = vsub.f32 %v953, %v977
  %v986 = vmul.f32 %v978, %v978
  %v987 = vmul.f32 %v979, %v979
  %v988 = vmul.f32 %v980, %v980
  %v989 = vmul.f32 %v981, %v981
  %v990 = vmul.f32 %v982, %v982
  %v991 = vmul.f32 %v983, %v983
  %v992 = vmul.f32 %v984, %v984
  %v993 = vmul.f32 %v985, %v985
  %v994 = vsel %vm321, %v986, 0.0
  %v995 = vsel %vm321, %v987, 0.0
  %v996 = vadd.f32 %v994, %v995
  %v997 = vsel %vm321, %v988, 0.0
  %v998 = vadd.f32 %v996, %v997
  %v999 = vsel %vm321, %v989, 0.0
  %v1000 = vadd.f32 %v998, %v999
  %v1001 = vsel %vm321, %v990, 0.0
  %v1002 = vadd.f32 %v1000, %v1001
  %v1003 = vsel %vm321, %v991, 0.0
  %v1004 = vadd.f32 %v1002, %v1003
  %v1005 = vsel %vm321, %v992, 0.0
  %v1006 = vadd.f32 %v1004, %v1005
  %v1007 = vsel %vm321, %v993, 0.0
  %v1008 = vadd.f32 %v1006, %v1007
  %v1009 = vrot.slane %v1008, 4
  %v1010 = vadd.f32 %v1008, %v1009
  %v1011 = vrot.slane %v1010, 2
  %v1012 = vadd.f32 %v1010, %v1011
  %v1013 = vrot.slane %v1012, 1
  %v1014 = vadd.f32 %v1012, %v1013
  %v1015 = vmul.f32 %v1014, %v507
  %v1016 = vadd.f32 %v1015, 1e-05
  %v1017 = vrsqrt.pop %v1016
  %v1018 = vmul.f32 %v978, %v1017
  %v1019 = vmul.f32 %v979, %v1017
  %v1020 = vmul.f32 %v980, %v1017
  %v1021 = vmul.f32 %v981, %v1017
  %v1022 = vmul.f32 %v982, %v1017
  %v1023 = vmul.f32 %v983, %v1017
  %v1024 = vmul.f32 %v984, %v1017
  %v1025 = vmul.f32 %v985, %v1017
  %v1026 = vlaneseq
  %v1027 = vshrl.u32 %v1026, 7
  %v1028 = vsub.s32 0, %v1027
  %v1029 = vrot.slane %v954, %v1028
  %v1030 = vmul.f32 %v1018, %v1029
  %v1031 = vmul.f32 %v1019, %v1029
  %v1032 = vmul.f32 %v1020, %v1029
  %v1033 = vmul.f32 %v1021, %v1029
  %v1034 = vmul.f32 %v1022, %v1029
  %v1035 = vmul.f32 %v1023, %v1029
  %v1036 = vmul.f32 %v1024, %v1029
  %v1037 = vmul.f32 %v1025, %v1029
  %v1038 = vlaneseq
  %v1039 = vshrl.u32 %v1038, 7
  %v1040 = vsub.s32 0, %v1039
  %v1041 = vrot.slane %v955, %v1040
  %v1042 = vadd.f32 %v1030, %v1041
  %v1043 = vadd.f32 %v1031, %v1041
  %v1044 = vadd.f32 %v1032, %v1041
  %v1045 = vadd.f32 %v1033, %v1041
  %v1046 = vadd.f32 %v1034, %v1041
  %v1047 = vadd.f32 %v1035, %v1041
  %v1048 = vadd.f32 %v1036, %v1041
  %v1049 = vadd.f32 %v1037, %v1041
  %s1050 = scalar_lea.vmem %s3, 96
  %v1051 = vld [vmem:[%s1050] sm:$0xf]
  %v1052 = vld [vmem:[%s1050 + $0x4] sm:$0xf]
  %v1053 = vld [vmem:[%s1050 + $0x8] sm:$0xf]
  %v1054 = vld [vmem:[%s1050 + $0xc] sm:$0xf]
  %v1055 = vld [vmem:[%s1050 + $0x10] sm:$0xf]
  %v1056 = vld [vmem:[%s1050 + $0x14] sm:$0xf]
  %v1057 = vld [vmem:[%s1050 + $0x18] sm:$0xf]
  %v1058 = vld [vmem:[%s1050 + $0x1c] sm:$0xf]
  %v1059 = vld [vmem:[%s1050 + $0x20] sm:$0xf]
  %v1060 = vld [vmem:[%s1050 + $0x24] sm:$0xf]
  %v1061 = vld [vmem:[%s1050 + $0x28] sm:$0xf]
  %v1062 = vld [vmem:[%s1050 + $0x2c] sm:$0xf]
  %v1063 = vld [vmem:[%s4 + $0x2] sm:$0x1]
  %v1064 = vpack.c.bf16 %v1043, %v1042
  %v1065 = vpack.c.bf16 %v1045, %v1044
  %v1066 = vpack.c.bf16 %v1047, %v1046
  %v1067 = vpack.c.bf16 %v1049, %v1048
  %1068 = vmatprep.subr.bf16.mxu0 0
  %1069 = vmatpush1.bf16.msra.mxu0 0
  %1070 = vmatprep.subr.bf16.mxu0 0
  %1071 = vmatpush1.bf16.msra.mxu0 0
  %1072 = vmatprep.subr.bf16.mxu0 0
  %1073 = vmatpush1.bf16.msra.mxu0 0
  %1074 = vmatprep.subr.bf16.mxu0 0
  %1075 = vmatpush1.bf16.msra.mxu0 0
  %1076 = vmatprep.subr.bf16.mxu0 0
  %1077 = vmatpush1.bf16.msra.mxu0 %v1067
  %1078 = vmatprep.subr.bf16.mxu0 0
  %1079 = vmatpush1.bf16.msra.mxu0 %v1066
  %1080 = vmatprep.subr.bf16.mxu0 0
  %1081 = vmatpush1.bf16.msra.mxu0 %v1065
  %1082 = vmatprep.subr.bf16.mxu0 0
  %1083 = vmatpush1.bf16.msra.mxu0 %v1064
  %1084 = vmatprep.subr.bf16.mxu0 0
  %1085 = vmatpush2.bf16.msra.mxu0 0
  %1086 = vmatprep.subr.bf16.mxu0 0
  %1087 = vmatpush2.bf16.msra.mxu0 0
  %1088 = vmatprep.subr.bf16.mxu0 0
  %1089 = vmatpush2.bf16.msra.mxu0 0
  %1090 = vmatprep.subr.bf16.mxu0 0
  %1091 = vmatpush2.bf16.msra.mxu0 0
  %1092 = vmatprep.subr.bf16.mxu0 0
  %1093 = vmatpush2.bf16.msra.mxu0 0
  %1094 = vmatprep.subr.bf16.mxu0 0
  %1095 = vmatpush2.bf16.msra.mxu0 0
  %1096 = vmatprep.subr.bf16.mxu0 0
  %1097 = vmatpush2.bf16.msra.mxu0 0
  %1098 = vmatprep.subr.bf16.mxu0 0
  %1099 = vmatpush2.bf16.msra.mxu0 0
  %1100 = vmatprep.mubr.bf16.mxu0 0
  %1101 = vmatmul.mubr.bf16.gmra.mxu0 %v84
  %v1102 = vpop.f32.mrf.mxu0
  %v1103 = vadd.f32 0.0, %v1102
  %v1104 = vpop.f32.mrf.mxu0
  %v1105 = vpop.f32.mrf.mxu0
  %v1106 = vadd.f32 0.0, %v1105
  %v1107 = vpop.f32.mrf.mxu0
  %1108 = vmatprep.mubr.bf16.mxu0 0
  %1109 = vmatmul.mubr.bf16.gmra.mxu0 %v87
  %v1110 = vpop.f32.mrf.mxu0
  %v1111 = vadd.f32 0.0, %v1110
  %v1112 = vpop.f32.mrf.mxu0
  %v1113 = vpop.f32.mrf.mxu0
  %v1114 = vadd.f32 0.0, %v1113
  %v1115 = vpop.f32.mrf.mxu0
  %1116 = vmatprep.mubr.bf16.mxu0 0
  %1117 = vmatmul.mubr.bf16.gmra.mxu0 %v90
  %v1118 = vpop.f32.mrf.mxu0
  %v1119 = vadd.f32 0.0, %v1118
  %v1120 = vpop.f32.mrf.mxu0
  %v1121 = vpop.f32.mrf.mxu0
  %v1122 = vadd.f32 0.0, %v1121
  %v1123 = vpop.f32.mrf.mxu0
  %1124 = vmatprep.mubr.bf16.mxu0 0
  %1125 = vmatmul.mubr.bf16.gmra.mxu0 %v93
  %v1126 = vpop.f32.mrf.mxu0
  %v1127 = vadd.f32 0.0, %v1126
  %v1128 = vpop.f32.mrf.mxu0
  %v1129 = vpop.f32.mrf.mxu0
  %v1130 = vadd.f32 0.0, %v1129
  %v1131 = vpop.f32.mrf.mxu0
  %1132 = vdwg.mxu0
  %1133 = vmatprep.subr.bf16.mxu0 0
  %1134 = vmatpush1.bf16.msra.mxu0 0
  %1135 = vmatprep.subr.bf16.mxu0 0
  %1136 = vmatpush1.bf16.msra.mxu0 0
  %1137 = vmatprep.subr.bf16.mxu0 0
  %1138 = vmatpush1.bf16.msra.mxu0 0
  %1139 = vmatprep.subr.bf16.mxu0 0
  %1140 = vmatpush1.bf16.msra.mxu0 0
  %1141 = vmatprep.subr.bf16.mxu0 0
  %1142 = vmatpush1.bf16.msra.mxu0 %v1067
  %1143 = vmatprep.subr.bf16.mxu0 0
  %1144 = vmatpush1.bf16.msra.mxu0 %v1066
  %1145 = vmatprep.subr.bf16.mxu0 0
  %1146 = vmatpush1.bf16.msra.mxu0 %v1065
  %1147 = vmatprep.subr.bf16.mxu0 0
  %1148 = vmatpush1.bf16.msra.mxu0 %v1064
  %1149 = vmatprep.subr.bf16.mxu0 0
  %1150 = vmatpush2.bf16.msra.mxu0 0
  %1151 = vmatprep.subr.bf16.mxu0 0
  %1152 = vmatpush2.bf16.msra.mxu0 0
  %1153 = vmatprep.subr.bf16.mxu0 0
  %1154 = vmatpush2.bf16.msra.mxu0 0
  %1155 = vmatprep.subr.bf16.mxu0 0
  %1156 = vmatpush2.bf16.msra.mxu0 0
  %1157 = vmatprep.subr.bf16.mxu0 0
  %1158 = vmatpush2.bf16.msra.mxu0 0
  %1159 = vmatprep.subr.bf16.mxu0 0
  %1160 = vmatpush2.bf16.msra.mxu0 0
  %1161 = vmatprep.subr.bf16.mxu0 0
  %1162 = vmatpush2.bf16.msra.mxu0 0
  %1163 = vmatprep.subr.bf16.mxu0 0
  %1164 = vmatpush2.bf16.msra.mxu0 0
  %1165 = vmatprep.mubr.bf16.mxu0 0
  %1166 = vmatmul.mubr.bf16.gmra.mxu0 %v181
  %v1167 = vpop.f32.mrf.mxu0
  %v1168 = vadd.f32 0.0, %v1167
  %v1169 = vpop.f32.mrf.mxu0
  %v1170 = vpop.f32.mrf.mxu0
  %v1171 = vadd.f32 0.0, %v1170
  %v1172 = vpop.f32.mrf.mxu0
  %1173 = vmatprep.mubr.bf16.mxu0 0
  %1174 = vmatmul.mubr.bf16.gmra.mxu0 %v184
  %v1175 = vpop.f32.mrf.mxu0
  %v1176 = vadd.f32 0.0, %v1175
  %v1177 = vpop.f32.mrf.mxu0
  %v1178 = vpop.f32.mrf.mxu0
  %v1179 = vadd.f32 0.0, %v1178
  %v1180 = vpop.f32.mrf.mxu0
  %1181 = vmatprep.mubr.bf16.mxu0 0
  %1182 = vmatmul.mubr.bf16.gmra.mxu0 %v187
  %v1183 = vpop.f32.mrf.mxu0
  %v1184 = vadd.f32 0.0, %v1183
  %v1185 = vpop.f32.mrf.mxu0
  %v1186 = vpop.f32.mrf.mxu0
  %v1187 = vadd.f32 0.0, %v1186
  %v1188 = vpop.f32.mrf.mxu0
  %1189 = vmatprep.mubr.bf16.mxu0 0
  %1190 = vmatmul.mubr.bf16.gmra.mxu0 %v190
  %v1191 = vpop.f32.mrf.mxu0
  %v1192 = vadd.f32 0.0, %v1191
  %v1193 = vpop.f32.mrf.mxu0
  %v1194 = vpop.f32.mrf.mxu0
  %v1195 = vadd.f32 0.0, %v1194
  %v1196 = vpop.f32.mrf.mxu0
  %1197 = vdwg.mxu0
  %1206 = vrot.lane.b32.xlu0 %v1103, 32
  %v1207 = vpop.permute.xlu0 %1206
  %1208 = vrot.lane.b32.xlu0 %v1106, 32
  %v1209 = vpop.permute.xlu0 %1208
  %1210 = vrot.lane.b32.xlu0 %v1111, 32
  %v1211 = vpop.permute.xlu0 %1210
  %1212 = vrot.lane.b32.xlu0 %v1114, 32
  %v1213 = vpop.permute.xlu0 %1212
  %1214 = vrot.lane.b32.xlu0 %v1119, 32
  %v1215 = vpop.permute.xlu0 %1214
  %1216 = vrot.lane.b32.xlu0 %v1122, 32
  %v1217 = vpop.permute.xlu0 %1216
  %1218 = vrot.lane.b32.xlu0 %v1127, 32
  %v1219 = vpop.permute.xlu0 %1218
  %1220 = vrot.lane.b32.xlu0 %v1130, 32
  %v1221 = vpop.permute.xlu0 %1220
  %1238 = vrot.lane.b32.xlu0 %v1168, 64
  %v1239 = vpop.permute.xlu0 %1238
  %1240 = vrot.lane.b32.xlu0 %v1171, 64
  %v1241 = vpop.permute.xlu0 %1240
  %1242 = vrot.lane.b32.xlu0 %v1176, 64
  %v1243 = vpop.permute.xlu0 %1242
  %1244 = vrot.lane.b32.xlu0 %v1179, 64
  %v1245 = vpop.permute.xlu0 %1244
  %1246 = vrot.lane.b32.xlu0 %v1184, 64
  %v1247 = vpop.permute.xlu0 %1246
  %1248 = vrot.lane.b32.xlu0 %v1187, 64
  %v1249 = vpop.permute.xlu0 %1248
  %1250 = vrot.lane.b32.xlu0 %v1192, 64
  %v1251 = vpop.permute.xlu0 %1250
  %1252 = vrot.lane.b32.xlu0 %v1195, 64
  %v1253 = vpop.permute.xlu0 %1252
  %v1262 = vsel %vm321, %v1042, %v1207
  %v1263 = vsel %vm321, %v1043, %v1209
  %v1264 = vsel %vm321, %v1044, %v1211
  %v1265 = vsel %vm321, %v1045, %v1213
  %v1266 = vsel %vm321, %v1046, %v1215
  %v1267 = vsel %vm321, %v1047, %v1217
  %v1268 = vsel %vm321, %v1048, %v1219
  %v1269 = vsel %vm321, %v1049, %v1221
  %v1270 = vsel %vm82, %v1262, %v1239
  %v1271 = vsel %vm82, %v1263, %v1241
  %v1272 = vsel %vm82, %v1264, %v1243
  %v1273 = vsel %vm82, %v1265, %v1245
  %v1274 = vsel %vm82, %v1266, %v1247
  %v1275 = vsel %vm82, %v1267, %v1249
  %v1276 = vsel %vm82, %v1268, %v1251
  %v1277 = vsel %vm82, %v1269, %v1253
  %v1278 = vpack.c.bf16 %v1271, %v1270
  %v1279 = vpack.c.bf16 %v1273, %v1272
  %v1280 = vpack.c.bf16 %v1275, %v1274
  %v1281 = vpack.c.bf16 %v1277, %v1276
  %v1282 = vlaneseq
  %v1283 = vshrl.u32 %v1282, 7
  %v1284 = vsub.s32 0, %v1283
  %v1285 = vrot.slane %v1063, %v1284
  %v1298 = vunpack.c.l.b16 %v1051
  %v1299 = vunpack.c.l.b16 %v1052
  %v1300 = vunpack.c.l.b16 %v1053
  %v1301 = vunpack.c.l.b16 %v1054
  %v1302 = vunpack.c.l.b16 %v1055
  %v1303 = vunpack.c.l.b16 %v1056
  %v1304 = vunpack.c.l.b16 %v1057
  %v1305 = vunpack.c.l.b16 %v1058
  %v1306 = vunpack.c.l.b16 %v1059
  %v1307 = vunpack.c.l.b16 %v1060
  %v1308 = vunpack.c.l.b16 %v1061
  %v1309 = vunpack.c.l.b16 %v1062
  %v1310 = vpack.c.b16 %v1299, %v1298
  %v1311 = vpack.c.b16 %v1301, %v1300
  %v1312 = vpack.c.b16 %v1303, %v1302
  %v1313 = vpack.c.b16 %v1305, %v1304
  %v1314 = vpack.c.b16 %v1307, %v1306
  %v1315 = vpack.c.b16 %v1309, %v1308
  %v1323 = vsel %vm382, %v1278, 0
  %v1326 = vsel %vm382, %v1279, 0
  %v1329 = vsel %vm382, %v1280, 0
  %v1332 = vsel %vm382, %v1281, 0
  %1334 = vmatprep.subr.bf16.mxu0 0
  %1335 = vmatpush1.bf16.msra.mxu0 0
  %1336 = vmatprep.subr.bf16.mxu0 0
  %1337 = vmatpush1.bf16.msra.mxu0 0
  %1338 = vmatprep.subr.bf16.mxu0 0
  %1339 = vmatpush1.bf16.msra.mxu0 %v1315
  %1340 = vmatprep.subr.bf16.mxu0 0
  %1341 = vmatpush1.bf16.msra.mxu0 %v1314
  %1342 = vmatprep.subr.bf16.mxu0 0
  %1343 = vmatpush1.bf16.msra.mxu0 %v1313
  %1344 = vmatprep.subr.bf16.mxu0 0
  %1345 = vmatpush1.bf16.msra.mxu0 %v1312
  %1346 = vmatprep.subr.bf16.mxu0 0
  %1347 = vmatpush1.bf16.msra.mxu0 %v1311
  %1348 = vmatprep.subr.bf16.mxu0 0
  %1349 = vmatpush1.bf16.msra.mxu0 %v1310
  %1350 = vmatprep.subr.bf16.mxu0 0
  %1351 = vmatpush2.bf16.msra.mxu0 0
  %1352 = vmatprep.subr.bf16.mxu0 0
  %1353 = vmatpush2.bf16.msra.mxu0 0
  %1354 = vmatprep.subr.bf16.mxu0 0
  %1355 = vmatpush2.bf16.msra.mxu0 0
  %1356 = vmatprep.subr.bf16.mxu0 0
  %1357 = vmatpush2.bf16.msra.mxu0 0
  %1358 = vmatprep.subr.bf16.mxu0 0
  %1359 = vmatpush2.bf16.msra.mxu0 0
  %1360 = vmatprep.subr.bf16.mxu0 0
  %1361 = vmatpush2.bf16.msra.mxu0 0
  %1362 = vmatprep.subr.bf16.mxu0 0
  %1363 = vmatpush2.bf16.msra.mxu0 0
  %1364 = vmatprep.subr.bf16.mxu0 0
  %1365 = vmatpush2.bf16.msra.mxu0 0
  %1366 = vmatprep.mubr.bf16.mxu0 0
  %1367 = vmatmul.mubr.bf16.gmra.mxu0 %v1323
  %v1368 = vpop.f32.mrf.mxu0
  %v1369 = vadd.f32 %v1285, %v1368
  %v1370 = vpop.f32.mrf.mxu0
  %v1371 = vpop.f32.mrf.mxu0
  %v1372 = vadd.f32 %v1285, %v1371
  %v1373 = vpop.f32.mrf.mxu0
  %1374 = vmatprep.mubr.bf16.mxu0 0
  %1375 = vmatmul.mubr.bf16.gmra.mxu0 %v1326
  %v1376 = vpop.f32.mrf.mxu0
  %v1377 = vadd.f32 %v1285, %v1376
  %v1378 = vpop.f32.mrf.mxu0
  %v1379 = vpop.f32.mrf.mxu0
  %v1380 = vadd.f32 %v1285, %v1379
  %v1381 = vpop.f32.mrf.mxu0
  %1382 = vmatprep.mubr.bf16.mxu0 0
  %1383 = vmatmul.mubr.bf16.gmra.mxu0 %v1329
  %v1384 = vpop.f32.mrf.mxu0
  %v1385 = vadd.f32 %v1285, %v1384
  %v1386 = vpop.f32.mrf.mxu0
  %v1387 = vpop.f32.mrf.mxu0
  %v1388 = vadd.f32 %v1285, %v1387
  %v1389 = vpop.f32.mrf.mxu0
  %1390 = vmatprep.mubr.bf16.mxu0 0
  %1391 = vmatmul.mubr.bf16.gmra.mxu0 %v1332
  %v1392 = vpop.f32.mrf.mxu0
  %v1393 = vadd.f32 %v1285, %v1392
  %v1394 = vpop.f32.mrf.mxu0
  %v1395 = vpop.f32.mrf.mxu0
  %v1396 = vadd.f32 %v1285, %v1395
  %v1397 = vpop.f32.mrf.mxu0
  %1398 = vdwg.mxu0
  %v1399 = vmax.f32 %v1369, 0.0
  %v1400 = vmax.f32 %v1372, 0.0
  %v1401 = vmax.f32 %v1377, 0.0
  %v1402 = vmax.f32 %v1380, 0.0
  %v1403 = vmax.f32 %v1385, 0.0
  %v1404 = vmax.f32 %v1388, 0.0
  %v1405 = vmax.f32 %v1393, 0.0
  %v1406 = vmax.f32 %v1396, 0.0
  %v1407 = vld [vmem:[%s4 + $0x6] sm:$0x1]
  %v1408 = vld [vmem:[%s4 + $0x9] sm:$0x1]
  %v1409 = vsel %vm321, %v1399, 0.0
  %v1410 = vsel %vm321, %v1400, 0.0
  %v1411 = vadd.f32 %v1409, %v1410
  %v1412 = vsel %vm321, %v1401, 0.0
  %v1413 = vadd.f32 %v1411, %v1412
  %v1414 = vsel %vm321, %v1402, 0.0
  %v1415 = vadd.f32 %v1413, %v1414
  %v1416 = vsel %vm321, %v1403, 0.0
  %v1417 = vadd.f32 %v1415, %v1416
  %v1418 = vsel %vm321, %v1404, 0.0
  %v1419 = vadd.f32 %v1417, %v1418
  %v1420 = vsel %vm321, %v1405, 0.0
  %v1421 = vadd.f32 %v1419, %v1420
  %v1422 = vsel %vm321, %v1406, 0.0
  %v1423 = vadd.f32 %v1421, %v1422
  %v1424 = vrot.slane %v1423, 4
  %v1425 = vadd.f32 %v1423, %v1424
  %v1426 = vrot.slane %v1425, 2
  %v1427 = vadd.f32 %v1425, %v1426
  %v1428 = vrot.slane %v1427, 1
  %v1429 = vadd.f32 %v1427, %v1428
  %v1430 = vmul.f32 %v1429, %v507
  %v1431 = vsub.f32 %v1399, %v1430
  %v1432 = vsub.f32 %v1400, %v1430
  %v1433 = vsub.f32 %v1401, %v1430
  %v1434 = vsub.f32 %v1402, %v1430
  %v1435 = vsub.f32 %v1403, %v1430
  %v1436 = vsub.f32 %v1404, %v1430
  %v1437 = vsub.f32 %v1405, %v1430
  %v1438 = vsub.f32 %v1406, %v1430
  %v1439 = vmul.f32 %v1431, %v1431
  %v1440 = vmul.f32 %v1432, %v1432
  %v1441 = vmul.f32 %v1433, %v1433
  %v1442 = vmul.f32 %v1434, %v1434
  %v1443 = vmul.f32 %v1435, %v1435
  %v1444 = vmul.f32 %v1436, %v1436
  %v1445 = vmul.f32 %v1437, %v1437
  %v1446 = vmul.f32 %v1438, %v1438
  %v1447 = vsel %vm321, %v1439, 0.0
  %v1448 = vsel %vm321, %v1440, 0.0
  %v1449 = vadd.f32 %v1447, %v1448
  %v1450 = vsel %vm321, %v1441, 0.0
  %v1451 = vadd.f32 %v1449, %v1450
  %v1452 = vsel %vm321, %v1442, 0.0
  %v1453 = vadd.f32 %v1451, %v1452
  %v1454 = vsel %vm321, %v1443, 0.0
  %v1455 = vadd.f32 %v1453, %v1454
  %v1456 = vsel %vm321, %v1444, 0.0
  %v1457 = vadd.f32 %v1455, %v1456
  %v1458 = vsel %vm321, %v1445, 0.0
  %v1459 = vadd.f32 %v1457, %v1458
  %v1460 = vsel %vm321, %v1446, 0.0
  %v1461 = vadd.f32 %v1459, %v1460
  %v1462 = vrot.slane %v1461, 4
  %v1463 = vadd.f32 %v1461, %v1462
  %v1464 = vrot.slane %v1463, 2
  %v1465 = vadd.f32 %v1463, %v1464
  %v1466 = vrot.slane %v1465, 1
  %v1467 = vadd.f32 %v1465, %v1466
  %v1468 = vmul.f32 %v1467, %v507
  %v1469 = vadd.f32 %v1468, 1e-05
  %v1470 = vrsqrt.pop %v1469
  %v1471 = vmul.f32 %v1431, %v1470
  %v1472 = vmul.f32 %v1432, %v1470
  %v1473 = vmul.f32 %v1433, %v1470
  %v1474 = vmul.f32 %v1434, %v1470
  %v1475 = vmul.f32 %v1435, %v1470
  %v1476 = vmul.f32 %v1436, %v1470
  %v1477 = vmul.f32 %v1437, %v1470
  %v1478 = vmul.f32 %v1438, %v1470
  %v1479 = vlaneseq
  %v1480 = vshrl.u32 %v1479, 7
  %v1481 = vsub.s32 0, %v1480
  %v1482 = vrot.slane %v1407, %v1481
  %v1483 = vmul.f32 %v1471, %v1482
  %v1484 = vmul.f32 %v1472, %v1482
  %v1485 = vmul.f32 %v1473, %v1482
  %v1486 = vmul.f32 %v1474, %v1482
  %v1487 = vmul.f32 %v1475, %v1482
  %v1488 = vmul.f32 %v1476, %v1482
  %v1489 = vmul.f32 %v1477, %v1482
  %v1490 = vmul.f32 %v1478, %v1482
  %v1491 = vlaneseq
  %v1492 = vshrl.u32 %v1491, 7
  %v1493 = vsub.s32 0, %v1492
  %v1494 = vrot.slane %v1408, %v1493
  %v1495 = vadd.f32 %v1483, %v1494
  %v1496 = vadd.f32 %v1484, %v1494
  %v1497 = vadd.f32 %v1485, %v1494
  %v1498 = vadd.f32 %v1486, %v1494
  %v1499 = vadd.f32 %v1487, %v1494
  %v1500 = vadd.f32 %v1488, %v1494
  %v1501 = vadd.f32 %v1489, %v1494
  %v1502 = vadd.f32 %v1490, %v1494
  %s1503 = scalar_lea.vmem %s3, 144
  %v1504 = vld [vmem:[%s1503] sm:$0xf]
  %v1505 = vld [vmem:[%s1503 + $0x4] sm:$0xf]
  %v1506 = vld [vmem:[%s1503 + $0x8] sm:$0xf]
  %v1507 = vld [vmem:[%s1503 + $0xc] sm:$0xf]
  %v1508 = vld [vmem:[%s1503 + $0x10] sm:$0xf]
  %v1509 = vld [vmem:[%s1503 + $0x14] sm:$0xf]
  %v1510 = vld [vmem:[%s1503 + $0x18] sm:$0xf]
  %v1511 = vld [vmem:[%s1503 + $0x1c] sm:$0xf]
  %v1512 = vld [vmem:[%s1503 + $0x20] sm:$0xf]
  %v1513 = vld [vmem:[%s1503 + $0x24] sm:$0xf]
  %v1514 = vld [vmem:[%s1503 + $0x28] sm:$0xf]
  %v1515 = vld [vmem:[%s1503 + $0x2c] sm:$0xf]
  %v1516 = vld [vmem:[%s4 + $0x3] sm:$0x1]
  %v1517 = vpack.c.bf16 %v1496, %v1495
  %v1518 = vpack.c.bf16 %v1498, %v1497
  %v1519 = vpack.c.bf16 %v1500, %v1499
  %v1520 = vpack.c.bf16 %v1502, %v1501
  %1521 = vmatprep.subr.bf16.mxu0 0
  %1522 = vmatpush1.bf16.msra.mxu0 0
  %1523 = vmatprep.subr.bf16.mxu0 0
  %1524 = vmatpush1.bf16.msra.mxu0 0
  %1525 = vmatprep.subr.bf16.mxu0 0
  %1526 = vmatpush1.bf16.msra.mxu0 0
  %1527 = vmatprep.subr.bf16.mxu0 0
  %1528 = vmatpush1.bf16.msra.mxu0 0
  %1529 = vmatprep.subr.bf16.mxu0 0
  %1530 = vmatpush1.bf16.msra.mxu0 %v1520
  %1531 = vmatprep.subr.bf16.mxu0 0
  %1532 = vmatpush1.bf16.msra.mxu0 %v1519
  %1533 = vmatprep.subr.bf16.mxu0 0
  %1534 = vmatpush1.bf16.msra.mxu0 %v1518
  %1535 = vmatprep.subr.bf16.mxu0 0
  %1536 = vmatpush1.bf16.msra.mxu0 %v1517
  %1537 = vmatprep.subr.bf16.mxu0 0
  %1538 = vmatpush2.bf16.msra.mxu0 0
  %1539 = vmatprep.subr.bf16.mxu0 0
  %1540 = vmatpush2.bf16.msra.mxu0 0
  %1541 = vmatprep.subr.bf16.mxu0 0
  %1542 = vmatpush2.bf16.msra.mxu0 0
  %1543 = vmatprep.subr.bf16.mxu0 0
  %1544 = vmatpush2.bf16.msra.mxu0 0
  %1545 = vmatprep.subr.bf16.mxu0 0
  %1546 = vmatpush2.bf16.msra.mxu0 0
  %1547 = vmatprep.subr.bf16.mxu0 0
  %1548 = vmatpush2.bf16.msra.mxu0 0
  %1549 = vmatprep.subr.bf16.mxu0 0
  %1550 = vmatpush2.bf16.msra.mxu0 0
  %1551 = vmatprep.subr.bf16.mxu0 0
  %1552 = vmatpush2.bf16.msra.mxu0 0
  %1553 = vmatprep.mubr.bf16.mxu0 0
  %1554 = vmatmul.mubr.bf16.gmra.mxu0 %v84
  %v1555 = vpop.f32.mrf.mxu0
  %v1556 = vadd.f32 0.0, %v1555
  %v1557 = vpop.f32.mrf.mxu0
  %v1558 = vpop.f32.mrf.mxu0
  %v1559 = vadd.f32 0.0, %v1558
  %v1560 = vpop.f32.mrf.mxu0
  %1561 = vmatprep.mubr.bf16.mxu0 0
  %1562 = vmatmul.mubr.bf16.gmra.mxu0 %v87
  %v1563 = vpop.f32.mrf.mxu0
  %v1564 = vadd.f32 0.0, %v1563
  %v1565 = vpop.f32.mrf.mxu0
  %v1566 = vpop.f32.mrf.mxu0
  %v1567 = vadd.f32 0.0, %v1566
  %v1568 = vpop.f32.mrf.mxu0
  %1569 = vmatprep.mubr.bf16.mxu0 0
  %1570 = vmatmul.mubr.bf16.gmra.mxu0 %v90
  %v1571 = vpop.f32.mrf.mxu0
  %v1572 = vadd.f32 0.0, %v1571
  %v1573 = vpop.f32.mrf.mxu0
  %v1574 = vpop.f32.mrf.mxu0
  %v1575 = vadd.f32 0.0, %v1574
  %v1576 = vpop.f32.mrf.mxu0
  %1577 = vmatprep.mubr.bf16.mxu0 0
  %1578 = vmatmul.mubr.bf16.gmra.mxu0 %v93
  %v1579 = vpop.f32.mrf.mxu0
  %v1580 = vadd.f32 0.0, %v1579
  %v1581 = vpop.f32.mrf.mxu0
  %v1582 = vpop.f32.mrf.mxu0
  %v1583 = vadd.f32 0.0, %v1582
  %v1584 = vpop.f32.mrf.mxu0
  %1585 = vdwg.mxu0
  %1586 = vmatprep.subr.bf16.mxu0 0
  %1587 = vmatpush1.bf16.msra.mxu0 0
  %1588 = vmatprep.subr.bf16.mxu0 0
  %1589 = vmatpush1.bf16.msra.mxu0 0
  %1590 = vmatprep.subr.bf16.mxu0 0
  %1591 = vmatpush1.bf16.msra.mxu0 0
  %1592 = vmatprep.subr.bf16.mxu0 0
  %1593 = vmatpush1.bf16.msra.mxu0 0
  %1594 = vmatprep.subr.bf16.mxu0 0
  %1595 = vmatpush1.bf16.msra.mxu0 %v1520
  %1596 = vmatprep.subr.bf16.mxu0 0
  %1597 = vmatpush1.bf16.msra.mxu0 %v1519
  %1598 = vmatprep.subr.bf16.mxu0 0
  %1599 = vmatpush1.bf16.msra.mxu0 %v1518
  %1600 = vmatprep.subr.bf16.mxu0 0
  %1601 = vmatpush1.bf16.msra.mxu0 %v1517
  %1602 = vmatprep.subr.bf16.mxu0 0
  %1603 = vmatpush2.bf16.msra.mxu0 0
  %1604 = vmatprep.subr.bf16.mxu0 0
  %1605 = vmatpush2.bf16.msra.mxu0 0
  %1606 = vmatprep.subr.bf16.mxu0 0
  %1607 = vmatpush2.bf16.msra.mxu0 0
  %1608 = vmatprep.subr.bf16.mxu0 0
  %1609 = vmatpush2.bf16.msra.mxu0 0
  %1610 = vmatprep.subr.bf16.mxu0 0
  %1611 = vmatpush2.bf16.msra.mxu0 0
  %1612 = vmatprep.subr.bf16.mxu0 0
  %1613 = vmatpush2.bf16.msra.mxu0 0
  %1614 = vmatprep.subr.bf16.mxu0 0
  %1615 = vmatpush2.bf16.msra.mxu0 0
  %1616 = vmatprep.subr.bf16.mxu0 0
  %1617 = vmatpush2.bf16.msra.mxu0 0
  %1618 = vmatprep.mubr.bf16.mxu0 0
  %1619 = vmatmul.mubr.bf16.gmra.mxu0 %v181
  %v1620 = vpop.f32.mrf.mxu0
  %v1621 = vadd.f32 0.0, %v1620
  %v1622 = vpop.f32.mrf.mxu0
  %v1623 = vpop.f32.mrf.mxu0
  %v1624 = vadd.f32 0.0, %v1623
  %v1625 = vpop.f32.mrf.mxu0
  %1626 = vmatprep.mubr.bf16.mxu0 0
  %1627 = vmatmul.mubr.bf16.gmra.mxu0 %v184
  %v1628 = vpop.f32.mrf.mxu0
  %v1629 = vadd.f32 0.0, %v1628
  %v1630 = vpop.f32.mrf.mxu0
  %v1631 = vpop.f32.mrf.mxu0
  %v1632 = vadd.f32 0.0, %v1631
  %v1633 = vpop.f32.mrf.mxu0
  %1634 = vmatprep.mubr.bf16.mxu0 0
  %1635 = vmatmul.mubr.bf16.gmra.mxu0 %v187
  %v1636 = vpop.f32.mrf.mxu0
  %v1637 = vadd.f32 0.0, %v1636
  %v1638 = vpop.f32.mrf.mxu0
  %v1639 = vpop.f32.mrf.mxu0
  %v1640 = vadd.f32 0.0, %v1639
  %v1641 = vpop.f32.mrf.mxu0
  %1642 = vmatprep.mubr.bf16.mxu0 0
  %1643 = vmatmul.mubr.bf16.gmra.mxu0 %v190
  %v1644 = vpop.f32.mrf.mxu0
  %v1645 = vadd.f32 0.0, %v1644
  %v1646 = vpop.f32.mrf.mxu0
  %v1647 = vpop.f32.mrf.mxu0
  %v1648 = vadd.f32 0.0, %v1647
  %v1649 = vpop.f32.mrf.mxu0
  %1650 = vdwg.mxu0
  %1659 = vrot.lane.b32.xlu0 %v1556, 32
  %v1660 = vpop.permute.xlu0 %1659
  %1661 = vrot.lane.b32.xlu0 %v1559, 32
  %v1662 = vpop.permute.xlu0 %1661
  %1663 = vrot.lane.b32.xlu0 %v1564, 32
  %v1664 = vpop.permute.xlu0 %1663
  %1665 = vrot.lane.b32.xlu0 %v1567, 32
  %v1666 = vpop.permute.xlu0 %1665
  %1667 = vrot.lane.b32.xlu0 %v1572, 32
  %v1668 = vpop.permute.xlu0 %1667
  %1669 = vrot.lane.b32.xlu0 %v1575, 32
  %v1670 = vpop.permute.xlu0 %1669
  %1671 = vrot.lane.b32.xlu0 %v1580, 32
  %v1672 = vpop.permute.xlu0 %1671
  %1673 = vrot.lane.b32.xlu0 %v1583, 32
  %v1674 = vpop.permute.xlu0 %1673
  %1691 = vrot.lane.b32.xlu0 %v1621, 64
  %v1692 = vpop.permute.xlu0 %1691
  %1693 = vrot.lane.b32.xlu0 %v1624, 64
  %v1694 = vpop.permute.xlu0 %1693
  %1695 = vrot.lane.b32.xlu0 %v1629, 64
  %v1696 = vpop.permute.xlu0 %1695
  %1697 = vrot.lane.b32.xlu0 %v1632, 64
  %v1698 = vpop.permute.xlu0 %1697
  %1699 = vrot.lane.b32.xlu0 %v1637, 64
  %v1700 = vpop.permute.xlu0 %1699
  %1701 = vrot.lane.b32.xlu0 %v1640, 64
  %v1702 = vpop.permute.xlu0 %1701
  %1703 = vrot.lane.b32.xlu0 %v1645, 64
  %v1704 = vpop.permute.xlu0 %1703
  %1705 = vrot.lane.b32.xlu0 %v1648, 64
  %v1706 = vpop.permute.xlu0 %1705
  %v1715 = vsel %vm321, %v1495, %v1660
  %v1716 = vsel %vm321, %v1496, %v1662
  %v1717 = vsel %vm321, %v1497, %v1664
  %v1718 = vsel %vm321, %v1498, %v1666
  %v1719 = vsel %vm321, %v1499, %v1668
  %v1720 = vsel %vm321, %v1500, %v1670
  %v1721 = vsel %vm321, %v1501, %v1672
  %v1722 = vsel %vm321, %v1502, %v1674
  %v1723 = vsel %vm82, %v1715, %v1692
  %v1724 = vsel %vm82, %v1716, %v1694
  %v1725 = vsel %vm82, %v1717, %v1696
  %v1726 = vsel %vm82, %v1718, %v1698
  %v1727 = vsel %vm82, %v1719, %v1700
  %v1728 = vsel %vm82, %v1720, %v1702
  %v1729 = vsel %vm82, %v1721, %v1704
  %v1730 = vsel %vm82, %v1722, %v1706
  %v1731 = vpack.c.bf16 %v1724, %v1723
  %v1732 = vpack.c.bf16 %v1726, %v1725
  %v1733 = vpack.c.bf16 %v1728, %v1727
  %v1734 = vpack.c.bf16 %v1730, %v1729
  %v1735 = vlaneseq
  %v1736 = vshrl.u32 %v1735, 7
  %v1737 = vsub.s32 0, %v1736
  %v1738 = vrot.slane %v1516, %v1737
  %v1751 = vunpack.c.l.b16 %v1504
  %v1752 = vunpack.c.l.b16 %v1505
  %v1753 = vunpack.c.l.b16 %v1506
  %v1754 = vunpack.c.l.b16 %v1507
  %v1755 = vunpack.c.l.b16 %v1508
  %v1756 = vunpack.c.l.b16 %v1509
  %v1757 = vunpack.c.l.b16 %v1510
  %v1758 = vunpack.c.l.b16 %v1511
  %v1759 = vunpack.c.l.b16 %v1512
  %v1760 = vunpack.c.l.b16 %v1513
  %v1761 = vunpack.c.l.b16 %v1514
  %v1762 = vunpack.c.l.b16 %v1515
  %v1763 = vpack.c.b16 %v1752, %v1751
  %v1764 = vpack.c.b16 %v1754, %v1753
  %v1765 = vpack.c.b16 %v1756, %v1755
  %v1766 = vpack.c.b16 %v1758, %v1757
  %v1767 = vpack.c.b16 %v1760, %v1759
  %v1768 = vpack.c.b16 %v1762, %v1761
  %v1776 = vsel %vm382, %v1731, 0
  %v1779 = vsel %vm382, %v1732, 0
  %v1782 = vsel %vm382, %v1733, 0
  %v1785 = vsel %vm382, %v1734, 0
  %1787 = vmatprep.subr.bf16.mxu0 0
  %1788 = vmatpush1.bf16.msra.mxu0 0
  %1789 = vmatprep.subr.bf16.mxu0 0
  %1790 = vmatpush1.bf16.msra.mxu0 0
  %1791 = vmatprep.subr.bf16.mxu0 0
  %1792 = vmatpush1.bf16.msra.mxu0 %v1768
  %1793 = vmatprep.subr.bf16.mxu0 0
  %1794 = vmatpush1.bf16.msra.mxu0 %v1767
  %1795 = vmatprep.subr.bf16.mxu0 0
  %1796 = vmatpush1.bf16.msra.mxu0 %v1766
  %1797 = vmatprep.subr.bf16.mxu0 0
  %1798 = vmatpush1.bf16.msra.mxu0 %v1765
  %1799 = vmatprep.subr.bf16.mxu0 0
  %1800 = vmatpush1.bf16.msra.mxu0 %v1764
  %1801 = vmatprep.subr.bf16.mxu0 0
  %1802 = vmatpush1.bf16.msra.mxu0 %v1763
  %1803 = vmatprep.subr.bf16.mxu0 0
  %1804 = vmatpush2.bf16.msra.mxu0 0
  %1805 = vmatprep.subr.bf16.mxu0 0
  %1806 = vmatpush2.bf16.msra.mxu0 0
  %1807 = vmatprep.subr.bf16.mxu0 0
  %1808 = vmatpush2.bf16.msra.mxu0 0
  %1809 = vmatprep.subr.bf16.mxu0 0
  %1810 = vmatpush2.bf16.msra.mxu0 0
  %1811 = vmatprep.subr.bf16.mxu0 0
  %1812 = vmatpush2.bf16.msra.mxu0 0
  %1813 = vmatprep.subr.bf16.mxu0 0
  %1814 = vmatpush2.bf16.msra.mxu0 0
  %1815 = vmatprep.subr.bf16.mxu0 0
  %1816 = vmatpush2.bf16.msra.mxu0 0
  %1817 = vmatprep.subr.bf16.mxu0 0
  %1818 = vmatpush2.bf16.msra.mxu0 0
  %1819 = vmatprep.mubr.bf16.mxu0 0
  %1820 = vmatmul.mubr.bf16.gmra.mxu0 %v1776
  %v1821 = vpop.f32.mrf.mxu0
  %v1822 = vadd.f32 %v1738, %v1821
  %v1823 = vpop.f32.mrf.mxu0
  %v1824 = vpop.f32.mrf.mxu0
  %v1825 = vadd.f32 %v1738, %v1824
  %v1826 = vpop.f32.mrf.mxu0
  %1827 = vmatprep.mubr.bf16.mxu0 0
  %1828 = vmatmul.mubr.bf16.gmra.mxu0 %v1779
  %v1829 = vpop.f32.mrf.mxu0
  %v1830 = vadd.f32 %v1738, %v1829
  %v1831 = vpop.f32.mrf.mxu0
  %v1832 = vpop.f32.mrf.mxu0
  %v1833 = vadd.f32 %v1738, %v1832
  %v1834 = vpop.f32.mrf.mxu0
  %1835 = vmatprep.mubr.bf16.mxu0 0
  %1836 = vmatmul.mubr.bf16.gmra.mxu0 %v1782
  %v1837 = vpop.f32.mrf.mxu0
  %v1838 = vadd.f32 %v1738, %v1837
  %v1839 = vpop.f32.mrf.mxu0
  %v1840 = vpop.f32.mrf.mxu0
  %v1841 = vadd.f32 %v1738, %v1840
  %v1842 = vpop.f32.mrf.mxu0
  %1843 = vmatprep.mubr.bf16.mxu0 0
  %1844 = vmatmul.mubr.bf16.gmra.mxu0 %v1785
  %v1845 = vpop.f32.mrf.mxu0
  %v1846 = vadd.f32 %v1738, %v1845
  %v1847 = vpop.f32.mrf.mxu0
  %v1848 = vpop.f32.mrf.mxu0
  %v1849 = vadd.f32 %v1738, %v1848
  %v1850 = vpop.f32.mrf.mxu0
  %1851 = vdwg.mxu0
  %v1852 = vmul.f32 %v1822, %v1822
  %v1853 = vmul.f32 %v1825, %v1825
  %v1854 = vmul.f32 %v1830, %v1830
  %v1855 = vmul.f32 %v1833, %v1833
  %v1856 = vmul.f32 %v1838, %v1838
  %v1857 = vmul.f32 %v1841, %v1841
  %v1858 = vmul.f32 %v1846, %v1846
  %v1859 = vmul.f32 %v1849, %v1849
  %v1860 = vsel %vm321, %v1852, 0.0
  %1861 = vadd.xlane.f32.xlu0 %v1860
  %v1862 = vpop.xlane.xlu0 %1861
  %v1863 = vsel %vm321, %v1853, 0.0
  %1864 = vadd.xlane.f32.xlu0 %v1863
  %v1865 = vpop.xlane.xlu0 %1864
  %v1866 = vsel %vm321, %v1854, 0.0
  %1867 = vadd.xlane.f32.xlu0 %v1866
  %v1868 = vpop.xlane.xlu0 %1867
  %v1869 = vsel %vm321, %v1855, 0.0
  %1870 = vadd.xlane.f32.xlu0 %v1869
  %v1871 = vpop.xlane.xlu0 %1870
  %v1872 = vsel %vm321, %v1856, 0.0
  %1873 = vadd.xlane.f32.xlu0 %v1872
  %v1874 = vpop.xlane.xlu0 %1873
  %v1875 = vsel %vm321, %v1857, 0.0
  %1876 = vadd.xlane.f32.xlu0 %v1875
  %v1877 = vpop.xlane.xlu0 %1876
  %v1878 = vsel %vm321, %v1858, 0.0
  %1879 = vadd.xlane.f32.xlu0 %v1878
  %v1880 = vpop.xlane.xlu0 %1879
  %v1881 = vsel %vm321, %v1859, 0.0
  %1882 = vadd.xlane.f32.xlu0 %v1881
  %v1883 = vpop.xlane.xlu0 %1882
  %v1884 = vmax.f32 %v1862, 1e-24
  %v1885 = vmax.f32 %v1865, 1e-24
  %v1886 = vmax.f32 %v1868, 1e-24
  %v1887 = vmax.f32 %v1871, 1e-24
  %v1888 = vmax.f32 %v1874, 1e-24
  %v1889 = vmax.f32 %v1877, 1e-24
  %v1890 = vmax.f32 %v1880, 1e-24
  %v1891 = vmax.f32 %v1883, 1e-24
  %v1892 = vrsqrt.pop %v1884
  %v1893 = vrsqrt.pop %v1885
  %v1894 = vrsqrt.pop %v1886
  %v1895 = vrsqrt.pop %v1887
  %v1896 = vrsqrt.pop %v1888
  %v1897 = vrsqrt.pop %v1889
  %v1898 = vrsqrt.pop %v1890
  %v1899 = vrsqrt.pop %v1891
  %v1900 = vmul.f32 %v1822, %v1892
  %v1901 = vmul.f32 %v1825, %v1893
  %v1902 = vmul.f32 %v1830, %v1894
  %v1903 = vmul.f32 %v1833, %v1895
  %v1904 = vmul.f32 %v1838, %v1896
  %v1905 = vmul.f32 %v1841, %v1897
  %v1906 = vmul.f32 %v1846, %v1898
  %v1907 = vmul.f32 %v1849, %v1899
  %v1908 = vld [vmem:[%s4 + $0x10] sm:$0xff]
  %v1909 = vld [vmem:[%s4 + $0x18] sm:$0xff]
  %v1910 = vld [vmem:[%s4 + $0x20] sm:$0xff]
  %v1911 = vld [vmem:[%s4 + $0x28] sm:$0xff]
  %v1912 = vpack.c.bf16 %v1909, %v1908
  %v1913 = vpack.c.bf16 %v1911, %v1910
  %v1914 = vpack.c.bf16 %v1901, %v1900
  %v1915 = vpack.c.bf16 %v1903, %v1902
  %v1916 = vpack.c.bf16 %v1905, %v1904
  %v1917 = vpack.c.bf16 %v1907, %v1906
  %v1918 = vld [vmem:[%s4 + $0xa] sm:$0x1]
  %v1919 = vlaneseq
  %v1920 = vshrl.u32 %v1919, 7
  %v1921 = vsub.s32 0, %v1920
  %v1922 = vrot.slane %v1918, %v1921
  %v1924 = vsel %vm321, %v1914, 0
  %v1927 = vsel %vm321, %v1915, 0
  %v1930 = vsel %vm321, %v1916, 0
  %v1933 = vsel %vm321, %v1917, 0
  %1935 = vmatprep.subr.bf16.mxu0 0
  %1936 = vmatpush1.bf16.msra.mxu0 0
  %1937 = vmatprep.subr.bf16.mxu0 0
  %1938 = vmatpush1.bf16.msra.mxu0 0
  %1939 = vmatprep.subr.bf16.mxu0 0
  %1940 = vmatpush1.bf16.msra.mxu0 0
  %1941 = vmatprep.subr.bf16.mxu0 0
  %1942 = vmatpush1.bf16.msra.mxu0 0
  %1943 = vmatprep.subr.bf16.mxu0 0
  %1944 = vmatpush1.bf16.msra.mxu0 0
  %1945 = vmatprep.subr.bf16.mxu0 0
  %1946 = vmatpush1.bf16.msra.mxu0 0
  %1947 = vmatprep.subr.bf16.mxu0 0
  %1948 = vmatpush1.bf16.msra.mxu0 %v1913
  %1949 = vmatprep.subr.bf16.mxu0 0
  %1950 = vmatpush1.bf16.msra.mxu0 %v1912
  %1951 = vmatprep.subr.bf16.mxu0 0
  %1952 = vmatpush2.bf16.msra.mxu0 0
  %1953 = vmatprep.subr.bf16.mxu0 0
  %1954 = vmatpush2.bf16.msra.mxu0 0
  %1955 = vmatprep.subr.bf16.mxu0 0
  %1956 = vmatpush2.bf16.msra.mxu0 0
  %1957 = vmatprep.subr.bf16.mxu0 0
  %1958 = vmatpush2.bf16.msra.mxu0 0
  %1959 = vmatprep.subr.bf16.mxu0 0
  %1960 = vmatpush2.bf16.msra.mxu0 0
  %1961 = vmatprep.subr.bf16.mxu0 0
  %1962 = vmatpush2.bf16.msra.mxu0 0
  %1963 = vmatprep.subr.bf16.mxu0 0
  %1964 = vmatpush2.bf16.msra.mxu0 0
  %1965 = vmatprep.subr.bf16.mxu0 0
  %1966 = vmatpush2.bf16.msra.mxu0 0
  %1967 = vmatprep.mubr.bf16.mxu0 0
  %1968 = vmatmul.mubr.bf16.gmra.mxu0 %v1924
  %v1969 = vpop.f32.mrf.mxu0
  %v1970 = vadd.f32 %v1922, %v1969
  %v1971 = vpop.f32.mrf.mxu0
  %v1972 = vpop.f32.mrf.mxu0
  %v1973 = vadd.f32 %v1922, %v1972
  %v1974 = vpop.f32.mrf.mxu0
  %1975 = vmatprep.mubr.bf16.mxu0 0
  %1976 = vmatmul.mubr.bf16.gmra.mxu0 %v1927
  %v1977 = vpop.f32.mrf.mxu0
  %v1978 = vadd.f32 %v1922, %v1977
  %v1979 = vpop.f32.mrf.mxu0
  %v1980 = vpop.f32.mrf.mxu0
  %v1981 = vadd.f32 %v1922, %v1980
  %v1982 = vpop.f32.mrf.mxu0
  %1983 = vmatprep.mubr.bf16.mxu0 0
  %1984 = vmatmul.mubr.bf16.gmra.mxu0 %v1930
  %v1985 = vpop.f32.mrf.mxu0
  %v1986 = vadd.f32 %v1922, %v1985
  %v1987 = vpop.f32.mrf.mxu0
  %v1988 = vpop.f32.mrf.mxu0
  %v1989 = vadd.f32 %v1922, %v1988
  %v1990 = vpop.f32.mrf.mxu0
  %1991 = vmatprep.mubr.bf16.mxu0 0
  %1992 = vmatmul.mubr.bf16.gmra.mxu0 %v1933
  %v1993 = vpop.f32.mrf.mxu0
  %v1994 = vadd.f32 %v1922, %v1993
  %v1995 = vpop.f32.mrf.mxu0
  %v1996 = vpop.f32.mrf.mxu0
  %v1997 = vadd.f32 %v1922, %v1996
  %v1998 = vpop.f32.mrf.mxu0
  %1999 = vdwg.mxu0
  %vm2000 = vcmask 23552
  %2001 = vst.msk [vmem:[%s5] sm:$0xff] %vm2000, %v1970
  %2002 = vst.msk [vmem:[%s5 + $0x8] sm:$0xff] %vm2000, %v1973
  %2003 = vst.msk [vmem:[%s5 + $0x10] sm:$0xff] %vm2000, %v1978
  %2004 = vst.msk [vmem:[%s5 + $0x18] sm:$0xff] %vm2000, %v1981
  %2005 = vst.msk [vmem:[%s5 + $0x20] sm:$0xff] %vm2000, %v1986
  %2006 = vst.msk [vmem:[%s5 + $0x28] sm:$0xff] %vm2000, %v1989
  %2007 = vst.msk [vmem:[%s5 + $0x30] sm:$0xff] %vm2000, %v1994
  %2008 = vst.msk [vmem:[%s5 + $0x38] sm:$0xff] %vm2000, %v1997
  // Predicated region
  $region22: #{tpu_custom_call.1} parent=0 // pred_check
    _
  $region23: #{tpu_custom_call.1} parent=0 // pred_check_branch
    %2010 = sbr.rel (0) target = $region25
  $region24: #{tpu_custom_call.1} parent=0 // pred_region
    _
  $region25: #{tpu_custom_call.1} parent=0 // pred_fallthru
    _
  // Predicated region
  $region26: #{tpu_custom_call.1} parent=0 // pred_check
    _
  $region27: #{tpu_custom_call.1} parent=0 // pred_check_branch
    %2012 = sbr.rel (0) target = $region29
  $region28: #{tpu_custom_call.1} parent=0 // pred_region
    _
  $region29: #{tpu_custom_call.1} parent=0 // pred_fallthru
    _

// kernel: tpu_custom_call.1
$region0: #{tpu_custom_call.1}
  #allocation0 [shape = 'u32[]', space=smem, size = 0x4, offset = 0x4, fixed_abs, tag = 'smem constant byte address 0x4 - core index']
  #allocation1 [shape = 'u32[144,128]{1,0:T(1,128)}', space=vmem, size = 0x12000, scoped, tag = 'internal scratch']
  %s0 = inlined_call_operand.vmem [shape: f32[64,32], index: 0, kind: input, shape index: {}]
  %s1 = inlined_call_operand.vmem [shape: bf16[64,64], index: 1, kind: input, shape index: {}]
  %s2 = inlined_call_operand.vmem [shape: bf16[64,64], index: 2, kind: input, shape index: {}]
  %s3 = inlined_call_operand.vmem [shape: bf16[4,96,32], index: 3, kind: input, shape index: {}]
  %s4 = inlined_call_operand.vmem [shape: f32[48,128], index: 4, kind: input, shape index: {}]
  %s5 = inlined_call_operand.vmem [shape: f32[64,3], index: 5, kind: output, shape index: {}]
  %s6 = sld [smem:[#allocation0]]
  $region30: #{tpu_custom_call.1} parent=0
    _
  %s8 = ssub.s32 1, %s6
  %s9 = scalar_select 0, %s8, %s6
  // Predicated region
  $region2: #{tpu_custom_call.1} parent=0 // pred_check
    _
  $region3: #{tpu_custom_call.1} parent=0 // pred_check_branch
    %11 = sbr.rel (0) target = $region5
  $region4: #{tpu_custom_call.1} parent=0 // pred_region
    _
  $region5: #{tpu_custom_call.1} parent=0 // pred_fallthru
    _
  // Predicated region
  $region6: #{tpu_custom_call.1} parent=0 // pred_check
    _
  $region7: #{tpu_custom_call.1} parent=0 // pred_check_branch
    %13 = sbr.rel (0) target = $region9
  $region8: #{tpu_custom_call.1} parent=0 // pred_region
    _
  $region9: #{tpu_custom_call.1} parent=0 // pred_fallthru
    _
  // Predicated region
  $region10: #{tpu_custom_call.1} parent=0 // pred_check
    _
  $region11: #{tpu_custom_call.1} parent=0 // pred_check_branch
    %15 = sbr.rel (0) target = $region13
  $region12: #{tpu_custom_call.1} parent=0 // pred_region
    _
  $region13: #{tpu_custom_call.1} parent=0 // pred_fallthru
    _
  // Predicated region
  $region14: #{tpu_custom_call.1} parent=0 // pred_check
    _
  $region15: #{tpu_custom_call.1} parent=0 // pred_check_branch
    %17 = sbr.rel (0) target = $region17
  $region16: #{tpu_custom_call.1} parent=0 // pred_region
    _
  $region17: #{tpu_custom_call.1} parent=0 // pred_fallthru
    _
  // Predicated region
  $region18: #{tpu_custom_call.1} parent=0 // pred_check
    _
  $region19: #{tpu_custom_call.1} parent=0 // pred_check_branch
    %19 = sbr.rel (0) target = $region21
  $region20: #{tpu_custom_call.1} parent=0 // pred_region
    _
  $region21: #{tpu_custom_call.1} parent=0 // pred_fallthru
    _
  %v21 = vld [vmem:[%s1] sm:$0xf]
  %v22 = vld [vmem:[%s1 + $0x4] sm:$0xf]
  %v23 = vld [vmem:[%s1 + $0x8] sm:$0xf]
  %v24 = vld [vmem:[%s1 + $0xc] sm:$0xf]
  %v25 = vld [vmem:[%s1 + $0x10] sm:$0xf]
  %v26 = vld [vmem:[%s1 + $0x14] sm:$0xf]
  %v27 = vld [vmem:[%s1 + $0x18] sm:$0xf]
  %v28 = vld [vmem:[%s1 + $0x1c] sm:$0xf]
  %v29 = vld [vmem:[%s2] sm:$0xf]
  %v30 = vld [vmem:[%s2 + $0x4] sm:$0xf]
  %v31 = vld [vmem:[%s2 + $0x8] sm:$0xf]
  %v32 = vld [vmem:[%s2 + $0xc] sm:$0xf]
  %v33 = vld [vmem:[%s2 + $0x10] sm:$0xf]
  %v34 = vld [vmem:[%s2 + $0x14] sm:$0xf]
  %v35 = vld [vmem:[%s2 + $0x18] sm:$0xf]
  %v36 = vld [vmem:[%s2 + $0x1c] sm:$0xf]
  %v37 = vld [vmem:[%s0] sm:$0xff]
  %v38 = vld [vmem:[%s0 + $0x8] sm:$0xff]
  %v39 = vld [vmem:[%s0 + $0x10] sm:$0xff]
  %v40 = vld [vmem:[%s0 + $0x18] sm:$0xff]
  %v41 = vld [vmem:[%s0 + $0x20] sm:$0xff]
  %v42 = vld [vmem:[%s0 + $0x28] sm:$0xff]
  %v43 = vld [vmem:[%s0 + $0x30] sm:$0xff]
  %v44 = vld [vmem:[%s0 + $0x38] sm:$0xff]
  %v45 = vld [vmem:[%s3] sm:$0xf]
  %v46 = vld [vmem:[%s3 + $0x4] sm:$0xf]
  %v47 = vld [vmem:[%s3 + $0x8] sm:$0xf]
  %v48 = vld [vmem:[%s3 + $0xc] sm:$0xf]
  %v49 = vld [vmem:[%s3 + $0x10] sm:$0xf]
  %v50 = vld [vmem:[%s3 + $0x14] sm:$0xf]
  %v51 = vld [vmem:[%s3 + $0x18] sm:$0xf]
  %v52 = vld [vmem:[%s3 + $0x1c] sm:$0xf]
  %v53 = vld [vmem:[%s3 + $0x20] sm:$0xf]
  %v54 = vld [vmem:[%s3 + $0x24] sm:$0xf]
  %v55 = vld [vmem:[%s3 + $0x28] sm:$0xf]
  %v56 = vld [vmem:[%s3 + $0x2c] sm:$0xf]
  %v57 = vld [vmem:[%s4] sm:$0x1]
  %v58 = vpack.c.bf16 %v38, %v37
  %v59 = vpack.c.bf16 %v40, %v39
  %v60 = vpack.c.bf16 %v42, %v41
  %v61 = vpack.c.bf16 %v44, %v43
  %v70 = vunpack.c.l.b16 %v21
  %v71 = vunpack.c.l.b16 %v22
  %v72 = vunpack.c.l.b16 %v23
  %v73 = vunpack.c.l.b16 %v24
  %v74 = vunpack.c.l.b16 %v25
  %v75 = vunpack.c.l.b16 %v26
  %v76 = vunpack.c.l.b16 %v27
  %v77 = vunpack.c.l.b16 %v28
  %v78 = vpack.c.b16 %v71, %v70
  %v79 = vpack.c.b16 %v73, %v72
  %v80 = vpack.c.b16 %v75, %v74
  %v81 = vpack.c.b16 %v77, %v76
  %vm82 = vcmask 523264
  %v84 = vsel %vm82, %v78, 0
  %v87 = vsel %vm82, %v79, 0
  %v90 = vsel %vm82, %v80, 0
  %v93 = vsel %vm82, %v81, 0
  %95 = vmatprep.subr.bf16.mxu0 0
  %96 = vmatpush1.bf16.msra.mxu0 0
  %97 = vmatprep.subr.bf16.mxu0 0
  %98 = vmatpush1.bf16.msra.mxu0 0
  %99 = vmatprep.subr.bf16.mxu0 0
  %100 = vmatpush1.bf16.msra.mxu0 0
  %101 = vmatprep.subr.bf16.mxu0 0
  %102 = vmatpush1.bf16.msra.mxu0 0
  %103 = vmatprep.subr.bf16.mxu0 0
  %104 = vmatpush1.bf16.msra.mxu0 %v61
  %105 = vmatprep.subr.bf16.mxu0 0
  %106 = vmatpush1.bf16.msra.mxu0 %v60
  %107 = vmatprep.subr.bf16.mxu0 0
  %108 = vmatpush1.bf16.msra.mxu0 %v59
  %109 = vmatprep.subr.bf16.mxu0 0
  %110 = vmatpush1.bf16.msra.mxu0 %v58
  %111 = vmatprep.subr.bf16.mxu0 0
  %112 = vmatpush2.bf16.msra.mxu0 0
  %113 = vmatprep.subr.bf16.mxu0 0
  %114 = vmatpush2.bf16.msra.mxu0 0
  %115 = vmatprep.subr.bf16.mxu0 0
  %116 = vmatpush2.bf16.msra.mxu0 0
  %117 = vmatprep.subr.bf16.mxu0 0
  %118 = vmatpush2.bf16.msra.mxu0 0
  %119 = vmatprep.subr.bf16.mxu0 0
  %120 = vmatpush2.bf16.msra.mxu0 0
  %121 = vmatprep.subr.bf16.mxu0 0
  %122 = vmatpush2.bf16.msra.mxu0 0
  %123 = vmatprep.subr.bf16.mxu0 0
  %124 = vmatpush2.bf16.msra.mxu0 0
  %125 = vmatprep.subr.bf16.mxu0 0
  %126 = vmatpush2.bf16.msra.mxu0 0
  %127 = vmatprep.mubr.bf16.mxu0 0
  %128 = vmatmul.mubr.bf16.gmra.mxu0 %v84
  %v129 = vpop.f32.mrf.mxu0
  %v130 = vadd.f32 0.0, %v129
  %v131 = vpop.f32.mrf.mxu0
  %v132 = vpop.f32.mrf.mxu0
  %v133 = vadd.f32 0.0, %v132
  %v134 = vpop.f32.mrf.mxu0
  %135 = vmatprep.mubr.bf16.mxu0 0
  %136 = vmatmul.mubr.bf16.gmra.mxu0 %v87
  %v137 = vpop.f32.mrf.mxu0
  %v138 = vadd.f32 0.0, %v137
  %v139 = vpop.f32.mrf.mxu0
  %v140 = vpop.f32.mrf.mxu0
  %v141 = vadd.f32 0.0, %v140
  %v142 = vpop.f32.mrf.mxu0
  %143 = vmatprep.mubr.bf16.mxu0 0
  %144 = vmatmul.mubr.bf16.gmra.mxu0 %v90
  %v145 = vpop.f32.mrf.mxu0
  %v146 = vadd.f32 0.0, %v145
  %v147 = vpop.f32.mrf.mxu0
  %v148 = vpop.f32.mrf.mxu0
  %v149 = vadd.f32 0.0, %v148
  %v150 = vpop.f32.mrf.mxu0
  %151 = vmatprep.mubr.bf16.mxu0 0
  %152 = vmatmul.mubr.bf16.gmra.mxu0 %v93
  %v153 = vpop.f32.mrf.mxu0
  %v154 = vadd.f32 0.0, %v153
  %v155 = vpop.f32.mrf.mxu0
  %v156 = vpop.f32.mrf.mxu0
  %v157 = vadd.f32 0.0, %v156
  %v158 = vpop.f32.mrf.mxu0
  %159 = vdwg.mxu0
  %v168 = vunpack.c.l.b16 %v29
  %v169 = vunpack.c.l.b16 %v30
  %v170 = vunpack.c.l.b16 %v31
  %v171 = vunpack.c.l.b16 %v32
  %v172 = vunpack.c.l.b16 %v33
  %v173 = vunpack.c.l.b16 %v34
  %v174 = vunpack.c.l.b16 %v35
  %v175 = vunpack.c.l.b16 %v36
  %v176 = vpack.c.b16 %v169, %v168
  %v177 = vpack.c.b16 %v171, %v170
  %v178 = vpack.c.b16 %v173, %v172
  %v179 = vpack.c.b16 %v175, %v174
  %v181 = vsel %vm82, %v176, 0
  %v184 = vsel %vm82, %v177, 0
  %v187 = vsel %vm82, %v178, 0
  %v190 = vsel %vm82, %v179, 0
  %192 = vmatprep.subr.bf16.mxu0 0
  %193 = vmatpush1.bf16.msra.mxu0 0
  %194 = vmatprep.subr.bf16.mxu0 0
  %195 = vmatpush1.bf16.msra.mxu0 0
  %196 = vmatprep.subr.bf16.mxu0 0
  %197 = vmatpush1.bf16.msra.mxu0 0
  %198 = vmatprep.subr.bf16.mxu0 0
  %199 = vmatpush1.bf16.msra.mxu0 0
  %200 = vmatprep.subr.bf16.mxu0 0
  %201 = vmatpush1.bf16.msra.mxu0 %v61
  %202 = vmatprep.subr.bf16.mxu0 0
  %203 = vmatpush1.bf16.msra.mxu0 %v60
  %204 = vmatprep.subr.bf16.mxu0 0
  %205 = vmatpush1.bf16.msra.mxu0 %v59
  %206 = vmatprep.subr.bf16.mxu0 0
  %207 = vmatpush1.bf16.msra.mxu0 %v58
  %208 = vmatprep.subr.bf16.mxu0 0
  %209 = vmatpush2.bf16.msra.mxu0 0
  %210 = vmatprep.subr.bf16.mxu0 0
  %211 = vmatpush2.bf16.msra.mxu0 0
  %212 = vmatprep.subr.bf16.mxu0 0
  %213 = vmatpush2.bf16.msra.mxu0 0
  %214 = vmatprep.subr.bf16.mxu0 0
  %215 = vmatpush2.bf16.msra.mxu0 0
  %216 = vmatprep.subr.bf16.mxu0 0
  %217 = vmatpush2.bf16.msra.mxu0 0
  %218 = vmatprep.subr.bf16.mxu0 0
  %219 = vmatpush2.bf16.msra.mxu0 0
  %220 = vmatprep.subr.bf16.mxu0 0
  %221 = vmatpush2.bf16.msra.mxu0 0
  %222 = vmatprep.subr.bf16.mxu0 0
  %223 = vmatpush2.bf16.msra.mxu0 0
  %224 = vmatprep.mubr.bf16.mxu0 0
  %225 = vmatmul.mubr.bf16.gmra.mxu0 %v181
  %v226 = vpop.f32.mrf.mxu0
  %v227 = vadd.f32 0.0, %v226
  %v228 = vpop.f32.mrf.mxu0
  %v229 = vpop.f32.mrf.mxu0
  %v230 = vadd.f32 0.0, %v229
  %v231 = vpop.f32.mrf.mxu0
  %232 = vmatprep.mubr.bf16.mxu0 0
  %233 = vmatmul.mubr.bf16.gmra.mxu0 %v184
  %v234 = vpop.f32.mrf.mxu0
  %v235 = vadd.f32 0.0, %v234
  %v236 = vpop.f32.mrf.mxu0
  %v237 = vpop.f32.mrf.mxu0
  %v238 = vadd.f32 0.0, %v237
  %v239 = vpop.f32.mrf.mxu0
  %240 = vmatprep.mubr.bf16.mxu0 0
  %241 = vmatmul.mubr.bf16.gmra.mxu0 %v187
  %v242 = vpop.f32.mrf.mxu0
  %v243 = vadd.f32 0.0, %v242
  %v244 = vpop.f32.mrf.mxu0
  %v245 = vpop.f32.mrf.mxu0
  %v246 = vadd.f32 0.0, %v245
  %v247 = vpop.f32.mrf.mxu0
  %248 = vmatprep.mubr.bf16.mxu0 0
  %249 = vmatmul.mubr.bf16.gmra.mxu0 %v190
  %v250 = vpop.f32.mrf.mxu0
  %v251 = vadd.f32 0.0, %v250
  %v252 = vpop.f32.mrf.mxu0
  %v253 = vpop.f32.mrf.mxu0
  %v254 = vadd.f32 0.0, %v253
  %v255 = vpop.f32.mrf.mxu0
  %256 = vdwg.mxu0
  %v257 = vpack.c.bf16 %v133, %v130
  %v258 = vpack.c.bf16 %v141, %v138
  %v259 = vpack.c.bf16 %v149, %v146
  %v260 = vpack.c.bf16 %v157, %v154
  %v265 = vunpack.c.l.b16 %v49
  %v266 = vunpack.c.l.b16 %v50
  %v267 = vunpack.c.l.b16 %v51
  %v268 = vunpack.c.l.b16 %v52
  %v269 = vpack.c.b16 %v266, %v265
  %v270 = vpack.c.b16 %v268, %v267
  %vm273 = vcmask 261120
  %v275 = vsel %vm273, %v257, 0
  %v278 = vsel %vm273, %v258, 0
  %v281 = vsel %vm273, %v259, 0
  %v284 = vsel %vm273, %v260, 0
  %286 = vmatprep.subr.bf16.mxu0 0
  %287 = vmatpush1.bf16.msra.mxu0 0
  %288 = vmatprep.subr.bf16.mxu0 0
  %289 = vmatpush1.bf16.msra.mxu0 0
  %290 = vmatprep.subr.bf16.mxu0 0
  %291 = vmatpush1.bf16.msra.mxu0 0
  %292 = vmatprep.subr.bf16.mxu0 0
  %293 = vmatpush1.bf16.msra.mxu0 0
  %294 = vmatprep.subr.bf16.mxu0 0
  %295 = vmatpush1.bf16.msra.mxu0 0
  %296 = vmatprep.subr.bf16.mxu0 0
  %297 = vmatpush1.bf16.msra.mxu0 0
  %298 = vmatprep.subr.bf16.mxu0 0
  %299 = vmatpush1.bf16.msra.mxu0 %v270
  %300 = vmatprep.subr.bf16.mxu0 0
  %301 = vmatpush1.bf16.msra.mxu0 %v269
  %302 = vmatprep.subr.bf16.mxu0 0
  %303 = vmatpush2.bf16.msra.mxu0 0
  %304 = vmatprep.subr.bf16.mxu0 0
  %305 = vmatpush2.bf16.msra.mxu0 0
  %306 = vmatprep.subr.bf16.mxu0 0
  %307 = vmatpush2.bf16.msra.mxu0 0
  %308 = vmatprep.subr.bf16.mxu0 0
  %309 = vmatpush2.bf16.msra.mxu0 0
  %310 = vmatprep.subr.bf16.mxu0 0
  %311 = vmatpush2.bf16.msra.mxu0 0
  %312 = vmatprep.subr.bf16.mxu0 0
  %313 = vmatpush2.bf16.msra.mxu0 0
  %314 = vmatprep.subr.bf16.mxu0 0
  %315 = vmatpush2.bf16.msra.mxu0 0
  %316 = vmatprep.subr.bf16.mxu0 0
  %317 = vmatpush2.bf16.msra.mxu0 0
  %318 = vmatprep.mubr.bf16.mxu0 0
  %319 = vmatmul.mubr.bf16.gmra.mxu0 %v275
  %v320 = vpop.f32.mrf.mxu0
  %v321 = vadd.f32 0.0, %v320
  %v322 = vpop.f32.mrf.mxu0
  %v323 = vpop.f32.mrf.mxu0
  %v324 = vadd.f32 0.0, %v323
  %v325 = vpop.f32.mrf.mxu0
  %326 = vmatprep.mubr.bf16.mxu0 0
  %327 = vmatmul.mubr.bf16.gmra.mxu0 %v278
  %v328 = vpop.f32.mrf.mxu0
  %v329 = vadd.f32 0.0, %v328
  %v330 = vpop.f32.mrf.mxu0
  %v331 = vpop.f32.mrf.mxu0
  %v332 = vadd.f32 0.0, %v331
  %v333 = vpop.f32.mrf.mxu0
  %334 = vmatprep.mubr.bf16.mxu0 0
  %335 = vmatmul.mubr.bf16.gmra.mxu0 %v281
  %v336 = vpop.f32.mrf.mxu0
  %v337 = vadd.f32 0.0, %v336
  %v338 = vpop.f32.mrf.mxu0
  %v339 = vpop.f32.mrf.mxu0
  %v340 = vadd.f32 0.0, %v339
  %v341 = vpop.f32.mrf.mxu0
  %342 = vmatprep.mubr.bf16.mxu0 0
  %343 = vmatmul.mubr.bf16.gmra.mxu0 %v284
  %v344 = vpop.f32.mrf.mxu0
  %v345 = vadd.f32 0.0, %v344
  %v346 = vpop.f32.mrf.mxu0
  %v347 = vpop.f32.mrf.mxu0
  %v348 = vadd.f32 0.0, %v347
  %v349 = vpop.f32.mrf.mxu0
  %350 = vdwg.mxu0
  %v355 = vunpack.c.l.b16 %v45
  %v356 = vunpack.c.l.b16 %v46
  %v357 = vunpack.c.l.b16 %v47
  %v358 = vunpack.c.l.b16 %v48
  %v359 = vpack.c.b16 %v356, %v355
  %v360 = vpack.c.b16 %v358, %v357
  %v364 = vsel %vm273, %v58, 0
  %v367 = vsel %vm273, %v59, 0
  %v370 = vsel %vm273, %v60, 0
  %v373 = vsel %vm273, %v61, 0
  %375 = vmatprep.subr.bf16.mxu0 0
  %376 = vmatpush1.bf16.msra.mxu0 0
  %377 = vmatprep.subr.bf16.mxu0 0
  %378 = vmatpush1.bf16.msra.mxu0 0
  %379 = vmatprep.subr.bf16.mxu0 0
  %380 = vmatpush1.bf16.msra.mxu0 0
  %381 = vmatprep.subr.bf16.mxu0 0
  %382 = vmatpush1.bf16.msra.mxu0 0
  %383 = vmatprep.subr.bf16.mxu0 0
  %384 = vmatpush1.bf16.msra.mxu0 0
  %385 = vmatprep.subr.bf16.mxu0 0
  %386 = vmatpush1.bf16.msra.mxu0 0
  %387 = vmatprep.subr.bf16.mxu0 0
  %388 = vmatpush1.bf16.msra.mxu0 %v360
  %389 = vmatprep.subr.bf16.mxu0 0
  %390 = vmatpush1.bf16.msra.mxu0 %v359
  %391 = vmatprep.subr.bf16.mxu0 0
  %392 = vmatpush2.bf16.msra.mxu0 0
  %393 = vmatprep.subr.bf16.mxu0 0
  %394 = vmatpush2.bf16.msra.mxu0 0
  %395 = vmatprep.subr.bf16.mxu0 0
  %396 = vmatpush2.bf16.msra.mxu0 0
  %397 = vmatprep.subr.bf16.mxu0 0
  %398 = vmatpush2.bf16.msra.mxu0 0
  %399 = vmatprep.subr.bf16.mxu0 0
  %400 = vmatpush2.bf16.msra.mxu0 0
  %401 = vmatprep.subr.bf16.mxu0 0
  %402 = vmatpush2.bf16.msra.mxu0 0
  %403 = vmatprep.subr.bf16.mxu0 0
  %404 = vmatpush2.bf16.msra.mxu0 0
  %405 = vmatprep.subr.bf16.mxu0 0
  %406 = vmatpush2.bf16.msra.mxu0 0
  %407 = vmatprep.mubr.bf16.mxu0 0
  %408 = vmatmul.mubr.bf16.gmra.mxu0 %v364
  %v409 = vpop.f32.mrf.mxu0
  %v410 = vadd.f32 %v321, %v409
  %v411 = vpop.f32.mrf.mxu0
  %v412 = vpop.f32.mrf.mxu0
  %v413 = vadd.f32 %v324, %v412
  %v414 = vpop.f32.mrf.mxu0
  %415 = vmatprep.mubr.bf16.mxu0 0
  %416 = vmatmul.mubr.bf16.gmra.mxu0 %v367
  %v417 = vpop.f32.mrf.mxu0
  %v418 = vadd.f32 %v329, %v417
  %v419 = vpop.f32.mrf.mxu0
  %v420 = vpop.f32.mrf.mxu0
  %v421 = vadd.f32 %v332, %v420
  %v422 = vpop.f32.mrf.mxu0
  %423 = vmatprep.mubr.bf16.mxu0 0
  %424 = vmatmul.mubr.bf16.gmra.mxu0 %v370
  %v425 = vpop.f32.mrf.mxu0
  %v426 = vadd.f32 %v337, %v425
  %v427 = vpop.f32.mrf.mxu0
  %v428 = vpop.f32.mrf.mxu0
  %v429 = vadd.f32 %v340, %v428
  %v430 = vpop.f32.mrf.mxu0
  %431 = vmatprep.mubr.bf16.mxu0 0
  %432 = vmatmul.mubr.bf16.gmra.mxu0 %v373
  %v433 = vpop.f32.mrf.mxu0
  %v434 = vadd.f32 %v345, %v433
  %v435 = vpop.f32.mrf.mxu0
  %v436 = vpop.f32.mrf.mxu0
  %v437 = vadd.f32 %v348, %v436
  %v438 = vpop.f32.mrf.mxu0
  %439 = vdwg.mxu0
  %v440 = vpack.c.bf16 %v230, %v227
  %v441 = vpack.c.bf16 %v238, %v235
  %v442 = vpack.c.bf16 %v246, %v243
  %v443 = vpack.c.bf16 %v254, %v251
  %v448 = vunpack.c.l.b16 %v53
  %v449 = vunpack.c.l.b16 %v54
  %v450 = vunpack.c.l.b16 %v55
  %v451 = vunpack.c.l.b16 %v56
  %v452 = vpack.c.b16 %v449, %v448
  %v453 = vpack.c.b16 %v451, %v450
  %v457 = vsel %vm273, %v440, 0
  %v460 = vsel %vm273, %v441, 0
  %v463 = vsel %vm273, %v442, 0
  %v466 = vsel %vm273, %v443, 0
  %468 = vmatprep.subr.bf16.mxu0 0
  %469 = vmatpush1.bf16.msra.mxu0 0
  %470 = vmatprep.subr.bf16.mxu0 0
  %471 = vmatpush1.bf16.msra.mxu0 0
  %472 = vmatprep.subr.bf16.mxu0 0
  %473 = vmatpush1.bf16.msra.mxu0 0
  %474 = vmatprep.subr.bf16.mxu0 0
  %475 = vmatpush1.bf16.msra.mxu0 0
  %476 = vmatprep.subr.bf16.mxu0 0
  %477 = vmatpush1.bf16.msra.mxu0 0
  %478 = vmatprep.subr.bf16.mxu0 0
  %479 = vmatpush1.bf16.msra.mxu0 0
  %480 = vmatprep.subr.bf16.mxu0 0
  %481 = vmatpush1.bf16.msra.mxu0 %v453
  %482 = vmatprep.subr.bf16.mxu0 0
  %483 = vmatpush1.bf16.msra.mxu0 %v452
  %484 = vmatprep.subr.bf16.mxu0 0
  %485 = vmatpush2.bf16.msra.mxu0 0
  %486 = vmatprep.subr.bf16.mxu0 0
  %487 = vmatpush2.bf16.msra.mxu0 0
  %488 = vmatprep.subr.bf16.mxu0 0
  %489 = vmatpush2.bf16.msra.mxu0 0
  %490 = vmatprep.subr.bf16.mxu0 0
  %491 = vmatpush2.bf16.msra.mxu0 0
  %492 = vmatprep.subr.bf16.mxu0 0
  %493 = vmatpush2.bf16.msra.mxu0 0
  %494 = vmatprep.subr.bf16.mxu0 0
  %495 = vmatpush2.bf16.msra.mxu0 0
  %496 = vmatprep.subr.bf16.mxu0 0
  %497 = vmatpush2.bf16.msra.mxu0 0
  %498 = vmatprep.subr.bf16.mxu0 0
  %499 = vmatpush2.bf16.msra.mxu0 0
  %500 = vmatprep.mubr.bf16.mxu0 0
  %501 = vmatmul.mubr.bf16.gmra.mxu0 %v457
  %v502 = vpop.f32.mrf.mxu0
  %v503 = vadd.f32 0.0, %v502
  %v504 = vpop.f32.mrf.mxu0
  %v505 = vpop.f32.mrf.mxu0
  %v506 = vadd.f32 0.0, %v505
  %v507 = vpop.f32.mrf.mxu0
  %508 = vmatprep.mubr.bf16.mxu0 0
  %509 = vmatmul.mubr.bf16.gmra.mxu0 %v460
  %v510 = vpop.f32.mrf.mxu0
  %v511 = vadd.f32 0.0, %v510
  %v512 = vpop.f32.mrf.mxu0
  %v513 = vpop.f32.mrf.mxu0
  %v514 = vadd.f32 0.0, %v513
  %v515 = vpop.f32.mrf.mxu0
  %516 = vmatprep.mubr.bf16.mxu0 0
  %517 = vmatmul.mubr.bf16.gmra.mxu0 %v463
  %v518 = vpop.f32.mrf.mxu0
  %v519 = vadd.f32 0.0, %v518
  %v520 = vpop.f32.mrf.mxu0
  %v521 = vpop.f32.mrf.mxu0
  %v522 = vadd.f32 0.0, %v521
  %v523 = vpop.f32.mrf.mxu0
  %524 = vmatprep.mubr.bf16.mxu0 0
  %525 = vmatmul.mubr.bf16.gmra.mxu0 %v466
  %v526 = vpop.f32.mrf.mxu0
  %v527 = vadd.f32 0.0, %v526
  %v528 = vpop.f32.mrf.mxu0
  %v529 = vpop.f32.mrf.mxu0
  %v530 = vadd.f32 0.0, %v529
  %v531 = vpop.f32.mrf.mxu0
  %532 = vdwg.mxu0
  %v533 = vadd.f32 %v410, %v503
  %v534 = vadd.f32 %v413, %v506
  %v535 = vadd.f32 %v418, %v511
  %v536 = vadd.f32 %v421, %v514
  %v537 = vadd.f32 %v426, %v519
  %v538 = vadd.f32 %v429, %v522
  %v539 = vadd.f32 %v434, %v527
  %v540 = vadd.f32 %v437, %v530
  %v541 = vlaneseq
  %v542 = vshrl.u32 %v541, 7
  %v543 = vsub.s32 0, %v542
  %v544 = vrot.slane %v57, %v543
  %v545 = vadd.f32 %v533, %v544
  %v546 = vadd.f32 %v534, %v544
  %v547 = vadd.f32 %v535, %v544
  %v548 = vadd.f32 %v536, %v544
  %v549 = vadd.f32 %v537, %v544
  %v550 = vadd.f32 %v538, %v544
  %v551 = vadd.f32 %v539, %v544
  %v552 = vadd.f32 %v540, %v544
  %vm553 = vcmp.ge.f32.partialorder %v545, 0.0
  %vm554 = vcmp.ge.f32.partialorder %v546, 0.0
  %vm555 = vcmp.ge.f32.partialorder %v547, 0.0
  %vm556 = vcmp.ge.f32.partialorder %v548, 0.0
  %vm557 = vcmp.ge.f32.partialorder %v549, 0.0
  %vm558 = vcmp.ge.f32.partialorder %v550, 0.0
  %vm559 = vcmp.ge.f32.partialorder %v551, 0.0
  %vm560 = vcmp.ge.f32.partialorder %v552, 0.0
  %v561 = vmul.f32 %v545, 0.01
  %v562 = vmul.f32 %v546, 0.01
  %v563 = vmul.f32 %v547, 0.01
  %v564 = vmul.f32 %v548, 0.01
  %v565 = vmul.f32 %v549, 0.01
  %v566 = vmul.f32 %v550, 0.01
  %v567 = vmul.f32 %v551, 0.01
  %v568 = vmul.f32 %v552, 0.01
  %v569 = vsel %vm553, %v545, %v561
  %v570 = vsel %vm554, %v546, %v562
  %v571 = vsel %vm555, %v547, %v563
  %v572 = vsel %vm556, %v548, %v564
  %v573 = vsel %vm557, %v549, %v565
  %v574 = vsel %vm558, %v550, %v566
  %v575 = vsel %vm559, %v551, %v567
  %v576 = vsel %vm560, %v552, %v568
  %v577 = vld [vmem:[%s4 + $0x4] sm:$0x1]
  %v578 = vld [vmem:[%s4 + $0x7] sm:$0x1]
  %v579 = vsel %vm273, %v569, 0.0
  %v580 = vsel %vm273, %v570, 0.0
  %v581 = vadd.f32 %v579, %v580
  %v582 = vsel %vm273, %v571, 0.0
  %v583 = vadd.f32 %v581, %v582
  %v584 = vsel %vm273, %v572, 0.0
  %v585 = vadd.f32 %v583, %v584
  %v586 = vsel %vm273, %v573, 0.0
  %v587 = vadd.f32 %v585, %v586
  %v588 = vsel %vm273, %v574, 0.0
  %v589 = vadd.f32 %v587, %v588
  %v590 = vsel %vm273, %v575, 0.0
  %v591 = vadd.f32 %v589, %v590
  %v592 = vsel %vm273, %v576, 0.0
  %v593 = vadd.f32 %v591, %v592
  %v594 = vrot.slane %v593, 4
  %v595 = vadd.f32 %v593, %v594
  %v596 = vrot.slane %v595, 2
  %v597 = vadd.f32 %v595, %v596
  %v598 = vrot.slane %v597, 1
  %v599 = vadd.f32 %v597, %v598
  %v600 = vrcp.pop 64.0
  %v601 = vmul.f32 %v599, %v600
  %v602 = vsub.f32 %v569, %v601
  %v603 = vsub.f32 %v570, %v601
  %v604 = vsub.f32 %v571, %v601
  %v605 = vsub.f32 %v572, %v601
  %v606 = vsub.f32 %v573, %v601
  %v607 = vsub.f32 %v574, %v601
  %v608 = vsub.f32 %v575, %v601
  %v609 = vsub.f32 %v576, %v601
  %v610 = vmul.f32 %v602, %v602
  %v611 = vmul.f32 %v603, %v603
  %v612 = vmul.f32 %v604, %v604
  %v613 = vmul.f32 %v605, %v605
  %v614 = vmul.f32 %v606, %v606
  %v615 = vmul.f32 %v607, %v607
  %v616 = vmul.f32 %v608, %v608
  %v617 = vmul.f32 %v609, %v609
  %v618 = vsel %vm273, %v610, 0.0
  %v619 = vsel %vm273, %v611, 0.0
  %v620 = vadd.f32 %v618, %v619
  %v621 = vsel %vm273, %v612, 0.0
  %v622 = vadd.f32 %v620, %v621
  %v623 = vsel %vm273, %v613, 0.0
  %v624 = vadd.f32 %v622, %v623
  %v625 = vsel %vm273, %v614, 0.0
  %v626 = vadd.f32 %v624, %v625
  %v627 = vsel %vm273, %v615, 0.0
  %v628 = vadd.f32 %v626, %v627
  %v629 = vsel %vm273, %v616, 0.0
  %v630 = vadd.f32 %v628, %v629
  %v631 = vsel %vm273, %v617, 0.0
  %v632 = vadd.f32 %v630, %v631
  %v633 = vrot.slane %v632, 4
  %v634 = vadd.f32 %v632, %v633
  %v635 = vrot.slane %v634, 2
  %v636 = vadd.f32 %v634, %v635
  %v637 = vrot.slane %v636, 1
  %v638 = vadd.f32 %v636, %v637
  %v639 = vmul.f32 %v638, %v600
  %v640 = vadd.f32 %v639, 1e-05
  %v641 = vrsqrt.pop %v640
  %v642 = vmul.f32 %v602, %v641
  %v643 = vmul.f32 %v603, %v641
  %v644 = vmul.f32 %v604, %v641
  %v645 = vmul.f32 %v605, %v641
  %v646 = vmul.f32 %v606, %v641
  %v647 = vmul.f32 %v607, %v641
  %v648 = vmul.f32 %v608, %v641
  %v649 = vmul.f32 %v609, %v641
  %v650 = vlaneseq
  %v651 = vshrl.u32 %v650, 7
  %v652 = vsub.s32 0, %v651
  %v653 = vrot.slane %v577, %v652
  %v654 = vmul.f32 %v642, %v653
  %v655 = vmul.f32 %v643, %v653
  %v656 = vmul.f32 %v644, %v653
  %v657 = vmul.f32 %v645, %v653
  %v658 = vmul.f32 %v646, %v653
  %v659 = vmul.f32 %v647, %v653
  %v660 = vmul.f32 %v648, %v653
  %v661 = vmul.f32 %v649, %v653
  %v662 = vlaneseq
  %v663 = vshrl.u32 %v662, 7
  %v664 = vsub.s32 0, %v663
  %v665 = vrot.slane %v578, %v664
  %v666 = vadd.f32 %v654, %v665
  %v667 = vadd.f32 %v655, %v665
  %v668 = vadd.f32 %v656, %v665
  %v669 = vadd.f32 %v657, %v665
  %v670 = vadd.f32 %v658, %v665
  %v671 = vadd.f32 %v659, %v665
  %v672 = vadd.f32 %v660, %v665
  %v673 = vadd.f32 %v661, %v665
  %s674 = scalar_lea.vmem %s3, 48
  %v675 = vld [vmem:[%s674] sm:$0xf]
  %v676 = vld [vmem:[%s674 + $0x4] sm:$0xf]
  %v677 = vld [vmem:[%s674 + $0x8] sm:$0xf]
  %v678 = vld [vmem:[%s674 + $0xc] sm:$0xf]
  %v679 = vld [vmem:[%s674 + $0x10] sm:$0xf]
  %v680 = vld [vmem:[%s674 + $0x14] sm:$0xf]
  %v681 = vld [vmem:[%s674 + $0x18] sm:$0xf]
  %v682 = vld [vmem:[%s674 + $0x1c] sm:$0xf]
  %v683 = vld [vmem:[%s674 + $0x20] sm:$0xf]
  %v684 = vld [vmem:[%s674 + $0x24] sm:$0xf]
  %v685 = vld [vmem:[%s674 + $0x28] sm:$0xf]
  %v686 = vld [vmem:[%s674 + $0x2c] sm:$0xf]
  %v687 = vld [vmem:[%s4 + $0x1] sm:$0x1]
  %v688 = vpack.c.bf16 %v667, %v666
  %v689 = vpack.c.bf16 %v669, %v668
  %v690 = vpack.c.bf16 %v671, %v670
  %v691 = vpack.c.bf16 %v673, %v672
  %692 = vmatprep.subr.bf16.mxu0 0
  %693 = vmatpush1.bf16.msra.mxu0 0
  %694 = vmatprep.subr.bf16.mxu0 0
  %695 = vmatpush1.bf16.msra.mxu0 0
  %696 = vmatprep.subr.bf16.mxu0 0
  %697 = vmatpush1.bf16.msra.mxu0 0
  %698 = vmatprep.subr.bf16.mxu0 0
  %699 = vmatpush1.bf16.msra.mxu0 0
  %700 = vmatprep.subr.bf16.mxu0 0
  %701 = vmatpush1.bf16.msra.mxu0 %v691
  %702 = vmatprep.subr.bf16.mxu0 0
  %703 = vmatpush1.bf16.msra.mxu0 %v690
  %704 = vmatprep.subr.bf16.mxu0 0
  %705 = vmatpush1.bf16.msra.mxu0 %v689
  %706 = vmatprep.subr.bf16.mxu0 0
  %707 = vmatpush1.bf16.msra.mxu0 %v688
  %708 = vmatprep.subr.bf16.mxu0 0
  %709 = vmatpush2.bf16.msra.mxu0 0
  %710 = vmatprep.subr.bf16.mxu0 0
  %711 = vmatpush2.bf16.msra.mxu0 0
  %712 = vmatprep.subr.bf16.mxu0 0
  %713 = vmatpush2.bf16.msra.mxu0 0
  %714 = vmatprep.subr.bf16.mxu0 0
  %715 = vmatpush2.bf16.msra.mxu0 0
  %716 = vmatprep.subr.bf16.mxu0 0
  %717 = vmatpush2.bf16.msra.mxu0 0
  %718 = vmatprep.subr.bf16.mxu0 0
  %719 = vmatpush2.bf16.msra.mxu0 0
  %720 = vmatprep.subr.bf16.mxu0 0
  %721 = vmatpush2.bf16.msra.mxu0 0
  %722 = vmatprep.subr.bf16.mxu0 0
  %723 = vmatpush2.bf16.msra.mxu0 0
  %724 = vmatprep.mubr.bf16.mxu0 0
  %725 = vmatmul.mubr.bf16.gmra.mxu0 %v84
  %v726 = vpop.f32.mrf.mxu0
  %v727 = vadd.f32 0.0, %v726
  %v728 = vpop.f32.mrf.mxu0
  %v729 = vpop.f32.mrf.mxu0
  %v730 = vadd.f32 0.0, %v729
  %v731 = vpop.f32.mrf.mxu0
  %732 = vmatprep.mubr.bf16.mxu0 0
  %733 = vmatmul.mubr.bf16.gmra.mxu0 %v87
  %v734 = vpop.f32.mrf.mxu0
  %v735 = vadd.f32 0.0, %v734
  %v736 = vpop.f32.mrf.mxu0
  %v737 = vpop.f32.mrf.mxu0
  %v738 = vadd.f32 0.0, %v737
  %v739 = vpop.f32.mrf.mxu0
  %740 = vmatprep.mubr.bf16.mxu0 0
  %741 = vmatmul.mubr.bf16.gmra.mxu0 %v90
  %v742 = vpop.f32.mrf.mxu0
  %v743 = vadd.f32 0.0, %v742
  %v744 = vpop.f32.mrf.mxu0
  %v745 = vpop.f32.mrf.mxu0
  %v746 = vadd.f32 0.0, %v745
  %v747 = vpop.f32.mrf.mxu0
  %748 = vmatprep.mubr.bf16.mxu0 0
  %749 = vmatmul.mubr.bf16.gmra.mxu0 %v93
  %v750 = vpop.f32.mrf.mxu0
  %v751 = vadd.f32 0.0, %v750
  %v752 = vpop.f32.mrf.mxu0
  %v753 = vpop.f32.mrf.mxu0
  %v754 = vadd.f32 0.0, %v753
  %v755 = vpop.f32.mrf.mxu0
  %756 = vdwg.mxu0
  %757 = vmatprep.subr.bf16.mxu0 0
  %758 = vmatpush1.bf16.msra.mxu0 0
  %759 = vmatprep.subr.bf16.mxu0 0
  %760 = vmatpush1.bf16.msra.mxu0 0
  %761 = vmatprep.subr.bf16.mxu0 0
  %762 = vmatpush1.bf16.msra.mxu0 0
  %763 = vmatprep.subr.bf16.mxu0 0
  %764 = vmatpush1.bf16.msra.mxu0 0
  %765 = vmatprep.subr.bf16.mxu0 0
  %766 = vmatpush1.bf16.msra.mxu0 %v691
  %767 = vmatprep.subr.bf16.mxu0 0
  %768 = vmatpush1.bf16.msra.mxu0 %v690
  %769 = vmatprep.subr.bf16.mxu0 0
  %770 = vmatpush1.bf16.msra.mxu0 %v689
  %771 = vmatprep.subr.bf16.mxu0 0
  %772 = vmatpush1.bf16.msra.mxu0 %v688
  %773 = vmatprep.subr.bf16.mxu0 0
  %774 = vmatpush2.bf16.msra.mxu0 0
  %775 = vmatprep.subr.bf16.mxu0 0
  %776 = vmatpush2.bf16.msra.mxu0 0
  %777 = vmatprep.subr.bf16.mxu0 0
  %778 = vmatpush2.bf16.msra.mxu0 0
  %779 = vmatprep.subr.bf16.mxu0 0
  %780 = vmatpush2.bf16.msra.mxu0 0
  %781 = vmatprep.subr.bf16.mxu0 0
  %782 = vmatpush2.bf16.msra.mxu0 0
  %783 = vmatprep.subr.bf16.mxu0 0
  %784 = vmatpush2.bf16.msra.mxu0 0
  %785 = vmatprep.subr.bf16.mxu0 0
  %786 = vmatpush2.bf16.msra.mxu0 0
  %787 = vmatprep.subr.bf16.mxu0 0
  %788 = vmatpush2.bf16.msra.mxu0 0
  %789 = vmatprep.mubr.bf16.mxu0 0
  %790 = vmatmul.mubr.bf16.gmra.mxu0 %v181
  %v791 = vpop.f32.mrf.mxu0
  %v792 = vadd.f32 0.0, %v791
  %v793 = vpop.f32.mrf.mxu0
  %v794 = vpop.f32.mrf.mxu0
  %v795 = vadd.f32 0.0, %v794
  %v796 = vpop.f32.mrf.mxu0
  %797 = vmatprep.mubr.bf16.mxu0 0
  %798 = vmatmul.mubr.bf16.gmra.mxu0 %v184
  %v799 = vpop.f32.mrf.mxu0
  %v800 = vadd.f32 0.0, %v799
  %v801 = vpop.f32.mrf.mxu0
  %v802 = vpop.f32.mrf.mxu0
  %v803 = vadd.f32 0.0, %v802
  %v804 = vpop.f32.mrf.mxu0
  %805 = vmatprep.mubr.bf16.mxu0 0
  %806 = vmatmul.mubr.bf16.gmra.mxu0 %v187
  %v807 = vpop.f32.mrf.mxu0
  %v808 = vadd.f32 0.0, %v807
  %v809 = vpop.f32.mrf.mxu0
  %v810 = vpop.f32.mrf.mxu0
  %v811 = vadd.f32 0.0, %v810
  %v812 = vpop.f32.mrf.mxu0
  %813 = vmatprep.mubr.bf16.mxu0 0
  %814 = vmatmul.mubr.bf16.gmra.mxu0 %v190
  %v815 = vpop.f32.mrf.mxu0
  %v816 = vadd.f32 0.0, %v815
  %v817 = vpop.f32.mrf.mxu0
  %v818 = vpop.f32.mrf.mxu0
  %v819 = vadd.f32 0.0, %v818
  %v820 = vpop.f32.mrf.mxu0
  %821 = vdwg.mxu0
  %v822 = vpack.c.bf16 %v730, %v727
  %v823 = vpack.c.bf16 %v738, %v735
  %v824 = vpack.c.bf16 %v746, %v743
  %v825 = vpack.c.bf16 %v754, %v751
  %v830 = vunpack.c.l.b16 %v679
  %v831 = vunpack.c.l.b16 %v680
  %v832 = vunpack.c.l.b16 %v681
  %v833 = vunpack.c.l.b16 %v682
  %v834 = vpack.c.b16 %v831, %v830
  %v835 = vpack.c.b16 %v833, %v832
  %v839 = vsel %vm273, %v822, 0
  %v842 = vsel %vm273, %v823, 0
  %v845 = vsel %vm273, %v824, 0
  %v848 = vsel %vm273, %v825, 0
  %850 = vmatprep.subr.bf16.mxu0 0
  %851 = vmatpush1.bf16.msra.mxu0 0
  %852 = vmatprep.subr.bf16.mxu0 0
  %853 = vmatpush1.bf16.msra.mxu0 0
  %854 = vmatprep.subr.bf16.mxu0 0
  %855 = vmatpush1.bf16.msra.mxu0 0
  %856 = vmatprep.subr.bf16.mxu0 0
  %857 = vmatpush1.bf16.msra.mxu0 0
  %858 = vmatprep.subr.bf16.mxu0 0
  %859 = vmatpush1.bf16.msra.mxu0 0
  %860 = vmatprep.subr.bf16.mxu0 0
  %861 = vmatpush1.bf16.msra.mxu0 0
  %862 = vmatprep.subr.bf16.mxu0 0
  %863 = vmatpush1.bf16.msra.mxu0 %v835
  %864 = vmatprep.subr.bf16.mxu0 0
  %865 = vmatpush1.bf16.msra.mxu0 %v834
  %866 = vmatprep.subr.bf16.mxu0 0
  %867 = vmatpush2.bf16.msra.mxu0 0
  %868 = vmatprep.subr.bf16.mxu0 0
  %869 = vmatpush2.bf16.msra.mxu0 0
  %870 = vmatprep.subr.bf16.mxu0 0
  %871 = vmatpush2.bf16.msra.mxu0 0
  %872 = vmatprep.subr.bf16.mxu0 0
  %873 = vmatpush2.bf16.msra.mxu0 0
  %874 = vmatprep.subr.bf16.mxu0 0
  %875 = vmatpush2.bf16.msra.mxu0 0
  %876 = vmatprep.subr.bf16.mxu0 0
  %877 = vmatpush2.bf16.msra.mxu0 0
  %878 = vmatprep.subr.bf16.mxu0 0
  %879 = vmatpush2.bf16.msra.mxu0 0
  %880 = vmatprep.subr.bf16.mxu0 0
  %881 = vmatpush2.bf16.msra.mxu0 0
  %882 = vmatprep.mubr.bf16.mxu0 0
  %883 = vmatmul.mubr.bf16.gmra.mxu0 %v839
  %v884 = vpop.f32.mrf.mxu0
  %v885 = vadd.f32 0.0, %v884
  %v886 = vpop.f32.mrf.mxu0
  %v887 = vpop.f32.mrf.mxu0
  %v888 = vadd.f32 0.0, %v887
  %v889 = vpop.f32.mrf.mxu0
  %890 = vmatprep.mubr.bf16.mxu0 0
  %891 = vmatmul.mubr.bf16.gmra.mxu0 %v842
  %v892 = vpop.f32.mrf.mxu0
  %v893 = vadd.f32 0.0, %v892
  %v894 = vpop.f32.mrf.mxu0
  %v895 = vpop.f32.mrf.mxu0
  %v896 = vadd.f32 0.0, %v895
  %v897 = vpop.f32.mrf.mxu0
  %898 = vmatprep.mubr.bf16.mxu0 0
  %899 = vmatmul.mubr.bf16.gmra.mxu0 %v845
  %v900 = vpop.f32.mrf.mxu0
  %v901 = vadd.f32 0.0, %v900
  %v902 = vpop.f32.mrf.mxu0
  %v903 = vpop.f32.mrf.mxu0
  %v904 = vadd.f32 0.0, %v903
  %v905 = vpop.f32.mrf.mxu0
  %906 = vmatprep.mubr.bf16.mxu0 0
  %907 = vmatmul.mubr.bf16.gmra.mxu0 %v848
  %v908 = vpop.f32.mrf.mxu0
  %v909 = vadd.f32 0.0, %v908
  %v910 = vpop.f32.mrf.mxu0
  %v911 = vpop.f32.mrf.mxu0
  %v912 = vadd.f32 0.0, %v911
  %v913 = vpop.f32.mrf.mxu0
  %914 = vdwg.mxu0
  %v919 = vunpack.c.l.b16 %v675
  %v920 = vunpack.c.l.b16 %v676
  %v921 = vunpack.c.l.b16 %v677
  %v922 = vunpack.c.l.b16 %v678
  %v923 = vpack.c.b16 %v920, %v919
  %v924 = vpack.c.b16 %v922, %v921
  %v928 = vsel %vm273, %v688, 0
  %v931 = vsel %vm273, %v689, 0
  %v934 = vsel %vm273, %v690, 0
  %v937 = vsel %vm273, %v691, 0
  %939 = vmatprep.subr.bf16.mxu0 0
  %940 = vmatpush1.bf16.msra.mxu0 0
  %941 = vmatprep.subr.bf16.mxu0 0
  %942 = vmatpush1.bf16.msra.mxu0 0
  %943 = vmatprep.subr.bf16.mxu0 0
  %944 = vmatpush1.bf16.msra.mxu0 0
  %945 = vmatprep.subr.bf16.mxu0 0
  %946 = vmatpush1.bf16.msra.mxu0 0
  %947 = vmatprep.subr.bf16.mxu0 0
  %948 = vmatpush1.bf16.msra.mxu0 0
  %949 = vmatprep.subr.bf16.mxu0 0
  %950 = vmatpush1.bf16.msra.mxu0 0
  %951 = vmatprep.subr.bf16.mxu0 0
  %952 = vmatpush1.bf16.msra.mxu0 %v924
  %953 = vmatprep.subr.bf16.mxu0 0
  %954 = vmatpush1.bf16.msra.mxu0 %v923
  %955 = vmatprep.subr.bf16.mxu0 0
  %956 = vmatpush2.bf16.msra.mxu0 0
  %957 = vmatprep.subr.bf16.mxu0 0
  %958 = vmatpush2.bf16.msra.mxu0 0
  %959 = vmatprep.subr.bf16.mxu0 0
  %960 = vmatpush2.bf16.msra.mxu0 0
  %961 = vmatprep.subr.bf16.mxu0 0
  %962 = vmatpush2.bf16.msra.mxu0 0
  %963 = vmatprep.subr.bf16.mxu0 0
  %964 = vmatpush2.bf16.msra.mxu0 0
  %965 = vmatprep.subr.bf16.mxu0 0
  %966 = vmatpush2.bf16.msra.mxu0 0
  %967 = vmatprep.subr.bf16.mxu0 0
  %968 = vmatpush2.bf16.msra.mxu0 0
  %969 = vmatprep.subr.bf16.mxu0 0
  %970 = vmatpush2.bf16.msra.mxu0 0
  %971 = vmatprep.mubr.bf16.mxu0 0
  %972 = vmatmul.mubr.bf16.gmra.mxu0 %v928
  %v973 = vpop.f32.mrf.mxu0
  %v974 = vadd.f32 %v885, %v973
  %v975 = vpop.f32.mrf.mxu0
  %v976 = vpop.f32.mrf.mxu0
  %v977 = vadd.f32 %v888, %v976
  %v978 = vpop.f32.mrf.mxu0
  %979 = vmatprep.mubr.bf16.mxu0 0
  %980 = vmatmul.mubr.bf16.gmra.mxu0 %v931
  %v981 = vpop.f32.mrf.mxu0
  %v982 = vadd.f32 %v893, %v981
  %v983 = vpop.f32.mrf.mxu0
  %v984 = vpop.f32.mrf.mxu0
  %v985 = vadd.f32 %v896, %v984
  %v986 = vpop.f32.mrf.mxu0
  %987 = vmatprep.mubr.bf16.mxu0 0
  %988 = vmatmul.mubr.bf16.gmra.mxu0 %v934
  %v989 = vpop.f32.mrf.mxu0
  %v990 = vadd.f32 %v901, %v989
  %v991 = vpop.f32.mrf.mxu0
  %v992 = vpop.f32.mrf.mxu0
  %v993 = vadd.f32 %v904, %v992
  %v994 = vpop.f32.mrf.mxu0
  %995 = vmatprep.mubr.bf16.mxu0 0
  %996 = vmatmul.mubr.bf16.gmra.mxu0 %v937
  %v997 = vpop.f32.mrf.mxu0
  %v998 = vadd.f32 %v909, %v997
  %v999 = vpop.f32.mrf.mxu0
  %v1000 = vpop.f32.mrf.mxu0
  %v1001 = vadd.f32 %v912, %v1000
  %v1002 = vpop.f32.mrf.mxu0
  %1003 = vdwg.mxu0
  %v1004 = vpack.c.bf16 %v795, %v792
  %v1005 = vpack.c.bf16 %v803, %v800
  %v1006 = vpack.c.bf16 %v811, %v808
  %v1007 = vpack.c.bf16 %v819, %v816
  %v1012 = vunpack.c.l.b16 %v683
  %v1013 = vunpack.c.l.b16 %v684
  %v1014 = vunpack.c.l.b16 %v685
  %v1015 = vunpack.c.l.b16 %v686
  %v1016 = vpack.c.b16 %v1013, %v1012
  %v1017 = vpack.c.b16 %v1015, %v1014
  %v1021 = vsel %vm273, %v1004, 0
  %v1024 = vsel %vm273, %v1005, 0
  %v1027 = vsel %vm273, %v1006, 0
  %v1030 = vsel %vm273, %v1007, 0
  %1032 = vmatprep.subr.bf16.mxu0 0
  %1033 = vmatpush1.bf16.msra.mxu0 0
  %1034 = vmatprep.subr.bf16.mxu0 0
  %1035 = vmatpush1.bf16.msra.mxu0 0
  %1036 = vmatprep.subr.bf16.mxu0 0
  %1037 = vmatpush1.bf16.msra.mxu0 0
  %1038 = vmatprep.subr.bf16.mxu0 0
  %1039 = vmatpush1.bf16.msra.mxu0 0
  %1040 = vmatprep.subr.bf16.mxu0 0
  %1041 = vmatpush1.bf16.msra.mxu0 0
  %1042 = vmatprep.subr.bf16.mxu0 0
  %1043 = vmatpush1.bf16.msra.mxu0 0
  %1044 = vmatprep.subr.bf16.mxu0 0
  %1045 = vmatpush1.bf16.msra.mxu0 %v1017
  %1046 = vmatprep.subr.bf16.mxu0 0
  %1047 = vmatpush1.bf16.msra.mxu0 %v1016
  %1048 = vmatprep.subr.bf16.mxu0 0
  %1049 = vmatpush2.bf16.msra.mxu0 0
  %1050 = vmatprep.subr.bf16.mxu0 0
  %1051 = vmatpush2.bf16.msra.mxu0 0
  %1052 = vmatprep.subr.bf16.mxu0 0
  %1053 = vmatpush2.bf16.msra.mxu0 0
  %1054 = vmatprep.subr.bf16.mxu0 0
  %1055 = vmatpush2.bf16.msra.mxu0 0
  %1056 = vmatprep.subr.bf16.mxu0 0
  %1057 = vmatpush2.bf16.msra.mxu0 0
  %1058 = vmatprep.subr.bf16.mxu0 0
  %1059 = vmatpush2.bf16.msra.mxu0 0
  %1060 = vmatprep.subr.bf16.mxu0 0
  %1061 = vmatpush2.bf16.msra.mxu0 0
  %1062 = vmatprep.subr.bf16.mxu0 0
  %1063 = vmatpush2.bf16.msra.mxu0 0
  %1064 = vmatprep.mubr.bf16.mxu0 0
  %1065 = vmatmul.mubr.bf16.gmra.mxu0 %v1021
  %v1066 = vpop.f32.mrf.mxu0
  %v1067 = vadd.f32 0.0, %v1066
  %v1068 = vpop.f32.mrf.mxu0
  %v1069 = vpop.f32.mrf.mxu0
  %v1070 = vadd.f32 0.0, %v1069
  %v1071 = vpop.f32.mrf.mxu0
  %1072 = vmatprep.mubr.bf16.mxu0 0
  %1073 = vmatmul.mubr.bf16.gmra.mxu0 %v1024
  %v1074 = vpop.f32.mrf.mxu0
  %v1075 = vadd.f32 0.0, %v1074
  %v1076 = vpop.f32.mrf.mxu0
  %v1077 = vpop.f32.mrf.mxu0
  %v1078 = vadd.f32 0.0, %v1077
  %v1079 = vpop.f32.mrf.mxu0
  %1080 = vmatprep.mubr.bf16.mxu0 0
  %1081 = vmatmul.mubr.bf16.gmra.mxu0 %v1027
  %v1082 = vpop.f32.mrf.mxu0
  %v1083 = vadd.f32 0.0, %v1082
  %v1084 = vpop.f32.mrf.mxu0
  %v1085 = vpop.f32.mrf.mxu0
  %v1086 = vadd.f32 0.0, %v1085
  %v1087 = vpop.f32.mrf.mxu0
  %1088 = vmatprep.mubr.bf16.mxu0 0
  %1089 = vmatmul.mubr.bf16.gmra.mxu0 %v1030
  %v1090 = vpop.f32.mrf.mxu0
  %v1091 = vadd.f32 0.0, %v1090
  %v1092 = vpop.f32.mrf.mxu0
  %v1093 = vpop.f32.mrf.mxu0
  %v1094 = vadd.f32 0.0, %v1093
  %v1095 = vpop.f32.mrf.mxu0
  %1096 = vdwg.mxu0
  %v1097 = vadd.f32 %v974, %v1067
  %v1098 = vadd.f32 %v977, %v1070
  %v1099 = vadd.f32 %v982, %v1075
  %v1100 = vadd.f32 %v985, %v1078
  %v1101 = vadd.f32 %v990, %v1083
  %v1102 = vadd.f32 %v993, %v1086
  %v1103 = vadd.f32 %v998, %v1091
  %v1104 = vadd.f32 %v1001, %v1094
  %v1105 = vlaneseq
  %v1106 = vshrl.u32 %v1105, 7
  %v1107 = vsub.s32 0, %v1106
  %v1108 = vrot.slane %v687, %v1107
  %v1109 = vadd.f32 %v1097, %v1108
  %v1110 = vadd.f32 %v1098, %v1108
  %v1111 = vadd.f32 %v1099, %v1108
  %v1112 = vadd.f32 %v1100, %v1108
  %v1113 = vadd.f32 %v1101, %v1108
  %v1114 = vadd.f32 %v1102, %v1108
  %v1115 = vadd.f32 %v1103, %v1108
  %v1116 = vadd.f32 %v1104, %v1108
  %vm1117 = vcmp.ge.f32.partialorder %v1109, 0.0
  %vm1118 = vcmp.ge.f32.partialorder %v1110, 0.0
  %vm1119 = vcmp.ge.f32.partialorder %v1111, 0.0
  %vm1120 = vcmp.ge.f32.partialorder %v1112, 0.0
  %vm1121 = vcmp.ge.f32.partialorder %v1113, 0.0
  %vm1122 = vcmp.ge.f32.partialorder %v1114, 0.0
  %vm1123 = vcmp.ge.f32.partialorder %v1115, 0.0
  %vm1124 = vcmp.ge.f32.partialorder %v1116, 0.0
  %v1125 = vmul.f32 %v1109, 0.01
  %v1126 = vmul.f32 %v1110, 0.01
  %v1127 = vmul.f32 %v1111, 0.01
  %v1128 = vmul.f32 %v1112, 0.01
  %v1129 = vmul.f32 %v1113, 0.01
  %v1130 = vmul.f32 %v1114, 0.01
  %v1131 = vmul.f32 %v1115, 0.01
  %v1132 = vmul.f32 %v1116, 0.01
  %v1133 = vsel %vm1117, %v1109, %v1125
  %v1134 = vsel %vm1118, %v1110, %v1126
  %v1135 = vsel %vm1119, %v1111, %v1127
  %v1136 = vsel %vm1120, %v1112, %v1128
  %v1137 = vsel %vm1121, %v1113, %v1129
  %v1138 = vsel %vm1122, %v1114, %v1130
  %v1139 = vsel %vm1123, %v1115, %v1131
  %v1140 = vsel %vm1124, %v1116, %v1132
  %v1141 = vld [vmem:[%s4 + $0x5] sm:$0x1]
  %v1142 = vld [vmem:[%s4 + $0x8] sm:$0x1]
  %v1143 = vsel %vm273, %v1133, 0.0
  %v1144 = vsel %vm273, %v1134, 0.0
  %v1145 = vadd.f32 %v1143, %v1144
  %v1146 = vsel %vm273, %v1135, 0.0
  %v1147 = vadd.f32 %v1145, %v1146
  %v1148 = vsel %vm273, %v1136, 0.0
  %v1149 = vadd.f32 %v1147, %v1148
  %v1150 = vsel %vm273, %v1137, 0.0
  %v1151 = vadd.f32 %v1149, %v1150
  %v1152 = vsel %vm273, %v1138, 0.0
  %v1153 = vadd.f32 %v1151, %v1152
  %v1154 = vsel %vm273, %v1139, 0.0
  %v1155 = vadd.f32 %v1153, %v1154
  %v1156 = vsel %vm273, %v1140, 0.0
  %v1157 = vadd.f32 %v1155, %v1156
  %v1158 = vrot.slane %v1157, 4
  %v1159 = vadd.f32 %v1157, %v1158
  %v1160 = vrot.slane %v1159, 2
  %v1161 = vadd.f32 %v1159, %v1160
  %v1162 = vrot.slane %v1161, 1
  %v1163 = vadd.f32 %v1161, %v1162
  %v1164 = vmul.f32 %v1163, %v600
  %v1165 = vsub.f32 %v1133, %v1164
  %v1166 = vsub.f32 %v1134, %v1164
  %v1167 = vsub.f32 %v1135, %v1164
  %v1168 = vsub.f32 %v1136, %v1164
  %v1169 = vsub.f32 %v1137, %v1164
  %v1170 = vsub.f32 %v1138, %v1164
  %v1171 = vsub.f32 %v1139, %v1164
  %v1172 = vsub.f32 %v1140, %v1164
  %v1173 = vmul.f32 %v1165, %v1165
  %v1174 = vmul.f32 %v1166, %v1166
  %v1175 = vmul.f32 %v1167, %v1167
  %v1176 = vmul.f32 %v1168, %v1168
  %v1177 = vmul.f32 %v1169, %v1169
  %v1178 = vmul.f32 %v1170, %v1170
  %v1179 = vmul.f32 %v1171, %v1171
  %v1180 = vmul.f32 %v1172, %v1172
  %v1181 = vsel %vm273, %v1173, 0.0
  %v1182 = vsel %vm273, %v1174, 0.0
  %v1183 = vadd.f32 %v1181, %v1182
  %v1184 = vsel %vm273, %v1175, 0.0
  %v1185 = vadd.f32 %v1183, %v1184
  %v1186 = vsel %vm273, %v1176, 0.0
  %v1187 = vadd.f32 %v1185, %v1186
  %v1188 = vsel %vm273, %v1177, 0.0
  %v1189 = vadd.f32 %v1187, %v1188
  %v1190 = vsel %vm273, %v1178, 0.0
  %v1191 = vadd.f32 %v1189, %v1190
  %v1192 = vsel %vm273, %v1179, 0.0
  %v1193 = vadd.f32 %v1191, %v1192
  %v1194 = vsel %vm273, %v1180, 0.0
  %v1195 = vadd.f32 %v1193, %v1194
  %v1196 = vrot.slane %v1195, 4
  %v1197 = vadd.f32 %v1195, %v1196
  %v1198 = vrot.slane %v1197, 2
  %v1199 = vadd.f32 %v1197, %v1198
  %v1200 = vrot.slane %v1199, 1
  %v1201 = vadd.f32 %v1199, %v1200
  %v1202 = vmul.f32 %v1201, %v600
  %v1203 = vadd.f32 %v1202, 1e-05
  %v1204 = vrsqrt.pop %v1203
  %v1205 = vmul.f32 %v1165, %v1204
  %v1206 = vmul.f32 %v1166, %v1204
  %v1207 = vmul.f32 %v1167, %v1204
  %v1208 = vmul.f32 %v1168, %v1204
  %v1209 = vmul.f32 %v1169, %v1204
  %v1210 = vmul.f32 %v1170, %v1204
  %v1211 = vmul.f32 %v1171, %v1204
  %v1212 = vmul.f32 %v1172, %v1204
  %v1213 = vlaneseq
  %v1214 = vshrl.u32 %v1213, 7
  %v1215 = vsub.s32 0, %v1214
  %v1216 = vrot.slane %v1141, %v1215
  %v1217 = vmul.f32 %v1205, %v1216
  %v1218 = vmul.f32 %v1206, %v1216
  %v1219 = vmul.f32 %v1207, %v1216
  %v1220 = vmul.f32 %v1208, %v1216
  %v1221 = vmul.f32 %v1209, %v1216
  %v1222 = vmul.f32 %v1210, %v1216
  %v1223 = vmul.f32 %v1211, %v1216
  %v1224 = vmul.f32 %v1212, %v1216
  %v1225 = vlaneseq
  %v1226 = vshrl.u32 %v1225, 7
  %v1227 = vsub.s32 0, %v1226
  %v1228 = vrot.slane %v1142, %v1227
  %v1229 = vadd.f32 %v1217, %v1228
  %v1230 = vadd.f32 %v1218, %v1228
  %v1231 = vadd.f32 %v1219, %v1228
  %v1232 = vadd.f32 %v1220, %v1228
  %v1233 = vadd.f32 %v1221, %v1228
  %v1234 = vadd.f32 %v1222, %v1228
  %v1235 = vadd.f32 %v1223, %v1228
  %v1236 = vadd.f32 %v1224, %v1228
  %s1237 = scalar_lea.vmem %s3, 96
  %v1238 = vld [vmem:[%s1237] sm:$0xf]
  %v1239 = vld [vmem:[%s1237 + $0x4] sm:$0xf]
  %v1240 = vld [vmem:[%s1237 + $0x8] sm:$0xf]
  %v1241 = vld [vmem:[%s1237 + $0xc] sm:$0xf]
  %v1242 = vld [vmem:[%s1237 + $0x10] sm:$0xf]
  %v1243 = vld [vmem:[%s1237 + $0x14] sm:$0xf]
  %v1244 = vld [vmem:[%s1237 + $0x18] sm:$0xf]
  %v1245 = vld [vmem:[%s1237 + $0x1c] sm:$0xf]
  %v1246 = vld [vmem:[%s1237 + $0x20] sm:$0xf]
  %v1247 = vld [vmem:[%s1237 + $0x24] sm:$0xf]
  %v1248 = vld [vmem:[%s1237 + $0x28] sm:$0xf]
  %v1249 = vld [vmem:[%s1237 + $0x2c] sm:$0xf]
  %v1250 = vld [vmem:[%s4 + $0x2] sm:$0x1]
  %v1251 = vpack.c.bf16 %v1230, %v1229
  %v1252 = vpack.c.bf16 %v1232, %v1231
  %v1253 = vpack.c.bf16 %v1234, %v1233
  %v1254 = vpack.c.bf16 %v1236, %v1235
  %1255 = vmatprep.subr.bf16.mxu0 0
  %1256 = vmatpush1.bf16.msra.mxu0 0
  %1257 = vmatprep.subr.bf16.mxu0 0
  %1258 = vmatpush1.bf16.msra.mxu0 0
  %1259 = vmatprep.subr.bf16.mxu0 0
  %1260 = vmatpush1.bf16.msra.mxu0 0
  %1261 = vmatprep.subr.bf16.mxu0 0
  %1262 = vmatpush1.bf16.msra.mxu0 0
  %1263 = vmatprep.subr.bf16.mxu0 0
  %1264 = vmatpush1.bf16.msra.mxu0 %v1254
  %1265 = vmatprep.subr.bf16.mxu0 0
  %1266 = vmatpush1.bf16.msra.mxu0 %v1253
  %1267 = vmatprep.subr.bf16.mxu0 0
  %1268 = vmatpush1.bf16.msra.mxu0 %v1252
  %1269 = vmatprep.subr.bf16.mxu0 0
  %1270 = vmatpush1.bf16.msra.mxu0 %v1251
  %1271 = vmatprep.subr.bf16.mxu0 0
  %1272 = vmatpush2.bf16.msra.mxu0 0
  %1273 = vmatprep.subr.bf16.mxu0 0
  %1274 = vmatpush2.bf16.msra.mxu0 0
  %1275 = vmatprep.subr.bf16.mxu0 0
  %1276 = vmatpush2.bf16.msra.mxu0 0
  %1277 = vmatprep.subr.bf16.mxu0 0
  %1278 = vmatpush2.bf16.msra.mxu0 0
  %1279 = vmatprep.subr.bf16.mxu0 0
  %1280 = vmatpush2.bf16.msra.mxu0 0
  %1281 = vmatprep.subr.bf16.mxu0 0
  %1282 = vmatpush2.bf16.msra.mxu0 0
  %1283 = vmatprep.subr.bf16.mxu0 0
  %1284 = vmatpush2.bf16.msra.mxu0 0
  %1285 = vmatprep.subr.bf16.mxu0 0
  %1286 = vmatpush2.bf16.msra.mxu0 0
  %1287 = vmatprep.mubr.bf16.mxu0 0
  %1288 = vmatmul.mubr.bf16.gmra.mxu0 %v84
  %v1289 = vpop.f32.mrf.mxu0
  %v1290 = vadd.f32 0.0, %v1289
  %v1291 = vpop.f32.mrf.mxu0
  %v1292 = vpop.f32.mrf.mxu0
  %v1293 = vadd.f32 0.0, %v1292
  %v1294 = vpop.f32.mrf.mxu0
  %1295 = vmatprep.mubr.bf16.mxu0 0
  %1296 = vmatmul.mubr.bf16.gmra.mxu0 %v87
  %v1297 = vpop.f32.mrf.mxu0
  %v1298 = vadd.f32 0.0, %v1297
  %v1299 = vpop.f32.mrf.mxu0
  %v1300 = vpop.f32.mrf.mxu0
  %v1301 = vadd.f32 0.0, %v1300
  %v1302 = vpop.f32.mrf.mxu0
  %1303 = vmatprep.mubr.bf16.mxu0 0
  %1304 = vmatmul.mubr.bf16.gmra.mxu0 %v90
  %v1305 = vpop.f32.mrf.mxu0
  %v1306 = vadd.f32 0.0, %v1305
  %v1307 = vpop.f32.mrf.mxu0
  %v1308 = vpop.f32.mrf.mxu0
  %v1309 = vadd.f32 0.0, %v1308
  %v1310 = vpop.f32.mrf.mxu0
  %1311 = vmatprep.mubr.bf16.mxu0 0
  %1312 = vmatmul.mubr.bf16.gmra.mxu0 %v93
  %v1313 = vpop.f32.mrf.mxu0
  %v1314 = vadd.f32 0.0, %v1313
  %v1315 = vpop.f32.mrf.mxu0
  %v1316 = vpop.f32.mrf.mxu0
  %v1317 = vadd.f32 0.0, %v1316
  %v1318 = vpop.f32.mrf.mxu0
  %1319 = vdwg.mxu0
  %1320 = vmatprep.subr.bf16.mxu0 0
  %1321 = vmatpush1.bf16.msra.mxu0 0
  %1322 = vmatprep.subr.bf16.mxu0 0
  %1323 = vmatpush1.bf16.msra.mxu0 0
  %1324 = vmatprep.subr.bf16.mxu0 0
  %1325 = vmatpush1.bf16.msra.mxu0 0
  %1326 = vmatprep.subr.bf16.mxu0 0
  %1327 = vmatpush1.bf16.msra.mxu0 0
  %1328 = vmatprep.subr.bf16.mxu0 0
  %1329 = vmatpush1.bf16.msra.mxu0 %v1254
  %1330 = vmatprep.subr.bf16.mxu0 0
  %1331 = vmatpush1.bf16.msra.mxu0 %v1253
  %1332 = vmatprep.subr.bf16.mxu0 0
  %1333 = vmatpush1.bf16.msra.mxu0 %v1252
  %1334 = vmatprep.subr.bf16.mxu0 0
  %1335 = vmatpush1.bf16.msra.mxu0 %v1251
  %1336 = vmatprep.subr.bf16.mxu0 0
  %1337 = vmatpush2.bf16.msra.mxu0 0
  %1338 = vmatprep.subr.bf16.mxu0 0
  %1339 = vmatpush2.bf16.msra.mxu0 0
  %1340 = vmatprep.subr.bf16.mxu0 0
  %1341 = vmatpush2.bf16.msra.mxu0 0
  %1342 = vmatprep.subr.bf16.mxu0 0
  %1343 = vmatpush2.bf16.msra.mxu0 0
  %1344 = vmatprep.subr.bf16.mxu0 0
  %1345 = vmatpush2.bf16.msra.mxu0 0
  %1346 = vmatprep.subr.bf16.mxu0 0
  %1347 = vmatpush2.bf16.msra.mxu0 0
  %1348 = vmatprep.subr.bf16.mxu0 0
  %1349 = vmatpush2.bf16.msra.mxu0 0
  %1350 = vmatprep.subr.bf16.mxu0 0
  %1351 = vmatpush2.bf16.msra.mxu0 0
  %1352 = vmatprep.mubr.bf16.mxu0 0
  %1353 = vmatmul.mubr.bf16.gmra.mxu0 %v181
  %v1354 = vpop.f32.mrf.mxu0
  %v1355 = vadd.f32 0.0, %v1354
  %v1356 = vpop.f32.mrf.mxu0
  %v1357 = vpop.f32.mrf.mxu0
  %v1358 = vadd.f32 0.0, %v1357
  %v1359 = vpop.f32.mrf.mxu0
  %1360 = vmatprep.mubr.bf16.mxu0 0
  %1361 = vmatmul.mubr.bf16.gmra.mxu0 %v184
  %v1362 = vpop.f32.mrf.mxu0
  %v1363 = vadd.f32 0.0, %v1362
  %v1364 = vpop.f32.mrf.mxu0
  %v1365 = vpop.f32.mrf.mxu0
  %v1366 = vadd.f32 0.0, %v1365
  %v1367 = vpop.f32.mrf.mxu0
  %1368 = vmatprep.mubr.bf16.mxu0 0
  %1369 = vmatmul.mubr.bf16.gmra.mxu0 %v187
  %v1370 = vpop.f32.mrf.mxu0
  %v1371 = vadd.f32 0.0, %v1370
  %v1372 = vpop.f32.mrf.mxu0
  %v1373 = vpop.f32.mrf.mxu0
  %v1374 = vadd.f32 0.0, %v1373
  %v1375 = vpop.f32.mrf.mxu0
  %1376 = vmatprep.mubr.bf16.mxu0 0
  %1377 = vmatmul.mubr.bf16.gmra.mxu0 %v190
  %v1378 = vpop.f32.mrf.mxu0
  %v1379 = vadd.f32 0.0, %v1378
  %v1380 = vpop.f32.mrf.mxu0
  %v1381 = vpop.f32.mrf.mxu0
  %v1382 = vadd.f32 0.0, %v1381
  %v1383 = vpop.f32.mrf.mxu0
  %1384 = vdwg.mxu0
  %v1385 = vpack.c.bf16 %v1293, %v1290
  %v1386 = vpack.c.bf16 %v1301, %v1298
  %v1387 = vpack.c.bf16 %v1309, %v1306
  %v1388 = vpack.c.bf16 %v1317, %v1314
  %v1393 = vunpack.c.l.b16 %v1242
  %v1394 = vunpack.c.l.b16 %v1243
  %v1395 = vunpack.c.l.b16 %v1244
  %v1396 = vunpack.c.l.b16 %v1245
  %v1397 = vpack.c.b16 %v1394, %v1393
  %v1398 = vpack.c.b16 %v1396, %v1395
  %v1402 = vsel %vm273, %v1385, 0
  %v1405 = vsel %vm273, %v1386, 0
  %v1408 = vsel %vm273, %v1387, 0
  %v1411 = vsel %vm273, %v1388, 0
  %1413 = vmatprep.subr.bf16.mxu0 0
  %1414 = vmatpush1.bf16.msra.mxu0 0
  %1415 = vmatprep.subr.bf16.mxu0 0
  %1416 = vmatpush1.bf16.msra.mxu0 0
  %1417 = vmatprep.subr.bf16.mxu0 0
  %1418 = vmatpush1.bf16.msra.mxu0 0
  %1419 = vmatprep.subr.bf16.mxu0 0
  %1420 = vmatpush1.bf16.msra.mxu0 0
  %1421 = vmatprep.subr.bf16.mxu0 0
  %1422 = vmatpush1.bf16.msra.mxu0 0
  %1423 = vmatprep.subr.bf16.mxu0 0
  %1424 = vmatpush1.bf16.msra.mxu0 0
  %1425 = vmatprep.subr.bf16.mxu0 0
  %1426 = vmatpush1.bf16.msra.mxu0 %v1398
  %1427 = vmatprep.subr.bf16.mxu0 0
  %1428 = vmatpush1.bf16.msra.mxu0 %v1397
  %1429 = vmatprep.subr.bf16.mxu0 0
  %1430 = vmatpush2.bf16.msra.mxu0 0
  %1431 = vmatprep.subr.bf16.mxu0 0
  %1432 = vmatpush2.bf16.msra.mxu0 0
  %1433 = vmatprep.subr.bf16.mxu0 0
  %1434 = vmatpush2.bf16.msra.mxu0 0
  %1435 = vmatprep.subr.bf16.mxu0 0
  %1436 = vmatpush2.bf16.msra.mxu0 0
  %1437 = vmatprep.subr.bf16.mxu0 0
  %1438 = vmatpush2.bf16.msra.mxu0 0
  %1439 = vmatprep.subr.bf16.mxu0 0
  %1440 = vmatpush2.bf16.msra.mxu0 0
  %1441 = vmatprep.subr.bf16.mxu0 0
  %1442 = vmatpush2.bf16.msra.mxu0 0
  %1443 = vmatprep.subr.bf16.mxu0 0
  %1444 = vmatpush2.bf16.msra.mxu0 0
  %1445 = vmatprep.mubr.bf16.mxu0 0
  %1446 = vmatmul.mubr.bf16.gmra.mxu0 %v1402
  %v1447 = vpop.f32.mrf.mxu0
  %v1448 = vadd.f32 0.0, %v1447
  %v1449 = vpop.f32.mrf.mxu0
  %v1450 = vpop.f32.mrf.mxu0
  %v1451 = vadd.f32 0.0, %v1450
  %v1452 = vpop.f32.mrf.mxu0
  %1453 = vmatprep.mubr.bf16.mxu0 0
  %1454 = vmatmul.mubr.bf16.gmra.mxu0 %v1405
  %v1455 = vpop.f32.mrf.mxu0
  %v1456 = vadd.f32 0.0, %v1455
  %v1457 = vpop.f32.mrf.mxu0
  %v1458 = vpop.f32.mrf.mxu0
  %v1459 = vadd.f32 0.0, %v1458
  %v1460 = vpop.f32.mrf.mxu0
  %1461 = vmatprep.mubr.bf16.mxu0 0
  %1462 = vmatmul.mubr.bf16.gmra.mxu0 %v1408
  %v1463 = vpop.f32.mrf.mxu0
  %v1464 = vadd.f32 0.0, %v1463
  %v1465 = vpop.f32.mrf.mxu0
  %v1466 = vpop.f32.mrf.mxu0
  %v1467 = vadd.f32 0.0, %v1466
  %v1468 = vpop.f32.mrf.mxu0
  %1469 = vmatprep.mubr.bf16.mxu0 0
  %1470 = vmatmul.mubr.bf16.gmra.mxu0 %v1411
  %v1471 = vpop.f32.mrf.mxu0
  %v1472 = vadd.f32 0.0, %v1471
  %v1473 = vpop.f32.mrf.mxu0
  %v1474 = vpop.f32.mrf.mxu0
  %v1475 = vadd.f32 0.0, %v1474
  %v1476 = vpop.f32.mrf.mxu0
  %1477 = vdwg.mxu0
  %v1482 = vunpack.c.l.b16 %v1238
  %v1483 = vunpack.c.l.b16 %v1239
  %v1484 = vunpack.c.l.b16 %v1240
  %v1485 = vunpack.c.l.b16 %v1241
  %v1486 = vpack.c.b16 %v1483, %v1482
  %v1487 = vpack.c.b16 %v1485, %v1484
  %v1491 = vsel %vm273, %v1251, 0
  %v1494 = vsel %vm273, %v1252, 0
  %v1497 = vsel %vm273, %v1253, 0
  %v1500 = vsel %vm273, %v1254, 0
  %1502 = vmatprep.subr.bf16.mxu0 0
  %1503 = vmatpush1.bf16.msra.mxu0 0
  %1504 = vmatprep.subr.bf16.mxu0 0
  %1505 = vmatpush1.bf16.msra.mxu0 0
  %1506 = vmatprep.subr.bf16.mxu0 0
  %1507 = vmatpush1.bf16.msra.mxu0 0
  %1508 = vmatprep.subr.bf16.mxu0 0
  %1509 = vmatpush1.bf16.msra.mxu0 0
  %1510 = vmatprep.subr.bf16.mxu0 0
  %1511 = vmatpush1.bf16.msra.mxu0 0
  %1512 = vmatprep.subr.bf16.mxu0 0
  %1513 = vmatpush1.bf16.msra.mxu0 0
  %1514 = vmatprep.subr.bf16.mxu0 0
  %1515 = vmatpush1.bf16.msra.mxu0 %v1487
  %1516 = vmatprep.subr.bf16.mxu0 0
  %1517 = vmatpush1.bf16.msra.mxu0 %v1486
  %1518 = vmatprep.subr.bf16.mxu0 0
  %1519 = vmatpush2.bf16.msra.mxu0 0
  %1520 = vmatprep.subr.bf16.mxu0 0
  %1521 = vmatpush2.bf16.msra.mxu0 0
  %1522 = vmatprep.subr.bf16.mxu0 0
  %1523 = vmatpush2.bf16.msra.mxu0 0
  %1524 = vmatprep.subr.bf16.mxu0 0
  %1525 = vmatpush2.bf16.msra.mxu0 0
  %1526 = vmatprep.subr.bf16.mxu0 0
  %1527 = vmatpush2.bf16.msra.mxu0 0
  %1528 = vmatprep.subr.bf16.mxu0 0
  %1529 = vmatpush2.bf16.msra.mxu0 0
  %1530 = vmatprep.subr.bf16.mxu0 0
  %1531 = vmatpush2.bf16.msra.mxu0 0
  %1532 = vmatprep.subr.bf16.mxu0 0
  %1533 = vmatpush2.bf16.msra.mxu0 0
  %1534 = vmatprep.mubr.bf16.mxu0 0
  %1535 = vmatmul.mubr.bf16.gmra.mxu0 %v1491
  %v1536 = vpop.f32.mrf.mxu0
  %v1537 = vadd.f32 %v1448, %v1536
  %v1538 = vpop.f32.mrf.mxu0
  %v1539 = vpop.f32.mrf.mxu0
  %v1540 = vadd.f32 %v1451, %v1539
  %v1541 = vpop.f32.mrf.mxu0
  %1542 = vmatprep.mubr.bf16.mxu0 0
  %1543 = vmatmul.mubr.bf16.gmra.mxu0 %v1494
  %v1544 = vpop.f32.mrf.mxu0
  %v1545 = vadd.f32 %v1456, %v1544
  %v1546 = vpop.f32.mrf.mxu0
  %v1547 = vpop.f32.mrf.mxu0
  %v1548 = vadd.f32 %v1459, %v1547
  %v1549 = vpop.f32.mrf.mxu0
  %1550 = vmatprep.mubr.bf16.mxu0 0
  %1551 = vmatmul.mubr.bf16.gmra.mxu0 %v1497
  %v1552 = vpop.f32.mrf.mxu0
  %v1553 = vadd.f32 %v1464, %v1552
  %v1554 = vpop.f32.mrf.mxu0
  %v1555 = vpop.f32.mrf.mxu0
  %v1556 = vadd.f32 %v1467, %v1555
  %v1557 = vpop.f32.mrf.mxu0
  %1558 = vmatprep.mubr.bf16.mxu0 0
  %1559 = vmatmul.mubr.bf16.gmra.mxu0 %v1500
  %v1560 = vpop.f32.mrf.mxu0
  %v1561 = vadd.f32 %v1472, %v1560
  %v1562 = vpop.f32.mrf.mxu0
  %v1563 = vpop.f32.mrf.mxu0
  %v1564 = vadd.f32 %v1475, %v1563
  %v1565 = vpop.f32.mrf.mxu0
  %1566 = vdwg.mxu0
  %v1567 = vpack.c.bf16 %v1358, %v1355
  %v1568 = vpack.c.bf16 %v1366, %v1363
  %v1569 = vpack.c.bf16 %v1374, %v1371
  %v1570 = vpack.c.bf16 %v1382, %v1379
  %v1575 = vunpack.c.l.b16 %v1246
  %v1576 = vunpack.c.l.b16 %v1247
  %v1577 = vunpack.c.l.b16 %v1248
  %v1578 = vunpack.c.l.b16 %v1249
  %v1579 = vpack.c.b16 %v1576, %v1575
  %v1580 = vpack.c.b16 %v1578, %v1577
  %v1584 = vsel %vm273, %v1567, 0
  %v1587 = vsel %vm273, %v1568, 0
  %v1590 = vsel %vm273, %v1569, 0
  %v1593 = vsel %vm273, %v1570, 0
  %1595 = vmatprep.subr.bf16.mxu0 0
  %1596 = vmatpush1.bf16.msra.mxu0 0
  %1597 = vmatprep.subr.bf16.mxu0 0
  %1598 = vmatpush1.bf16.msra.mxu0 0
  %1599 = vmatprep.subr.bf16.mxu0 0
  %1600 = vmatpush1.bf16.msra.mxu0 0
  %1601 = vmatprep.subr.bf16.mxu0 0
  %1602 = vmatpush1.bf16.msra.mxu0 0
  %1603 = vmatprep.subr.bf16.mxu0 0
  %1604 = vmatpush1.bf16.msra.mxu0 0
  %1605 = vmatprep.subr.bf16.mxu0 0
  %1606 = vmatpush1.bf16.msra.mxu0 0
  %1607 = vmatprep.subr.bf16.mxu0 0
  %1608 = vmatpush1.bf16.msra.mxu0 %v1580
  %1609 = vmatprep.subr.bf16.mxu0 0
  %1610 = vmatpush1.bf16.msra.mxu0 %v1579
  %1611 = vmatprep.subr.bf16.mxu0 0
  %1612 = vmatpush2.bf16.msra.mxu0 0
  %1613 = vmatprep.subr.bf16.mxu0 0
  %1614 = vmatpush2.bf16.msra.mxu0 0
  %1615 = vmatprep.subr.bf16.mxu0 0
  %1616 = vmatpush2.bf16.msra.mxu0 0
  %1617 = vmatprep.subr.bf16.mxu0 0
  %1618 = vmatpush2.bf16.msra.mxu0 0
  %1619 = vmatprep.subr.bf16.mxu0 0
  %1620 = vmatpush2.bf16.msra.mxu0 0
  %1621 = vmatprep.subr.bf16.mxu0 0
  %1622 = vmatpush2.bf16.msra.mxu0 0
  %1623 = vmatprep.subr.bf16.mxu0 0
  %1624 = vmatpush2.bf16.msra.mxu0 0
  %1625 = vmatprep.subr.bf16.mxu0 0
  %1626 = vmatpush2.bf16.msra.mxu0 0
  %1627 = vmatprep.mubr.bf16.mxu0 0
  %1628 = vmatmul.mubr.bf16.gmra.mxu0 %v1584
  %v1629 = vpop.f32.mrf.mxu0
  %v1630 = vadd.f32 0.0, %v1629
  %v1631 = vpop.f32.mrf.mxu0
  %v1632 = vpop.f32.mrf.mxu0
  %v1633 = vadd.f32 0.0, %v1632
  %v1634 = vpop.f32.mrf.mxu0
  %1635 = vmatprep.mubr.bf16.mxu0 0
  %1636 = vmatmul.mubr.bf16.gmra.mxu0 %v1587
  %v1637 = vpop.f32.mrf.mxu0
  %v1638 = vadd.f32 0.0, %v1637
  %v1639 = vpop.f32.mrf.mxu0
  %v1640 = vpop.f32.mrf.mxu0
  %v1641 = vadd.f32 0.0, %v1640
  %v1642 = vpop.f32.mrf.mxu0
  %1643 = vmatprep.mubr.bf16.mxu0 0
  %1644 = vmatmul.mubr.bf16.gmra.mxu0 %v1590
  %v1645 = vpop.f32.mrf.mxu0
  %v1646 = vadd.f32 0.0, %v1645
  %v1647 = vpop.f32.mrf.mxu0
  %v1648 = vpop.f32.mrf.mxu0
  %v1649 = vadd.f32 0.0, %v1648
  %v1650 = vpop.f32.mrf.mxu0
  %1651 = vmatprep.mubr.bf16.mxu0 0
  %1652 = vmatmul.mubr.bf16.gmra.mxu0 %v1593
  %v1653 = vpop.f32.mrf.mxu0
  %v1654 = vadd.f32 0.0, %v1653
  %v1655 = vpop.f32.mrf.mxu0
  %v1656 = vpop.f32.mrf.mxu0
  %v1657 = vadd.f32 0.0, %v1656
  %v1658 = vpop.f32.mrf.mxu0
  %1659 = vdwg.mxu0
  %v1660 = vadd.f32 %v1537, %v1630
  %v1661 = vadd.f32 %v1540, %v1633
  %v1662 = vadd.f32 %v1545, %v1638
  %v1663 = vadd.f32 %v1548, %v1641
  %v1664 = vadd.f32 %v1553, %v1646
  %v1665 = vadd.f32 %v1556, %v1649
  %v1666 = vadd.f32 %v1561, %v1654
  %v1667 = vadd.f32 %v1564, %v1657
  %v1668 = vlaneseq
  %v1669 = vshrl.u32 %v1668, 7
  %v1670 = vsub.s32 0, %v1669
  %v1671 = vrot.slane %v1250, %v1670
  %v1672 = vadd.f32 %v1660, %v1671
  %v1673 = vadd.f32 %v1661, %v1671
  %v1674 = vadd.f32 %v1662, %v1671
  %v1675 = vadd.f32 %v1663, %v1671
  %v1676 = vadd.f32 %v1664, %v1671
  %v1677 = vadd.f32 %v1665, %v1671
  %v1678 = vadd.f32 %v1666, %v1671
  %v1679 = vadd.f32 %v1667, %v1671
  %v1680 = vmax.f32 %v1672, 0.0
  %v1681 = vmax.f32 %v1673, 0.0
  %v1682 = vmax.f32 %v1674, 0.0
  %v1683 = vmax.f32 %v1675, 0.0
  %v1684 = vmax.f32 %v1676, 0.0
  %v1685 = vmax.f32 %v1677, 0.0
  %v1686 = vmax.f32 %v1678, 0.0
  %v1687 = vmax.f32 %v1679, 0.0
  %v1688 = vld [vmem:[%s4 + $0x6] sm:$0x1]
  %v1689 = vld [vmem:[%s4 + $0x9] sm:$0x1]
  %v1690 = vsel %vm273, %v1680, 0.0
  %v1691 = vsel %vm273, %v1681, 0.0
  %v1692 = vadd.f32 %v1690, %v1691
  %v1693 = vsel %vm273, %v1682, 0.0
  %v1694 = vadd.f32 %v1692, %v1693
  %v1695 = vsel %vm273, %v1683, 0.0
  %v1696 = vadd.f32 %v1694, %v1695
  %v1697 = vsel %vm273, %v1684, 0.0
  %v1698 = vadd.f32 %v1696, %v1697
  %v1699 = vsel %vm273, %v1685, 0.0
  %v1700 = vadd.f32 %v1698, %v1699
  %v1701 = vsel %vm273, %v1686, 0.0
  %v1702 = vadd.f32 %v1700, %v1701
  %v1703 = vsel %vm273, %v1687, 0.0
  %v1704 = vadd.f32 %v1702, %v1703
  %v1705 = vrot.slane %v1704, 4
  %v1706 = vadd.f32 %v1704, %v1705
  %v1707 = vrot.slane %v1706, 2
  %v1708 = vadd.f32 %v1706, %v1707
  %v1709 = vrot.slane %v1708, 1
  %v1710 = vadd.f32 %v1708, %v1709
  %v1711 = vmul.f32 %v1710, %v600
  %v1712 = vsub.f32 %v1680, %v1711
  %v1713 = vsub.f32 %v1681, %v1711
  %v1714 = vsub.f32 %v1682, %v1711
  %v1715 = vsub.f32 %v1683, %v1711
  %v1716 = vsub.f32 %v1684, %v1711
  %v1717 = vsub.f32 %v1685, %v1711
  %v1718 = vsub.f32 %v1686, %v1711
  %v1719 = vsub.f32 %v1687, %v1711
  %v1720 = vmul.f32 %v1712, %v1712
  %v1721 = vmul.f32 %v1713, %v1713
  %v1722 = vmul.f32 %v1714, %v1714
  %v1723 = vmul.f32 %v1715, %v1715
  %v1724 = vmul.f32 %v1716, %v1716
  %v1725 = vmul.f32 %v1717, %v1717
  %v1726 = vmul.f32 %v1718, %v1718
  %v1727 = vmul.f32 %v1719, %v1719
  %v1728 = vsel %vm273, %v1720, 0.0
  %v1729 = vsel %vm273, %v1721, 0.0
  %v1730 = vadd.f32 %v1728, %v1729
  %v1731 = vsel %vm273, %v1722, 0.0
  %v1732 = vadd.f32 %v1730, %v1731
  %v1733 = vsel %vm273, %v1723, 0.0
  %v1734 = vadd.f32 %v1732, %v1733
  %v1735 = vsel %vm273, %v1724, 0.0
  %v1736 = vadd.f32 %v1734, %v1735
  %v1737 = vsel %vm273, %v1725, 0.0
  %v1738 = vadd.f32 %v1736, %v1737
  %v1739 = vsel %vm273, %v1726, 0.0
  %v1740 = vadd.f32 %v1738, %v1739
  %v1741 = vsel %vm273, %v1727, 0.0
  %v1742 = vadd.f32 %v1740, %v1741
  %v1743 = vrot.slane %v1742, 4
  %v1744 = vadd.f32 %v1742, %v1743
  %v1745 = vrot.slane %v1744, 2
  %v1746 = vadd.f32 %v1744, %v1745
  %v1747 = vrot.slane %v1746, 1
  %v1748 = vadd.f32 %v1746, %v1747
  %v1749 = vmul.f32 %v1748, %v600
  %v1750 = vadd.f32 %v1749, 1e-05
  %v1751 = vrsqrt.pop %v1750
  %v1752 = vmul.f32 %v1712, %v1751
  %v1753 = vmul.f32 %v1713, %v1751
  %v1754 = vmul.f32 %v1714, %v1751
  %v1755 = vmul.f32 %v1715, %v1751
  %v1756 = vmul.f32 %v1716, %v1751
  %v1757 = vmul.f32 %v1717, %v1751
  %v1758 = vmul.f32 %v1718, %v1751
  %v1759 = vmul.f32 %v1719, %v1751
  %v1760 = vlaneseq
  %v1761 = vshrl.u32 %v1760, 7
  %v1762 = vsub.s32 0, %v1761
  %v1763 = vrot.slane %v1688, %v1762
  %v1764 = vmul.f32 %v1752, %v1763
  %v1765 = vmul.f32 %v1753, %v1763
  %v1766 = vmul.f32 %v1754, %v1763
  %v1767 = vmul.f32 %v1755, %v1763
  %v1768 = vmul.f32 %v1756, %v1763
  %v1769 = vmul.f32 %v1757, %v1763
  %v1770 = vmul.f32 %v1758, %v1763
  %v1771 = vmul.f32 %v1759, %v1763
  %v1772 = vlaneseq
  %v1773 = vshrl.u32 %v1772, 7
  %v1774 = vsub.s32 0, %v1773
  %v1775 = vrot.slane %v1689, %v1774
  %v1776 = vadd.f32 %v1764, %v1775
  %v1777 = vadd.f32 %v1765, %v1775
  %v1778 = vadd.f32 %v1766, %v1775
  %v1779 = vadd.f32 %v1767, %v1775
  %v1780 = vadd.f32 %v1768, %v1775
  %v1781 = vadd.f32 %v1769, %v1775
  %v1782 = vadd.f32 %v1770, %v1775
  %v1783 = vadd.f32 %v1771, %v1775
  %s1784 = scalar_lea.vmem %s3, 144
  %v1785 = vld [vmem:[%s1784] sm:$0xf]
  %v1786 = vld [vmem:[%s1784 + $0x4] sm:$0xf]
  %v1787 = vld [vmem:[%s1784 + $0x8] sm:$0xf]
  %v1788 = vld [vmem:[%s1784 + $0xc] sm:$0xf]
  %v1789 = vld [vmem:[%s1784 + $0x10] sm:$0xf]
  %v1790 = vld [vmem:[%s1784 + $0x14] sm:$0xf]
  %v1791 = vld [vmem:[%s1784 + $0x18] sm:$0xf]
  %v1792 = vld [vmem:[%s1784 + $0x1c] sm:$0xf]
  %v1793 = vld [vmem:[%s1784 + $0x20] sm:$0xf]
  %v1794 = vld [vmem:[%s1784 + $0x24] sm:$0xf]
  %v1795 = vld [vmem:[%s1784 + $0x28] sm:$0xf]
  %v1796 = vld [vmem:[%s1784 + $0x2c] sm:$0xf]
  %v1797 = vld [vmem:[%s4 + $0x3] sm:$0x1]
  %v1798 = vpack.c.bf16 %v1777, %v1776
  %v1799 = vpack.c.bf16 %v1779, %v1778
  %v1800 = vpack.c.bf16 %v1781, %v1780
  %v1801 = vpack.c.bf16 %v1783, %v1782
  %1802 = vmatprep.subr.bf16.mxu0 0
  %1803 = vmatpush1.bf16.msra.mxu0 0
  %1804 = vmatprep.subr.bf16.mxu0 0
  %1805 = vmatpush1.bf16.msra.mxu0 0
  %1806 = vmatprep.subr.bf16.mxu0 0
  %1807 = vmatpush1.bf16.msra.mxu0 0
  %1808 = vmatprep.subr.bf16.mxu0 0
  %1809 = vmatpush1.bf16.msra.mxu0 0
  %1810 = vmatprep.subr.bf16.mxu0 0
  %1811 = vmatpush1.bf16.msra.mxu0 %v1801
  %1812 = vmatprep.subr.bf16.mxu0 0
  %1813 = vmatpush1.bf16.msra.mxu0 %v1800
  %1814 = vmatprep.subr.bf16.mxu0 0
  %1815 = vmatpush1.bf16.msra.mxu0 %v1799
  %1816 = vmatprep.subr.bf16.mxu0 0
  %1817 = vmatpush1.bf16.msra.mxu0 %v1798
  %1818 = vmatprep.subr.bf16.mxu0 0
  %1819 = vmatpush2.bf16.msra.mxu0 0
  %1820 = vmatprep.subr.bf16.mxu0 0
  %1821 = vmatpush2.bf16.msra.mxu0 0
  %1822 = vmatprep.subr.bf16.mxu0 0
  %1823 = vmatpush2.bf16.msra.mxu0 0
  %1824 = vmatprep.subr.bf16.mxu0 0
  %1825 = vmatpush2.bf16.msra.mxu0 0
  %1826 = vmatprep.subr.bf16.mxu0 0
  %1827 = vmatpush2.bf16.msra.mxu0 0
  %1828 = vmatprep.subr.bf16.mxu0 0
  %1829 = vmatpush2.bf16.msra.mxu0 0
  %1830 = vmatprep.subr.bf16.mxu0 0
  %1831 = vmatpush2.bf16.msra.mxu0 0
  %1832 = vmatprep.subr.bf16.mxu0 0
  %1833 = vmatpush2.bf16.msra.mxu0 0
  %1834 = vmatprep.mubr.bf16.mxu0 0
  %1835 = vmatmul.mubr.bf16.gmra.mxu0 %v84
  %v1836 = vpop.f32.mrf.mxu0
  %v1837 = vadd.f32 0.0, %v1836
  %v1838 = vpop.f32.mrf.mxu0
  %v1839 = vpop.f32.mrf.mxu0
  %v1840 = vadd.f32 0.0, %v1839
  %v1841 = vpop.f32.mrf.mxu0
  %1842 = vmatprep.mubr.bf16.mxu0 0
  %1843 = vmatmul.mubr.bf16.gmra.mxu0 %v87
  %v1844 = vpop.f32.mrf.mxu0
  %v1845 = vadd.f32 0.0, %v1844
  %v1846 = vpop.f32.mrf.mxu0
  %v1847 = vpop.f32.mrf.mxu0
  %v1848 = vadd.f32 0.0, %v1847
  %v1849 = vpop.f32.mrf.mxu0
  %1850 = vmatprep.mubr.bf16.mxu0 0
  %1851 = vmatmul.mubr.bf16.gmra.mxu0 %v90
  %v1852 = vpop.f32.mrf.mxu0
  %v1853 = vadd.f32 0.0, %v1852
  %v1854 = vpop.f32.mrf.mxu0
  %v1855 = vpop.f32.mrf.mxu0
  %v1856 = vadd.f32 0.0, %v1855
  %v1857 = vpop.f32.mrf.mxu0
  %1858 = vmatprep.mubr.bf16.mxu0 0
  %1859 = vmatmul.mubr.bf16.gmra.mxu0 %v93
  %v1860 = vpop.f32.mrf.mxu0
  %v1861 = vadd.f32 0.0, %v1860
  %v1862 = vpop.f32.mrf.mxu0
  %v1863 = vpop.f32.mrf.mxu0
  %v1864 = vadd.f32 0.0, %v1863
  %v1865 = vpop.f32.mrf.mxu0
  %1866 = vdwg.mxu0
  %1867 = vmatprep.subr.bf16.mxu0 0
  %1868 = vmatpush1.bf16.msra.mxu0 0
  %1869 = vmatprep.subr.bf16.mxu0 0
  %1870 = vmatpush1.bf16.msra.mxu0 0
  %1871 = vmatprep.subr.bf16.mxu0 0
  %1872 = vmatpush1.bf16.msra.mxu0 0
  %1873 = vmatprep.subr.bf16.mxu0 0
  %1874 = vmatpush1.bf16.msra.mxu0 0
  %1875 = vmatprep.subr.bf16.mxu0 0
  %1876 = vmatpush1.bf16.msra.mxu0 %v1801
  %1877 = vmatprep.subr.bf16.mxu0 0
  %1878 = vmatpush1.bf16.msra.mxu0 %v1800
  %1879 = vmatprep.subr.bf16.mxu0 0
  %1880 = vmatpush1.bf16.msra.mxu0 %v1799
  %1881 = vmatprep.subr.bf16.mxu0 0
  %1882 = vmatpush1.bf16.msra.mxu0 %v1798
  %1883 = vmatprep.subr.bf16.mxu0 0
  %1884 = vmatpush2.bf16.msra.mxu0 0
  %1885 = vmatprep.subr.bf16.mxu0 0
  %1886 = vmatpush2.bf16.msra.mxu0 0
  %1887 = vmatprep.subr.bf16.mxu0 0
  %1888 = vmatpush2.bf16.msra.mxu0 0
  %1889 = vmatprep.subr.bf16.mxu0 0
  %1890 = vmatpush2.bf16.msra.mxu0 0
  %1891 = vmatprep.subr.bf16.mxu0 0
  %1892 = vmatpush2.bf16.msra.mxu0 0
  %1893 = vmatprep.subr.bf16.mxu0 0
  %1894 = vmatpush2.bf16.msra.mxu0 0
  %1895 = vmatprep.subr.bf16.mxu0 0
  %1896 = vmatpush2.bf16.msra.mxu0 0
  %1897 = vmatprep.subr.bf16.mxu0 0
  %1898 = vmatpush2.bf16.msra.mxu0 0
  %1899 = vmatprep.mubr.bf16.mxu0 0
  %1900 = vmatmul.mubr.bf16.gmra.mxu0 %v181
  %v1901 = vpop.f32.mrf.mxu0
  %v1902 = vadd.f32 0.0, %v1901
  %v1903 = vpop.f32.mrf.mxu0
  %v1904 = vpop.f32.mrf.mxu0
  %v1905 = vadd.f32 0.0, %v1904
  %v1906 = vpop.f32.mrf.mxu0
  %1907 = vmatprep.mubr.bf16.mxu0 0
  %1908 = vmatmul.mubr.bf16.gmra.mxu0 %v184
  %v1909 = vpop.f32.mrf.mxu0
  %v1910 = vadd.f32 0.0, %v1909
  %v1911 = vpop.f32.mrf.mxu0
  %v1912 = vpop.f32.mrf.mxu0
  %v1913 = vadd.f32 0.0, %v1912
  %v1914 = vpop.f32.mrf.mxu0
  %1915 = vmatprep.mubr.bf16.mxu0 0
  %1916 = vmatmul.mubr.bf16.gmra.mxu0 %v187
  %v1917 = vpop.f32.mrf.mxu0
  %v1918 = vadd.f32 0.0, %v1917
  %v1919 = vpop.f32.mrf.mxu0
  %v1920 = vpop.f32.mrf.mxu0
  %v1921 = vadd.f32 0.0, %v1920
  %v1922 = vpop.f32.mrf.mxu0
  %1923 = vmatprep.mubr.bf16.mxu0 0
  %1924 = vmatmul.mubr.bf16.gmra.mxu0 %v190
  %v1925 = vpop.f32.mrf.mxu0
  %v1926 = vadd.f32 0.0, %v1925
  %v1927 = vpop.f32.mrf.mxu0
  %v1928 = vpop.f32.mrf.mxu0
  %v1929 = vadd.f32 0.0, %v1928
  %v1930 = vpop.f32.mrf.mxu0
  %1931 = vdwg.mxu0
  %v1932 = vpack.c.bf16 %v1840, %v1837
  %v1933 = vpack.c.bf16 %v1848, %v1845
  %v1934 = vpack.c.bf16 %v1856, %v1853
  %v1935 = vpack.c.bf16 %v1864, %v1861
  %v1940 = vunpack.c.l.b16 %v1789
  %v1941 = vunpack.c.l.b16 %v1790
  %v1942 = vunpack.c.l.b16 %v1791
  %v1943 = vunpack.c.l.b16 %v1792
  %v1944 = vpack.c.b16 %v1941, %v1940
  %v1945 = vpack.c.b16 %v1943, %v1942
  %v1949 = vsel %vm273, %v1932, 0
  %v1952 = vsel %vm273, %v1933, 0
  %v1955 = vsel %vm273, %v1934, 0
  %v1958 = vsel %vm273, %v1935, 0
  %1960 = vmatprep.subr.bf16.mxu0 0
  %1961 = vmatpush1.bf16.msra.mxu0 0
  %1962 = vmatprep.subr.bf16.mxu0 0
  %1963 = vmatpush1.bf16.msra.mxu0 0
  %1964 = vmatprep.subr.bf16.mxu0 0
  %1965 = vmatpush1.bf16.msra.mxu0 0
  %1966 = vmatprep.subr.bf16.mxu0 0
  %1967 = vmatpush1.bf16.msra.mxu0 0
  %1968 = vmatprep.subr.bf16.mxu0 0
  %1969 = vmatpush1.bf16.msra.mxu0 0
  %1970 = vmatprep.subr.bf16.mxu0 0
  %1971 = vmatpush1.bf16.msra.mxu0 0
  %1972 = vmatprep.subr.bf16.mxu0 0
  %1973 = vmatpush1.bf16.msra.mxu0 %v1945
  %1974 = vmatprep.subr.bf16.mxu0 0
  %1975 = vmatpush1.bf16.msra.mxu0 %v1944
  %1976 = vmatprep.subr.bf16.mxu0 0
  %1977 = vmatpush2.bf16.msra.mxu0 0
  %1978 = vmatprep.subr.bf16.mxu0 0
  %1979 = vmatpush2.bf16.msra.mxu0 0
  %1980 = vmatprep.subr.bf16.mxu0 0
  %1981 = vmatpush2.bf16.msra.mxu0 0
  %1982 = vmatprep.subr.bf16.mxu0 0
  %1983 = vmatpush2.bf16.msra.mxu0 0
  %1984 = vmatprep.subr.bf16.mxu0 0
  %1985 = vmatpush2.bf16.msra.mxu0 0
  %1986 = vmatprep.subr.bf16.mxu0 0
  %1987 = vmatpush2.bf16.msra.mxu0 0
  %1988 = vmatprep.subr.bf16.mxu0 0
  %1989 = vmatpush2.bf16.msra.mxu0 0
  %1990 = vmatprep.subr.bf16.mxu0 0
  %1991 = vmatpush2.bf16.msra.mxu0 0
  %1992 = vmatprep.mubr.bf16.mxu0 0
  %1993 = vmatmul.mubr.bf16.gmra.mxu0 %v1949
  %v1994 = vpop.f32.mrf.mxu0
  %v1995 = vadd.f32 0.0, %v1994
  %v1996 = vpop.f32.mrf.mxu0
  %v1997 = vpop.f32.mrf.mxu0
  %v1998 = vadd.f32 0.0, %v1997
  %v1999 = vpop.f32.mrf.mxu0
  %2000 = vmatprep.mubr.bf16.mxu0 0
  %2001 = vmatmul.mubr.bf16.gmra.mxu0 %v1952
  %v2002 = vpop.f32.mrf.mxu0
  %v2003 = vadd.f32 0.0, %v2002
  %v2004 = vpop.f32.mrf.mxu0
  %v2005 = vpop.f32.mrf.mxu0
  %v2006 = vadd.f32 0.0, %v2005
  %v2007 = vpop.f32.mrf.mxu0
  %2008 = vmatprep.mubr.bf16.mxu0 0
  %2009 = vmatmul.mubr.bf16.gmra.mxu0 %v1955
  %v2010 = vpop.f32.mrf.mxu0
  %v2011 = vadd.f32 0.0, %v2010
  %v2012 = vpop.f32.mrf.mxu0
  %v2013 = vpop.f32.mrf.mxu0
  %v2014 = vadd.f32 0.0, %v2013
  %v2015 = vpop.f32.mrf.mxu0
  %2016 = vmatprep.mubr.bf16.mxu0 0
  %2017 = vmatmul.mubr.bf16.gmra.mxu0 %v1958
  %v2018 = vpop.f32.mrf.mxu0
  %v2019 = vadd.f32 0.0, %v2018
  %v2020 = vpop.f32.mrf.mxu0
  %v2021 = vpop.f32.mrf.mxu0
  %v2022 = vadd.f32 0.0, %v2021
  %v2023 = vpop.f32.mrf.mxu0
  %2024 = vdwg.mxu0
  %v2029 = vunpack.c.l.b16 %v1785
  %v2030 = vunpack.c.l.b16 %v1786
  %v2031 = vunpack.c.l.b16 %v1787
  %v2032 = vunpack.c.l.b16 %v1788
  %v2033 = vpack.c.b16 %v2030, %v2029
  %v2034 = vpack.c.b16 %v2032, %v2031
  %v2038 = vsel %vm273, %v1798, 0
  %v2041 = vsel %vm273, %v1799, 0
  %v2044 = vsel %vm273, %v1800, 0
  %v2047 = vsel %vm273, %v1801, 0
  %2049 = vmatprep.subr.bf16.mxu0 0
  %2050 = vmatpush1.bf16.msra.mxu0 0
  %2051 = vmatprep.subr.bf16.mxu0 0
  %2052 = vmatpush1.bf16.msra.mxu0 0
  %2053 = vmatprep.subr.bf16.mxu0 0
  %2054 = vmatpush1.bf16.msra.mxu0 0
  %2055 = vmatprep.subr.bf16.mxu0 0
  %2056 = vmatpush1.bf16.msra.mxu0 0
  %2057 = vmatprep.subr.bf16.mxu0 0
  %2058 = vmatpush1.bf16.msra.mxu0 0
  %2059 = vmatprep.subr.bf16.mxu0 0
  %2060 = vmatpush1.bf16.msra.mxu0 0
  %2061 = vmatprep.subr.bf16.mxu0 0
  %2062 = vmatpush1.bf16.msra.mxu0 %v2034
  %2063 = vmatprep.subr.bf16.mxu0 0
  %2064 = vmatpush1.bf16.msra.mxu0 %v2033
  %2065 = vmatprep.subr.bf16.mxu0 0
  %2066 = vmatpush2.bf16.msra.mxu0 0
  %2067 = vmatprep.subr.bf16.mxu0 0
  %2068 = vmatpush2.bf16.msra.mxu0 0
  %2069 = vmatprep.subr.bf16.mxu0 0
  %2070 = vmatpush2.bf16.msra.mxu0 0
  %2071 = vmatprep.subr.bf16.mxu0 0
  %2072 = vmatpush2.bf16.msra.mxu0 0
  %2073 = vmatprep.subr.bf16.mxu0 0
  %2074 = vmatpush2.bf16.msra.mxu0 0
  %2075 = vmatprep.subr.bf16.mxu0 0
  %2076 = vmatpush2.bf16.msra.mxu0 0
  %2077 = vmatprep.subr.bf16.mxu0 0
  %2078 = vmatpush2.bf16.msra.mxu0 0
  %2079 = vmatprep.subr.bf16.mxu0 0
  %2080 = vmatpush2.bf16.msra.mxu0 0
  %2081 = vmatprep.mubr.bf16.mxu0 0
  %2082 = vmatmul.mubr.bf16.gmra.mxu0 %v2038
  %v2083 = vpop.f32.mrf.mxu0
  %v2084 = vadd.f32 %v1995, %v2083
  %v2085 = vpop.f32.mrf.mxu0
  %v2086 = vpop.f32.mrf.mxu0
  %v2087 = vadd.f32 %v1998, %v2086
  %v2088 = vpop.f32.mrf.mxu0
  %2089 = vmatprep.mubr.bf16.mxu0 0
  %2090 = vmatmul.mubr.bf16.gmra.mxu0 %v2041
  %v2091 = vpop.f32.mrf.mxu0
  %v2092 = vadd.f32 %v2003, %v2091
  %v2093 = vpop.f32.mrf.mxu0
  %v2094 = vpop.f32.mrf.mxu0
  %v2095 = vadd.f32 %v2006, %v2094
  %v2096 = vpop.f32.mrf.mxu0
  %2097 = vmatprep.mubr.bf16.mxu0 0
  %2098 = vmatmul.mubr.bf16.gmra.mxu0 %v2044
  %v2099 = vpop.f32.mrf.mxu0
  %v2100 = vadd.f32 %v2011, %v2099
  %v2101 = vpop.f32.mrf.mxu0
  %v2102 = vpop.f32.mrf.mxu0
  %v2103 = vadd.f32 %v2014, %v2102
  %v2104 = vpop.f32.mrf.mxu0
  %2105 = vmatprep.mubr.bf16.mxu0 0
  %2106 = vmatmul.mubr.bf16.gmra.mxu0 %v2047
  %v2107 = vpop.f32.mrf.mxu0
  %v2108 = vadd.f32 %v2019, %v2107
  %v2109 = vpop.f32.mrf.mxu0
  %v2110 = vpop.f32.mrf.mxu0
  %v2111 = vadd.f32 %v2022, %v2110
  %v2112 = vpop.f32.mrf.mxu0
  %2113 = vdwg.mxu0
  %v2114 = vpack.c.bf16 %v1905, %v1902
  %v2115 = vpack.c.bf16 %v1913, %v1910
  %v2116 = vpack.c.bf16 %v1921, %v1918
  %v2117 = vpack.c.bf16 %v1929, %v1926
  %v2122 = vunpack.c.l.b16 %v1793
  %v2123 = vunpack.c.l.b16 %v1794
  %v2124 = vunpack.c.l.b16 %v1795
  %v2125 = vunpack.c.l.b16 %v1796
  %v2126 = vpack.c.b16 %v2123, %v2122
  %v2127 = vpack.c.b16 %v2125, %v2124
  %v2131 = vsel %vm273, %v2114, 0
  %v2134 = vsel %vm273, %v2115, 0
  %v2137 = vsel %vm273, %v2116, 0
  %v2140 = vsel %vm273, %v2117, 0
  %2142 = vmatprep.subr.bf16.mxu0 0
  %2143 = vmatpush1.bf16.msra.mxu0 0
  %2144 = vmatprep.subr.bf16.mxu0 0
  %2145 = vmatpush1.bf16.msra.mxu0 0
  %2146 = vmatprep.subr.bf16.mxu0 0
  %2147 = vmatpush1.bf16.msra.mxu0 0
  %2148 = vmatprep.subr.bf16.mxu0 0
  %2149 = vmatpush1.bf16.msra.mxu0 0
  %2150 = vmatprep.subr.bf16.mxu0 0
  %2151 = vmatpush1.bf16.msra.mxu0 0
  %2152 = vmatprep.subr.bf16.mxu0 0
  %2153 = vmatpush1.bf16.msra.mxu0 0
  %2154 = vmatprep.subr.bf16.mxu0 0
  %2155 = vmatpush1.bf16.msra.mxu0 %v2127
  %2156 = vmatprep.subr.bf16.mxu0 0
  %2157 = vmatpush1.bf16.msra.mxu0 %v2126
  %2158 = vmatprep.subr.bf16.mxu0 0
  %2159 = vmatpush2.bf16.msra.mxu0 0
  %2160 = vmatprep.subr.bf16.mxu0 0
  %2161 = vmatpush2.bf16.msra.mxu0 0
  %2162 = vmatprep.subr.bf16.mxu0 0
  %2163 = vmatpush2.bf16.msra.mxu0 0
  %2164 = vmatprep.subr.bf16.mxu0 0
  %2165 = vmatpush2.bf16.msra.mxu0 0
  %2166 = vmatprep.subr.bf16.mxu0 0
  %2167 = vmatpush2.bf16.msra.mxu0 0
  %2168 = vmatprep.subr.bf16.mxu0 0
  %2169 = vmatpush2.bf16.msra.mxu0 0
  %2170 = vmatprep.subr.bf16.mxu0 0
  %2171 = vmatpush2.bf16.msra.mxu0 0
  %2172 = vmatprep.subr.bf16.mxu0 0
  %2173 = vmatpush2.bf16.msra.mxu0 0
  %2174 = vmatprep.mubr.bf16.mxu0 0
  %2175 = vmatmul.mubr.bf16.gmra.mxu0 %v2131
  %v2176 = vpop.f32.mrf.mxu0
  %v2177 = vadd.f32 0.0, %v2176
  %v2178 = vpop.f32.mrf.mxu0
  %v2179 = vpop.f32.mrf.mxu0
  %v2180 = vadd.f32 0.0, %v2179
  %v2181 = vpop.f32.mrf.mxu0
  %2182 = vmatprep.mubr.bf16.mxu0 0
  %2183 = vmatmul.mubr.bf16.gmra.mxu0 %v2134
  %v2184 = vpop.f32.mrf.mxu0
  %v2185 = vadd.f32 0.0, %v2184
  %v2186 = vpop.f32.mrf.mxu0
  %v2187 = vpop.f32.mrf.mxu0
  %v2188 = vadd.f32 0.0, %v2187
  %v2189 = vpop.f32.mrf.mxu0
  %2190 = vmatprep.mubr.bf16.mxu0 0
  %2191 = vmatmul.mubr.bf16.gmra.mxu0 %v2137
  %v2192 = vpop.f32.mrf.mxu0
  %v2193 = vadd.f32 0.0, %v2192
  %v2194 = vpop.f32.mrf.mxu0
  %v2195 = vpop.f32.mrf.mxu0
  %v2196 = vadd.f32 0.0, %v2195
  %v2197 = vpop.f32.mrf.mxu0
  %2198 = vmatprep.mubr.bf16.mxu0 0
  %2199 = vmatmul.mubr.bf16.gmra.mxu0 %v2140
  %v2200 = vpop.f32.mrf.mxu0
  %v2201 = vadd.f32 0.0, %v2200
  %v2202 = vpop.f32.mrf.mxu0
  %v2203 = vpop.f32.mrf.mxu0
  %v2204 = vadd.f32 0.0, %v2203
  %v2205 = vpop.f32.mrf.mxu0
  %2206 = vdwg.mxu0
  %v2207 = vadd.f32 %v2084, %v2177
  %v2208 = vadd.f32 %v2087, %v2180
  %v2209 = vadd.f32 %v2092, %v2185
  %v2210 = vadd.f32 %v2095, %v2188
  %v2211 = vadd.f32 %v2100, %v2193
  %v2212 = vadd.f32 %v2103, %v2196
  %v2213 = vadd.f32 %v2108, %v2201
  %v2214 = vadd.f32 %v2111, %v2204
  %v2215 = vlaneseq
  %v2216 = vshrl.u32 %v2215, 7
  %v2217 = vsub.s32 0, %v2216
  %v2218 = vrot.slane %v1797, %v2217
  %v2219 = vadd.f32 %v2207, %v2218
  %v2220 = vadd.f32 %v2208, %v2218
  %v2221 = vadd.f32 %v2209, %v2218
  %v2222 = vadd.f32 %v2210, %v2218
  %v2223 = vadd.f32 %v2211, %v2218
  %v2224 = vadd.f32 %v2212, %v2218
  %v2225 = vadd.f32 %v2213, %v2218
  %v2226 = vadd.f32 %v2214, %v2218
  %v2227 = vmul.f32 %v2219, %v2219
  %v2228 = vmul.f32 %v2220, %v2220
  %v2229 = vmul.f32 %v2221, %v2221
  %v2230 = vmul.f32 %v2222, %v2222
  %v2231 = vmul.f32 %v2223, %v2223
  %v2232 = vmul.f32 %v2224, %v2224
  %v2233 = vmul.f32 %v2225, %v2225
  %v2234 = vmul.f32 %v2226, %v2226
  %v2235 = vsel %vm273, %v2227, 0.0
  %2236 = vadd.xlane.f32.xlu0 %v2235
  %v2237 = vpop.xlane.xlu0 %2236
  %v2238 = vsel %vm273, %v2228, 0.0
  %2239 = vadd.xlane.f32.xlu0 %v2238
  %v2240 = vpop.xlane.xlu0 %2239
  %v2241 = vsel %vm273, %v2229, 0.0
  %2242 = vadd.xlane.f32.xlu0 %v2241
  %v2243 = vpop.xlane.xlu0 %2242
  %v2244 = vsel %vm273, %v2230, 0.0
  %2245 = vadd.xlane.f32.xlu0 %v2244
  %v2246 = vpop.xlane.xlu0 %2245
  %v2247 = vsel %vm273, %v2231, 0.0
  %2248 = vadd.xlane.f32.xlu0 %v2247
  %v2249 = vpop.xlane.xlu0 %2248
  %v2250 = vsel %vm273, %v2232, 0.0
  %2251 = vadd.xlane.f32.xlu0 %v2250
  %v2252 = vpop.xlane.xlu0 %2251
  %v2253 = vsel %vm273, %v2233, 0.0
  %2254 = vadd.xlane.f32.xlu0 %v2253
  %v2255 = vpop.xlane.xlu0 %2254
  %v2256 = vsel %vm273, %v2234, 0.0
  %2257 = vadd.xlane.f32.xlu0 %v2256
  %v2258 = vpop.xlane.xlu0 %2257
  %v2259 = vmax.f32 %v2237, 1e-24
  %v2260 = vmax.f32 %v2240, 1e-24
  %v2261 = vmax.f32 %v2243, 1e-24
  %v2262 = vmax.f32 %v2246, 1e-24
  %v2263 = vmax.f32 %v2249, 1e-24
  %v2264 = vmax.f32 %v2252, 1e-24
  %v2265 = vmax.f32 %v2255, 1e-24
  %v2266 = vmax.f32 %v2258, 1e-24
  %v2267 = vrsqrt.pop %v2259
  %v2268 = vrsqrt.pop %v2260
  %v2269 = vrsqrt.pop %v2261
  %v2270 = vrsqrt.pop %v2262
  %v2271 = vrsqrt.pop %v2263
  %v2272 = vrsqrt.pop %v2264
  %v2273 = vrsqrt.pop %v2265
  %v2274 = vrsqrt.pop %v2266
  %v2275 = vmul.f32 %v2219, %v2267
  %v2276 = vmul.f32 %v2220, %v2268
  %v2277 = vmul.f32 %v2221, %v2269
  %v2278 = vmul.f32 %v2222, %v2270
  %v2279 = vmul.f32 %v2223, %v2271
  %v2280 = vmul.f32 %v2224, %v2272
  %v2281 = vmul.f32 %v2225, %v2273
  %v2282 = vmul.f32 %v2226, %v2274
  %v2283 = vld [vmem:[%s4 + $0x10] sm:$0xff]
  %v2284 = vld [vmem:[%s4 + $0x18] sm:$0xff]
  %v2285 = vld [vmem:[%s4 + $0x20] sm:$0xff]
  %v2286 = vld [vmem:[%s4 + $0x28] sm:$0xff]
  %v2287 = vpack.c.bf16 %v2284, %v2283
  %v2288 = vpack.c.bf16 %v2286, %v2285
  %v2289 = vpack.c.bf16 %v2276, %v2275
  %v2290 = vpack.c.bf16 %v2278, %v2277
  %v2291 = vpack.c.bf16 %v2280, %v2279
  %v2292 = vpack.c.bf16 %v2282, %v2281
  %v2293 = vld [vmem:[%s4 + $0xa] sm:$0x1]
  %v2294 = vlaneseq
  %v2295 = vshrl.u32 %v2294, 7
  %v2296 = vsub.s32 0, %v2295
  %v2297 = vrot.slane %v2293, %v2296
  %v2299 = vsel %vm273, %v2289, 0
  %v2302 = vsel %vm273, %v2290, 0
  %v2305 = vsel %vm273, %v2291, 0
  %v2308 = vsel %vm273, %v2292, 0
  %2310 = vmatprep.subr.bf16.mxu0 0
  %2311 = vmatpush1.bf16.msra.mxu0 0
  %2312 = vmatprep.subr.bf16.mxu0 0
  %2313 = vmatpush1.bf16.msra.mxu0 0
  %2314 = vmatprep.subr.bf16.mxu0 0
  %2315 = vmatpush1.bf16.msra.mxu0 0
  %2316 = vmatprep.subr.bf16.mxu0 0
  %2317 = vmatpush1.bf16.msra.mxu0 0
  %2318 = vmatprep.subr.bf16.mxu0 0
  %2319 = vmatpush1.bf16.msra.mxu0 0
  %2320 = vmatprep.subr.bf16.mxu0 0
  %2321 = vmatpush1.bf16.msra.mxu0 0
  %2322 = vmatprep.subr.bf16.mxu0 0
  %2323 = vmatpush1.bf16.msra.mxu0 %v2288
  %2324 = vmatprep.subr.bf16.mxu0 0
  %2325 = vmatpush1.bf16.msra.mxu0 %v2287
  %2326 = vmatprep.subr.bf16.mxu0 0
  %2327 = vmatpush2.bf16.msra.mxu0 0
  %2328 = vmatprep.subr.bf16.mxu0 0
  %2329 = vmatpush2.bf16.msra.mxu0 0
  %2330 = vmatprep.subr.bf16.mxu0 0
  %2331 = vmatpush2.bf16.msra.mxu0 0
  %2332 = vmatprep.subr.bf16.mxu0 0
  %2333 = vmatpush2.bf16.msra.mxu0 0
  %2334 = vmatprep.subr.bf16.mxu0 0
  %2335 = vmatpush2.bf16.msra.mxu0 0
  %2336 = vmatprep.subr.bf16.mxu0 0
  %2337 = vmatpush2.bf16.msra.mxu0 0
  %2338 = vmatprep.subr.bf16.mxu0 0
  %2339 = vmatpush2.bf16.msra.mxu0 0
  %2340 = vmatprep.subr.bf16.mxu0 0
  %2341 = vmatpush2.bf16.msra.mxu0 0
  %2342 = vmatprep.mubr.bf16.mxu0 0
  %2343 = vmatmul.mubr.bf16.gmra.mxu0 %v2299
  %v2344 = vpop.f32.mrf.mxu0
  %v2345 = vadd.f32 %v2297, %v2344
  %v2346 = vpop.f32.mrf.mxu0
  %v2347 = vpop.f32.mrf.mxu0
  %v2348 = vadd.f32 %v2297, %v2347
  %v2349 = vpop.f32.mrf.mxu0
  %2350 = vmatprep.mubr.bf16.mxu0 0
  %2351 = vmatmul.mubr.bf16.gmra.mxu0 %v2302
  %v2352 = vpop.f32.mrf.mxu0
  %v2353 = vadd.f32 %v2297, %v2352
  %v2354 = vpop.f32.mrf.mxu0
  %v2355 = vpop.f32.mrf.mxu0
  %v2356 = vadd.f32 %v2297, %v2355
  %v2357 = vpop.f32.mrf.mxu0
  %2358 = vmatprep.mubr.bf16.mxu0 0
  %2359 = vmatmul.mubr.bf16.gmra.mxu0 %v2305
  %v2360 = vpop.f32.mrf.mxu0
  %v2361 = vadd.f32 %v2297, %v2360
  %v2362 = vpop.f32.mrf.mxu0
  %v2363 = vpop.f32.mrf.mxu0
  %v2364 = vadd.f32 %v2297, %v2363
  %v2365 = vpop.f32.mrf.mxu0
  %2366 = vmatprep.mubr.bf16.mxu0 0
  %2367 = vmatmul.mubr.bf16.gmra.mxu0 %v2308
  %v2368 = vpop.f32.mrf.mxu0
  %v2369 = vadd.f32 %v2297, %v2368
  %v2370 = vpop.f32.mrf.mxu0
  %v2371 = vpop.f32.mrf.mxu0
  %v2372 = vadd.f32 %v2297, %v2371
  %v2373 = vpop.f32.mrf.mxu0
  %2374 = vdwg.mxu0
  %vm2375 = vcmask 23552
  %2376 = vst.msk [vmem:[%s5] sm:$0xff] %vm2375, %v2345
  %2377 = vst.msk [vmem:[%s5 + $0x8] sm:$0xff] %vm2375, %v2348
  %2378 = vst.msk [vmem:[%s5 + $0x10] sm:$0xff] %vm2375, %v2353
  %2379 = vst.msk [vmem:[%s5 + $0x18] sm:$0xff] %vm2375, %v2356
  %2380 = vst.msk [vmem:[%s5 + $0x20] sm:$0xff] %vm2375, %v2361
  %2381 = vst.msk [vmem:[%s5 + $0x28] sm:$0xff] %vm2375, %v2364
  %2382 = vst.msk [vmem:[%s5 + $0x30] sm:$0xff] %vm2375, %v2369
  %2383 = vst.msk [vmem:[%s5 + $0x38] sm:$0xff] %vm2375, %v2372
  // Predicated region
  $region22: #{tpu_custom_call.1} parent=0 // pred_check
    _
  $region23: #{tpu_custom_call.1} parent=0 // pred_check_branch
    %2385 = sbr.rel (0) target = $region25
  $region24: #{tpu_custom_call.1} parent=0 // pred_region
    _
  $region25: #{tpu_custom_call.1} parent=0 // pred_fallthru
    _
  // Predicated region
  $region26: #{tpu_custom_call.1} parent=0 // pred_check
    _
  $region27: #{tpu_custom_call.1} parent=0 // pred_check_branch
    %2387 = sbr.rel (0) target = $region29
  $region28: #{tpu_custom_call.1} parent=0 // pred_region
    _
  $region29: #{tpu_custom_call.1} parent=0 // pred_fallthru
    _

</llo_original>
